<compile_context>
chip_gen: v7x
topology: tpu7x:2x2x1
jax: 0.10.0
libtpu: 0.0.40
codegen_flags: <defaults>
</compile_context>

<pallas_src>
import math

import jax
import jax.numpy as jnp
import numpy as np
from jax.experimental import pallas as pl
from jax.experimental.pallas import tpu as pltpu

H = 5          # LSTM hidden size per direction
L = 4          # stacked LSTM layers
NDIR = 2       # bidirectional
OUT_DIM = 64   # final Linear output features
OUT_PAD = 128  # lane-dense padded output width (unmasked vst)
G8 = 8 * H     # packed gate width: 4 gates x 2 directions


def bilstm_attention_kernel(xc_ref, wih0_ref, wihr_ref, whh_ref, b_ref,
                            wout_ref, bout_ref, out_ref):
    # xc_ref:   (T, 2D)          row t = [x[t] | x[T-1-t]]  (built in wrapper)
    # wih0_ref: (2D, 8H)         layer-0 input->gate weights; top D rows feed
    #                            forward-direction lanes only, bottom D rows
    #                            feed backward-direction lanes only.
    # wihr_ref: (L-1, 4H, 8H)    layers 1..3 input->gate weights, same split
    #                            (top 2H rows -> fwd lanes, bottom 2H -> bwd).
    # whh_ref:  (L, 2H, 8H)      packed block-diagonal recurrent weights
    # b_ref:    (L, 1, 8H)       b_ih + b_hh, packed per gate/direction
    # wout_ref: (2H, 128), bout_ref: (1, 128)   final Linear (zero-padded)
    # out_ref:  (T, 128)
    T = xc_ref.shape[0]

    lane = jax.lax.broadcasted_iota(jnp.int32, (1, G8), 1)
    # cell-candidate ("g") gate lanes use tanh; all other lanes use sigmoid,
    # computed from the same tanh via sigmoid(x) = 0.5*tanh(x/2) + 0.5.
    g_mask = (lane >= 4 * H) & (lane < 6 * H)

    fwd_rows = None  # list of (1, H): forward hidden at actual time t
    bwd_rows = None  # list of (1, H): backward hidden at actual time t
    for l in range(L):
        # ---- packed, direction-selected input->gate projection: 1 matmul/layer
        if l == 0:
            gx = jnp.dot(xc_ref[...], wih0_ref[...],
                         preferred_element_type=jnp.float32)
        else:
            # hc[t] = [h_prev[t] | h_prev[T-1-t]]  (pure register-list layout)
            hc = jnp.concatenate(
                [jnp.concatenate(fwd_rows, axis=0),
                 jnp.concatenate(bwd_rows, axis=0),
                 jnp.concatenate(fwd_rows[::-1], axis=0),
                 jnp.concatenate(bwd_rows[::-1], axis=0)],
                axis=1)                                        # (T, 4H)
            gx = jnp.dot(hc, wihr_ref[l - 1],
                         preferred_element_type=jnp.float32)
        gx = gx + b_ref[l]        # (T, 8H): row t already holds fwd lanes from
                                  # time t and bwd lanes from time T-1-t.

        w_blk = whh_ref[l]        # (2H, 8H), block-diag over directions

        h = jnp.zeros((1, 2 * H), jnp.float32)   # [h_fwd | h_bwd]
        c = jnp.zeros((1, 2 * H), jnp.float32)   # [c_fwd | c_bwd]
        fwd_rows = [None] * T
        bwd_rows = [None] * T

        # Fully unrolled (T static): both directions advance in lock-step.
        for t in range(T):
            gates = gx[t:t + 1, :] + jnp.dot(
                h, w_blk, preferred_element_type=jnp.float32)   # (1, 8H)
            # Single packed tanh; sigmoid lanes fixed up with 0.5*t + 0.5.
            z = jnp.where(g_mask, gates, 0.5 * gates)
            tz = jnp.tanh(z)
            act = jnp.where(g_mask, tz, 0.5 * tz + 0.5)
            i_t = act[:, 0:2 * H]
            f_t = act[:, 2 * H:4 * H]
            g_t = act[:, 4 * H:6 * H]
            o_t = act[:, 6 * H:8 * H]
            c = f_t * c + i_t * g_t
            h = o_t * jnp.tanh(c)
            fwd_rows[t] = h[:, 0:H]              # forward hidden at time t
            bwd_rows[T - 1 - t] = h[:, H:2 * H]  # backward hidden at time T-1-t

    # Last layer output, materialized once for the final Linear.
    hseq = jnp.concatenate(
        [jnp.concatenate(fwd_rows, axis=0),
         jnp.concatenate(bwd_rows, axis=0)],
        axis=1)                                   # (T, 2H)

    out_ref[...] = (jnp.dot(hseq, wout_ref[...],
                            preferred_element_type=jnp.float32)
                    + bout_ref[...])              # (T, 128), unmasked store


def bilstm_attention_forward(x, packed):
    wih0c, wihrc, whh, b, wout_p, bout_p = packed
    T, D = x.shape
    # Combined [forward-time | reverse-time] input: pure layout plumbing so the
    # kernel needs no per-step direction select.
    xc = jnp.concatenate([x, x[::-1, :]], axis=1)            # (T, 2D)

    vmem = pl.BlockSpec(memory_space=pltpu.MemorySpace.VMEM)
    flops = 2 * (T * 2 * D * G8                  # layer-0 input projection
                 + (L - 1) * T * 4 * H * G8      # layers 1..3 input projections
                 + L * T * 2 * H * G8            # recurrent matmuls
                 + T * 2 * H * OUT_PAD)          # final Linear
    transcendentals = L * T * (G8 + 2 * H)       # tanh(z) + tanh(c) per step
    bytes_accessed = 4 * (xc.size + wih0c.size + wihrc.size + whh.size
                          + b.size + wout_p.size + bout_p.size + T * OUT_PAD)
    out = pl.pallas_call(
        bilstm_attention_kernel,
        out_shape=jax.ShapeDtypeStruct((T, OUT_PAD), jnp.float32),
        in_specs=[vmem] * 7,
        out_specs=vmem,
        cost_estimate=pl.CostEstimate(flops=flops,
                                      transcendentals=transcendentals,
                                      bytes_accessed=bytes_accessed),
    )(xc, wih0c, wihrc, whh, b, wout_p, bout_p)
    return out[:, :OUT_DIM].reshape(1, T, OUT_DIM)   # matches PyTorch [1, batch, 64]


def pack_params(torch_params):
    """Pack PyTorch-layout LSTM/Linear weights into the kernel's layout.

    Gate column layout (width H each): [i_f, i_b, f_f, f_b, g_f, g_b, o_f, o_b].
    Input->gate weights are additionally split by direction along rows so that
    the combined [seq | reversed seq] input produces the direction-correct
    packed gx in a single matmul.
    """
    layers, (w_out, b_out) = torch_params

    def col(g, d):
        s = (2 * g + d) * H
        return slice(s, s + H)

    wih0c = None
    wihrc, whh, bias = [], [], []
    for l in range(L):
        in_dim = layers[l][0][0].shape[1]
        w_ihc = jnp.zeros((2 * in_dim, G8), jnp.float32)
        w_hh_pk = jnp.zeros((2 * H, G8), jnp.float32)   # block-diag over dirs
        b_pk = jnp.zeros((1, G8), jnp.float32)
        for d in range(NDIR):
            w_ih, w_hh_d, b_ih, b_hh = layers[l][d]
            roff = d * in_dim
            for g in range(4):
                rows = slice(g * H, (g + 1) * H)
                w_ihc = w_ihc.at[roff:roff + in_dim, col(g, d)].set(w_ih[rows, :].T)
                w_hh_pk = w_hh_pk.at[d * H:(d + 1) * H, col(g, d)].set(w_hh_d[rows, :].T)
                b_pk = b_pk.at[0, col(g, d)].set(b_ih[rows] + b_hh[rows])
        if l == 0:
            wih0c = w_ihc
        else:
            wihrc.append(w_ihc)
        whh.append(w_hh_pk)
        bias.append(b_pk)

    wout_p = jnp.zeros((2 * H, OUT_PAD), jnp.float32).at[:, :OUT_DIM].set(
        jnp.asarray(w_out, jnp.float32).T)
    bout_p = jnp.zeros((1, OUT_PAD), jnp.float32).at[0, :OUT_DIM].set(
        jnp.asarray(b_out, jnp.float32))
    return (wih0c,
            jnp.stack(wihrc, axis=0),     # (L-1, 4H, 8H)
            jnp.stack(whh, axis=0),       # (L, 2H, 8H)
            jnp.stack(bias, axis=0),      # (L, 1, 8H)
            wout_p,                       # (2H, 128)
            bout_p)                       # (1, 128)


def reference_forward(x, torch_params):
    """Pure-JAX PyTorch-semantics reference (used only to validate the kernel)."""
    layers, (w_out, b_out) = torch_params
    T = x.shape[0]
    inp = x
    for l in range(L):
        outs = []
        for d in range(NDIR):
            w_ih, w_hh, b_ih, b_hh = layers[l][d]
            h = jnp.zeros((H,), jnp.float32)
            c = jnp.zeros((H,), jnp.float32)
            seq = [None] * T
            t_order = range(T) if d == 0 else range(T - 1, -1, -1)
            for t in t_order:
                gates = w_ih @ inp[t] + b_ih + w_hh @ h + b_hh
                i = jax.nn.sigmoid(gates[0:H])
                f = jax.nn.sigmoid(gates[H:2 * H])
                g = jnp.tanh(gates[2 * H:3 * H])
                o = jax.nn.sigmoid(gates[3 * H:4 * H])
                c = f * c + i * g
                h = o * jnp.tanh(c)
                seq[t] = h
            outs.append(jnp.stack(seq, axis=0))
        inp = jnp.concatenate(outs, axis=1)   # (T, 2H) = [fwd | bwd]
    out = inp @ jnp.asarray(w_out).T + jnp.asarray(b_out)
    return out.reshape(1, T, OUT_DIM)


if __name__ == "__main__":
    # Module input X: [batch_size, seq_len]; input_dim == seq_len.
    B, D = 8, 16

    key = jax.random.PRNGKey(0)
    kx, kp = jax.random.split(key)
    x = jax.random.normal(kx, (B, D), jnp.float32)

    # Deterministic PyTorch-layout parameters, U(-1/sqrt(H), 1/sqrt(H)) init.
    k_lstm = 1.0 / math.sqrt(H)
    keys = jax.random.split(kp, L * NDIR * 4 + 2)
    ki = 0
    layers = []
    for l in range(L):
        in_dim = D if l == 0 else NDIR * H
        dirs = []
        for d in range(NDIR):
            w_ih = jax.random.uniform(keys[ki], (4 * H, in_dim), jnp.float32, -k_lstm, k_lstm); ki += 1
            w_hh = jax.random.uniform(keys[ki], (4 * H, H), jnp.float32, -k_lstm, k_lstm); ki += 1
            b_ih = jax.random.uniform(keys[ki], (4 * H,), jnp.float32, -k_lstm, k_lstm); ki += 1
            b_hh = jax.random.uniform(keys[ki], (4 * H,), jnp.float32, -k_lstm, k_lstm); ki += 1
            dirs.append((w_ih, w_hh, b_ih, b_hh))
        layers.append(dirs)
    k_out = 1.0 / math.sqrt(NDIR * H)
    w_out = jax.random.uniform(keys[ki], (OUT_DIM, NDIR * H), jnp.float32, -k_out, k_out); ki += 1
    b_out = jax.random.uniform(keys[ki], (OUT_DIM,), jnp.float32, -k_out, k_out)

    torch_params = (layers, (w_out, b_out))
    packed = pack_params(torch_params)

    y = bilstm_attention_forward(x, packed)
    y = jax.block_until_ready(y)
    assert y.shape == (1, B, OUT_DIM)

    y_ref = reference_forward(x, torch_params)
    np.testing.assert_allclose(np.asarray(y), np.asarray(y_ref), rtol=1e-4, atol=1e-4)

    print("KERNEL_OK")
</pallas_src>

<mosaic_0001>
module attributes {stable_mosaic.version = 11 : i64} {
  func.func @bilstm_attention_kernel(%arg0: memref<8x32xf32, #tpu.memory_space<vmem>>, %arg1: memref<32x40xf32, #tpu.memory_space<vmem>>, %arg2: memref<3x20x40xf32, #tpu.memory_space<vmem>>, %arg3: memref<4x10x40xf32, #tpu.memory_space<vmem>>, %arg4: memref<4x1x40xf32, #tpu.memory_space<vmem>>, %arg5: memref<10x128xf32, #tpu.memory_space<vmem>>, %arg6: memref<1x128xf32, #tpu.memory_space<vmem>>, %arg7: memref<8x128xf32, #tpu.memory_space<vmem>>) attributes {dimension_semantics = [], scalar_prefetch = 0 : i64, scratch_operands = 0 : i64, tpu.core_type = #tpu.core_type<tc>} {
    %0 = tpu.iota {dimensions = array<i32: 1>} : vector<1x40xi32>
    %c20_i32 = arith.constant 20 : i32
    %1 = vector.broadcast %c20_i32 : i32 to vector<1x40xi32>
    %2 = arith.cmpi sge, %0, %1 : vector<1x40xi32>
    %c30_i32 = arith.constant 30 : i32
    %3 = vector.broadcast %c30_i32 : i32 to vector<1x40xi32>
    %4 = arith.cmpi slt, %0, %3 : vector<1x40xi32>
    %5 = arith.andi %2, %4 : vector<1x40xi1>
    %c0 = arith.constant 0 : index
    %c0_0 = arith.constant 0 : index
    %6 = vector.load %arg0[%c0, %c0_0] : memref<8x32xf32, #tpu.memory_space<vmem>>, vector<8x32xf32>
    %c0_1 = arith.constant 0 : index
    %c0_2 = arith.constant 0 : index
    %7 = vector.load %arg1[%c0_1, %c0_2] : memref<32x40xf32, #tpu.memory_space<vmem>>, vector<32x40xf32>
    %cst = arith.constant dense<0.000000e+00> : vector<8x40xf32>
    %8 = tpu.matmul %6, %7, %cst {dimension_numbers = #tpu.dot_dimension_numbers<[1], [0], [0], [1], [0, 0, 1, 1], [], []>} : vector<8x32xf32>, vector<32x40xf32>, vector<8x40xf32> -> vector<8x40xf32>
    %c0_3 = arith.constant 0 : index
    %c0_4 = arith.constant 0 : index
    %c0_5 = arith.constant 0 : index
    %9 = vector.load %arg4[%c0_3, %c0_4, %c0_5] : memref<4x1x40xf32, #tpu.memory_space<vmem>>, vector<1x1x40xf32>
    %10 = vector.shape_cast %9 : vector<1x1x40xf32> to vector<1x40xf32>
    %11 = vector.broadcast %10 : vector<1x40xf32> to vector<8x40xf32>
    %12 = arith.addf %8, %11 : vector<8x40xf32>
    %c0_6 = arith.constant 0 : index
    %c0_7 = arith.constant 0 : index
    %c0_8 = arith.constant 0 : index
    %13 = vector.load %arg3[%c0_6, %c0_7, %c0_8] : memref<4x10x40xf32, #tpu.memory_space<vmem>>, vector<1x10x40xf32>
    %14 = vector.shape_cast %13 : vector<1x10x40xf32> to vector<10x40xf32>
    %cst_9 = arith.constant 0.000000e+00 : f32
    %15 = vector.broadcast %cst_9 : f32 to vector<1x10xf32>
    %cst_10 = arith.constant 0.000000e+00 : f32
    %16 = vector.broadcast %cst_10 : f32 to vector<1x10xf32>
    %17 = vector.extract_strided_slice %12 {offsets = [0, 0], sizes = [1, 40], strides = [1, 1]} : vector<8x40xf32> to vector<1x40xf32>
    %cst_11 = arith.constant dense<0.000000e+00> : vector<1x40xf32>
    %18 = tpu.matmul %15, %14, %cst_11 {dimension_numbers = #tpu.dot_dimension_numbers<[1], [0], [0], [1], [0, 0, 1, 1], [], []>} : vector<1x10xf32>, vector<10x40xf32>, vector<1x40xf32> -> vector<1x40xf32>
    %19 = arith.addf %17, %18 : vector<1x40xf32>
    %cst_12 = arith.constant 5.000000e-01 : f32
    %20 = vector.broadcast %cst_12 : f32 to vector<1x40xf32>
    %21 = arith.mulf %20, %19 : vector<1x40xf32>
    %22 = arith.select %5, %19, %21 : vector<1x40xi1>, vector<1x40xf32>
    %23 = math.tanh %22 : vector<1x40xf32>
    %cst_13 = arith.constant 5.000000e-01 : f32
    %24 = vector.broadcast %cst_13 : f32 to vector<1x40xf32>
    %25 = arith.mulf %24, %23 : vector<1x40xf32>
    %cst_14 = arith.constant 5.000000e-01 : f32
    %26 = vector.broadcast %cst_14 : f32 to vector<1x40xf32>
    %27 = arith.addf %25, %26 : vector<1x40xf32>
    %28 = arith.select %5, %23, %27 : vector<1x40xi1>, vector<1x40xf32>
    %29 = vector.extract_strided_slice %28 {offsets = [0, 0], sizes = [1, 10], strides = [1, 1]} : vector<1x40xf32> to vector<1x10xf32>
    %30 = vector.extract_strided_slice %28 {offsets = [0, 10], sizes = [1, 10], strides = [1, 1]} : vector<1x40xf32> to vector<1x10xf32>
    %31 = vector.extract_strided_slice %28 {offsets = [0, 20], sizes = [1, 10], strides = [1, 1]} : vector<1x40xf32> to vector<1x10xf32>
    %32 = vector.extract_strided_slice %28 {offsets = [0, 30], sizes = [1, 10], strides = [1, 1]} : vector<1x40xf32> to vector<1x10xf32>
    %33 = arith.mulf %30, %16 : vector<1x10xf32>
    %34 = arith.mulf %29, %31 : vector<1x10xf32>
    %35 = arith.addf %33, %34 : vector<1x10xf32>
    %36 = math.tanh %35 : vector<1x10xf32>
    %37 = arith.mulf %32, %36 : vector<1x10xf32>
    %38 = vector.extract_strided_slice %37 {offsets = [0, 0], sizes = [1, 5], strides = [1, 1]} : vector<1x10xf32> to vector<1x5xf32>
    %39 = vector.extract_strided_slice %37 {offsets = [0, 5], sizes = [1, 5], strides = [1, 1]} : vector<1x10xf32> to vector<1x5xf32>
    %40 = vector.extract_strided_slice %12 {offsets = [1, 0], sizes = [1, 40], strides = [1, 1]} : vector<8x40xf32> to vector<1x40xf32>
    %cst_15 = arith.constant dense<0.000000e+00> : vector<1x40xf32>
    %41 = tpu.matmul %37, %14, %cst_15 {dimension_numbers = #tpu.dot_dimension_numbers<[1], [0], [0], [1], [0, 0, 1, 1], [], []>} : vector<1x10xf32>, vector<10x40xf32>, vector<1x40xf32> -> vector<1x40xf32>
    %42 = arith.addf %40, %41 : vector<1x40xf32>
    %cst_16 = arith.constant 5.000000e-01 : f32
    %43 = vector.broadcast %cst_16 : f32 to vector<1x40xf32>
    %44 = arith.mulf %43, %42 : vector<1x40xf32>
    %45 = arith.select %5, %42, %44 : vector<1x40xi1>, vector<1x40xf32>
    %46 = math.tanh %45 : vector<1x40xf32>
    %cst_17 = arith.constant 5.000000e-01 : f32
    %47 = vector.broadcast %cst_17 : f32 to vector<1x40xf32>
    %48 = arith.mulf %47, %46 : vector<1x40xf32>
    %cst_18 = arith.constant 5.000000e-01 : f32
    %49 = vector.broadcast %cst_18 : f32 to vector<1x40xf32>
    %50 = arith.addf %48, %49 : vector<1x40xf32>
    %51 = arith.select %5, %46, %50 : vector<1x40xi1>, vector<1x40xf32>
    %52 = vector.extract_strided_slice %51 {offsets = [0, 0], sizes = [1, 10], strides = [1, 1]} : vector<1x40xf32> to vector<1x10xf32>
    %53 = vector.extract_strided_slice %51 {offsets = [0, 10], sizes = [1, 10], strides = [1, 1]} : vector<1x40xf32> to vector<1x10xf32>
    %54 = vector.extract_strided_slice %51 {offsets = [0, 20], sizes = [1, 10], strides = [1, 1]} : vector<1x40xf32> to vector<1x10xf32>
    %55 = vector.extract_strided_slice %51 {offsets = [0, 30], sizes = [1, 10], strides = [1, 1]} : vector<1x40xf32> to vector<1x10xf32>
    %56 = arith.mulf %53, %35 : vector<1x10xf32>
    %57 = arith.mulf %52, %54 : vector<1x10xf32>
    %58 = arith.addf %56, %57 : vector<1x10xf32>
    %59 = math.tanh %58 : vector<1x10xf32>
    %60 = arith.mulf %55, %59 : vector<1x10xf32>
    %61 = vector.extract_strided_slice %60 {offsets = [0, 0], sizes = [1, 5], strides = [1, 1]} : vector<1x10xf32> to vector<1x5xf32>
    %62 = vector.extract_strided_slice %60 {offsets = [0, 5], sizes = [1, 5], strides = [1, 1]} : vector<1x10xf32> to vector<1x5xf32>
    %63 = vector.extract_strided_slice %12 {offsets = [2, 0], sizes = [1, 40], strides = [1, 1]} : vector<8x40xf32> to vector<1x40xf32>
    %cst_19 = arith.constant dense<0.000000e+00> : vector<1x40xf32>
    %64 = tpu.matmul %60, %14, %cst_19 {dimension_numbers = #tpu.dot_dimension_numbers<[1], [0], [0], [1], [0, 0, 1, 1], [], []>} : vector<1x10xf32>, vector<10x40xf32>, vector<1x40xf32> -> vector<1x40xf32>
    %65 = arith.addf %63, %64 : vector<1x40xf32>
    %cst_20 = arith.constant 5.000000e-01 : f32
    %66 = vector.broadcast %cst_20 : f32 to vector<1x40xf32>
    %67 = arith.mulf %66, %65 : vector<1x40xf32>
    %68 = arith.select %5, %65, %67 : vector<1x40xi1>, vector<1x40xf32>
    %69 = math.tanh %68 : vector<1x40xf32>
    %cst_21 = arith.constant 5.000000e-01 : f32
    %70 = vector.broadcast %cst_21 : f32 to vector<1x40xf32>
    %71 = arith.mulf %70, %69 : vector<1x40xf32>
    %cst_22 = arith.constant 5.000000e-01 : f32
    %72 = vector.broadcast %cst_22 : f32 to vector<1x40xf32>
    %73 = arith.addf %71, %72 : vector<1x40xf32>
    %74 = arith.select %5, %69, %73 : vector<1x40xi1>, vector<1x40xf32>
    %75 = vector.extract_strided_slice %74 {offsets = [0, 0], sizes = [1, 10], strides = [1, 1]} : vector<1x40xf32> to vector<1x10xf32>
    %76 = vector.extract_strided_slice %74 {offsets = [0, 10], sizes = [1, 10], strides = [1, 1]} : vector<1x40xf32> to vector<1x10xf32>
    %77 = vector.extract_strided_slice %74 {offsets = [0, 20], sizes = [1, 10], strides = [1, 1]} : vector<1x40xf32> to vector<1x10xf32>
    %78 = vector.extract_strided_slice %74 {offsets = [0, 30], sizes = [1, 10], strides = [1, 1]} : vector<1x40xf32> to vector<1x10xf32>
    %79 = arith.mulf %76, %58 : vector<1x10xf32>
    %80 = arith.mulf %75, %77 : vector<1x10xf32>
    %81 = arith.addf %79, %80 : vector<1x10xf32>
    %82 = math.tanh %81 : vector<1x10xf32>
    %83 = arith.mulf %78, %82 : vector<1x10xf32>
    %84 = vector.extract_strided_slice %83 {offsets = [0, 0], sizes = [1, 5], strides = [1, 1]} : vector<1x10xf32> to vector<1x5xf32>
    %85 = vector.extract_strided_slice %83 {offsets = [0, 5], sizes = [1, 5], strides = [1, 1]} : vector<1x10xf32> to vector<1x5xf32>
    %86 = vector.extract_strided_slice %12 {offsets = [3, 0], sizes = [1, 40], strides = [1, 1]} : vector<8x40xf32> to vector<1x40xf32>
    %cst_23 = arith.constant dense<0.000000e+00> : vector<1x40xf32>
    %87 = tpu.matmul %83, %14, %cst_23 {dimension_numbers = #tpu.dot_dimension_numbers<[1], [0], [0], [1], [0, 0, 1, 1], [], []>} : vector<1x10xf32>, vector<10x40xf32>, vector<1x40xf32> -> vector<1x40xf32>
    %88 = arith.addf %86, %87 : vector<1x40xf32>
    %cst_24 = arith.constant 5.000000e-01 : f32
    %89 = vector.broadcast %cst_24 : f32 to vector<1x40xf32>
    %90 = arith.mulf %89, %88 : vector<1x40xf32>
    %91 = arith.select %5, %88, %90 : vector<1x40xi1>, vector<1x40xf32>
    %92 = math.tanh %91 : vector<1x40xf32>
    %cst_25 = arith.constant 5.000000e-01 : f32
    %93 = vector.broadcast %cst_25 : f32 to vector<1x40xf32>
    %94 = arith.mulf %93, %92 : vector<1x40xf32>
    %cst_26 = arith.constant 5.000000e-01 : f32
    %95 = vector.broadcast %cst_26 : f32 to vector<1x40xf32>
    %96 = arith.addf %94, %95 : vector<1x40xf32>
    %97 = arith.select %5, %92, %96 : vector<1x40xi1>, vector<1x40xf32>
    %98 = vector.extract_strided_slice %97 {offsets = [0, 0], sizes = [1, 10], strides = [1, 1]} : vector<1x40xf32> to vector<1x10xf32>
    %99 = vector.extract_strided_slice %97 {offsets = [0, 10], sizes = [1, 10], strides = [1, 1]} : vector<1x40xf32> to vector<1x10xf32>
    %100 = vector.extract_strided_slice %97 {offsets = [0, 20], sizes = [1, 10], strides = [1, 1]} : vector<1x40xf32> to vector<1x10xf32>
    %101 = vector.extract_strided_slice %97 {offsets = [0, 30], sizes = [1, 10], strides = [1, 1]} : vector<1x40xf32> to vector<1x10xf32>
    %102 = arith.mulf %99, %81 : vector<1x10xf32>
    %103 = arith.mulf %98, %100 : vector<1x10xf32>
    %104 = arith.addf %102, %103 : vector<1x10xf32>
    %105 = math.tanh %104 : vector<1x10xf32>
    %106 = arith.mulf %101, %105 : vector<1x10xf32>
    %107 = vector.extract_strided_slice %106 {offsets = [0, 0], sizes = [1, 5], strides = [1, 1]} : vector<1x10xf32> to vector<1x5xf32>
    %108 = vector.extract_strided_slice %106 {offsets = [0, 5], sizes = [1, 5], strides = [1, 1]} : vector<1x10xf32> to vector<1x5xf32>
    %109 = vector.extract_strided_slice %12 {offsets = [4, 0], sizes = [1, 40], strides = [1, 1]} : vector<8x40xf32> to vector<1x40xf32>
    %cst_27 = arith.constant dense<0.000000e+00> : vector<1x40xf32>
    %110 = tpu.matmul %106, %14, %cst_27 {dimension_numbers = #tpu.dot_dimension_numbers<[1], [0], [0], [1], [0, 0, 1, 1], [], []>} : vector<1x10xf32>, vector<10x40xf32>, vector<1x40xf32> -> vector<1x40xf32>
    %111 = arith.addf %109, %110 : vector<1x40xf32>
    %cst_28 = arith.constant 5.000000e-01 : f32
    %112 = vector.broadcast %cst_28 : f32 to vector<1x40xf32>
    %113 = arith.mulf %112, %111 : vector<1x40xf32>
    %114 = arith.select %5, %111, %113 : vector<1x40xi1>, vector<1x40xf32>
    %115 = math.tanh %114 : vector<1x40xf32>
    %cst_29 = arith.constant 5.000000e-01 : f32
    %116 = vector.broadcast %cst_29 : f32 to vector<1x40xf32>
    %117 = arith.mulf %116, %115 : vector<1x40xf32>
    %cst_30 = arith.constant 5.000000e-01 : f32
    %118 = vector.broadcast %cst_30 : f32 to vector<1x40xf32>
    %119 = arith.addf %117, %118 : vector<1x40xf32>
    %120 = arith.select %5, %115, %119 : vector<1x40xi1>, vector<1x40xf32>
    %121 = vector.extract_strided_slice %120 {offsets = [0, 0], sizes = [1, 10], strides = [1, 1]} : vector<1x40xf32> to vector<1x10xf32>
    %122 = vector.extract_strided_slice %120 {offsets = [0, 10], sizes = [1, 10], strides = [1, 1]} : vector<1x40xf32> to vector<1x10xf32>
    %123 = vector.extract_strided_slice %120 {offsets = [0, 20], sizes = [1, 10], strides = [1, 1]} : vector<1x40xf32> to vector<1x10xf32>
    %124 = vector.extract_strided_slice %120 {offsets = [0, 30], sizes = [1, 10], strides = [1, 1]} : vector<1x40xf32> to vector<1x10xf32>
    %125 = arith.mulf %122, %104 : vector<1x10xf32>
    %126 = arith.mulf %121, %123 : vector<1x10xf32>
    %127 = arith.addf %125, %126 : vector<1x10xf32>
    %128 = math.tanh %127 : vector<1x10xf32>
    %129 = arith.mulf %124, %128 : vector<1x10xf32>
    %130 = vector.extract_strided_slice %129 {offsets = [0, 0], sizes = [1, 5], strides = [1, 1]} : vector<1x10xf32> to vector<1x5xf32>
    %131 = vector.extract_strided_slice %129 {offsets = [0, 5], sizes = [1, 5], strides = [1, 1]} : vector<1x10xf32> to vector<1x5xf32>
    %132 = vector.extract_strided_slice %12 {offsets = [5, 0], sizes = [1, 40], strides = [1, 1]} : vector<8x40xf32> to vector<1x40xf32>
    %cst_31 = arith.constant dense<0.000000e+00> : vector<1x40xf32>
    %133 = tpu.matmul %129, %14, %cst_31 {dimension_numbers = #tpu.dot_dimension_numbers<[1], [0], [0], [1], [0, 0, 1, 1], [], []>} : vector<1x10xf32>, vector<10x40xf32>, vector<1x40xf32> -> vector<1x40xf32>
    %134 = arith.addf %132, %133 : vector<1x40xf32>
    %cst_32 = arith.constant 5.000000e-01 : f32
    %135 = vector.broadcast %cst_32 : f32 to vector<1x40xf32>
    %136 = arith.mulf %135, %134 : vector<1x40xf32>
    %137 = arith.select %5, %134, %136 : vector<1x40xi1>, vector<1x40xf32>
    %138 = math.tanh %137 : vector<1x40xf32>
    %cst_33 = arith.constant 5.000000e-01 : f32
    %139 = vector.broadcast %cst_33 : f32 to vector<1x40xf32>
    %140 = arith.mulf %139, %138 : vector<1x40xf32>
    %cst_34 = arith.constant 5.000000e-01 : f32
    %141 = vector.broadcast %cst_34 : f32 to vector<1x40xf32>
    %142 = arith.addf %140, %141 : vector<1x40xf32>
    %143 = arith.select %5, %138, %142 : vector<1x40xi1>, vector<1x40xf32>
    %144 = vector.extract_strided_slice %143 {offsets = [0, 0], sizes = [1, 10], strides = [1, 1]} : vector<1x40xf32> to vector<1x10xf32>
    %145 = vector.extract_strided_slice %143 {offsets = [0, 10], sizes = [1, 10], strides = [1, 1]} : vector<1x40xf32> to vector<1x10xf32>
    %146 = vector.extract_strided_slice %143 {offsets = [0, 20], sizes = [1, 10], strides = [1, 1]} : vector<1x40xf32> to vector<1x10xf32>
    %147 = vector.extract_strided_slice %143 {offsets = [0, 30], sizes = [1, 10], strides = [1, 1]} : vector<1x40xf32> to vector<1x10xf32>
    %148 = arith.mulf %145, %127 : vector<1x10xf32>
    %149 = arith.mulf %144, %146 : vector<1x10xf32>
    %150 = arith.addf %148, %149 : vector<1x10xf32>
    %151 = math.tanh %150 : vector<1x10xf32>
    %152 = arith.mulf %147, %151 : vector<1x10xf32>
    %153 = vector.extract_strided_slice %152 {offsets = [0, 0], sizes = [1, 5], strides = [1, 1]} : vector<1x10xf32> to vector<1x5xf32>
    %154 = vector.extract_strided_slice %152 {offsets = [0, 5], sizes = [1, 5], strides = [1, 1]} : vector<1x10xf32> to vector<1x5xf32>
    %155 = vector.extract_strided_slice %12 {offsets = [6, 0], sizes = [1, 40], strides = [1, 1]} : vector<8x40xf32> to vector<1x40xf32>
    %cst_35 = arith.constant dense<0.000000e+00> : vector<1x40xf32>
    %156 = tpu.matmul %152, %14, %cst_35 {dimension_numbers = #tpu.dot_dimension_numbers<[1], [0], [0], [1], [0, 0, 1, 1], [], []>} : vector<1x10xf32>, vector<10x40xf32>, vector<1x40xf32> -> vector<1x40xf32>
    %157 = arith.addf %155, %156 : vector<1x40xf32>
    %cst_36 = arith.constant 5.000000e-01 : f32
    %158 = vector.broadcast %cst_36 : f32 to vector<1x40xf32>
    %159 = arith.mulf %158, %157 : vector<1x40xf32>
    %160 = arith.select %5, %157, %159 : vector<1x40xi1>, vector<1x40xf32>
    %161 = math.tanh %160 : vector<1x40xf32>
    %cst_37 = arith.constant 5.000000e-01 : f32
    %162 = vector.broadcast %cst_37 : f32 to vector<1x40xf32>
    %163 = arith.mulf %162, %161 : vector<1x40xf32>
    %cst_38 = arith.constant 5.000000e-01 : f32
    %164 = vector.broadcast %cst_38 : f32 to vector<1x40xf32>
    %165 = arith.addf %163, %164 : vector<1x40xf32>
    %166 = arith.select %5, %161, %165 : vector<1x40xi1>, vector<1x40xf32>
    %167 = vector.extract_strided_slice %166 {offsets = [0, 0], sizes = [1, 10], strides = [1, 1]} : vector<1x40xf32> to vector<1x10xf32>
    %168 = vector.extract_strided_slice %166 {offsets = [0, 10], sizes = [1, 10], strides = [1, 1]} : vector<1x40xf32> to vector<1x10xf32>
    %169 = vector.extract_strided_slice %166 {offsets = [0, 20], sizes = [1, 10], strides = [1, 1]} : vector<1x40xf32> to vector<1x10xf32>
    %170 = vector.extract_strided_slice %166 {offsets = [0, 30], sizes = [1, 10], strides = [1, 1]} : vector<1x40xf32> to vector<1x10xf32>
    %171 = arith.mulf %168, %150 : vector<1x10xf32>
    %172 = arith.mulf %167, %169 : vector<1x10xf32>
    %173 = arith.addf %171, %172 : vector<1x10xf32>
    %174 = math.tanh %173 : vector<1x10xf32>
    %175 = arith.mulf %170, %174 : vector<1x10xf32>
    %176 = vector.extract_strided_slice %175 {offsets = [0, 0], sizes = [1, 5], strides = [1, 1]} : vector<1x10xf32> to vector<1x5xf32>
    %177 = vector.extract_strided_slice %175 {offsets = [0, 5], sizes = [1, 5], strides = [1, 1]} : vector<1x10xf32> to vector<1x5xf32>
    %178 = vector.extract_strided_slice %12 {offsets = [7, 0], sizes = [1, 40], strides = [1, 1]} : vector<8x40xf32> to vector<1x40xf32>
    %cst_39 = arith.constant dense<0.000000e+00> : vector<1x40xf32>
    %179 = tpu.matmul %175, %14, %cst_39 {dimension_numbers = #tpu.dot_dimension_numbers<[1], [0], [0], [1], [0, 0, 1, 1], [], []>} : vector<1x10xf32>, vector<10x40xf32>, vector<1x40xf32> -> vector<1x40xf32>
    %180 = arith.addf %178, %179 : vector<1x40xf32>
    %cst_40 = arith.constant 5.000000e-01 : f32
    %181 = vector.broadcast %cst_40 : f32 to vector<1x40xf32>
    %182 = arith.mulf %181, %180 : vector<1x40xf32>
    %183 = arith.select %5, %180, %182 : vector<1x40xi1>, vector<1x40xf32>
    %184 = math.tanh %183 : vector<1x40xf32>
    %cst_41 = arith.constant 5.000000e-01 : f32
    %185 = vector.broadcast %cst_41 : f32 to vector<1x40xf32>
    %186 = arith.mulf %185, %184 : vector<1x40xf32>
    %cst_42 = arith.constant 5.000000e-01 : f32
    %187 = vector.broadcast %cst_42 : f32 to vector<1x40xf32>
    %188 = arith.addf %186, %187 : vector<1x40xf32>
    %189 = arith.select %5, %184, %188 : vector<1x40xi1>, vector<1x40xf32>
    %190 = vector.extract_strided_slice %189 {offsets = [0, 0], sizes = [1, 10], strides = [1, 1]} : vector<1x40xf32> to vector<1x10xf32>
    %191 = vector.extract_strided_slice %189 {offsets = [0, 10], sizes = [1, 10], strides = [1, 1]} : vector<1x40xf32> to vector<1x10xf32>
    %192 = vector.extract_strided_slice %189 {offsets = [0, 20], sizes = [1, 10], strides = [1, 1]} : vector<1x40xf32> to vector<1x10xf32>
    %193 = vector.extract_strided_slice %189 {offsets = [0, 30], sizes = [1, 10], strides = [1, 1]} : vector<1x40xf32> to vector<1x10xf32>
    %194 = arith.mulf %191, %173 : vector<1x10xf32>
    %195 = arith.mulf %190, %192 : vector<1x10xf32>
    %196 = arith.addf %194, %195 : vector<1x10xf32>
    %197 = math.tanh %196 : vector<1x10xf32>
    %198 = arith.mulf %193, %197 : vector<1x10xf32>
    %199 = vector.extract_strided_slice %198 {offsets = [0, 0], sizes = [1, 5], strides = [1, 1]} : vector<1x10xf32> to vector<1x5xf32>
    %200 = vector.extract_strided_slice %198 {offsets = [0, 5], sizes = [1, 5], strides = [1, 1]} : vector<1x10xf32> to vector<1x5xf32>
    %201 = tpu.concatenate %38, %61, %84, %107, %130, %153, %176, %199 in 0 : vector<1x5xf32>, vector<1x5xf32>, vector<1x5xf32>, vector<1x5xf32>, vector<1x5xf32>, vector<1x5xf32>, vector<1x5xf32>, vector<1x5xf32> -> vector<8x5xf32>
    %202 = tpu.concatenate %200, %177, %154, %131, %108, %85, %62, %39 in 0 : vector<1x5xf32>, vector<1x5xf32>, vector<1x5xf32>, vector<1x5xf32>, vector<1x5xf32>, vector<1x5xf32>, vector<1x5xf32>, vector<1x5xf32> -> vector<8x5xf32>
    %203 = tpu.concatenate %199, %176, %153, %130, %107, %84, %61, %38 in 0 : vector<1x5xf32>, vector<1x5xf32>, vector<1x5xf32>, vector<1x5xf32>, vector<1x5xf32>, vector<1x5xf32>, vector<1x5xf32>, vector<1x5xf32> -> vector<8x5xf32>
    %204 = tpu.concatenate %39, %62, %85, %108, %131, %154, %177, %200 in 0 : vector<1x5xf32>, vector<1x5xf32>, vector<1x5xf32>, vector<1x5xf32>, vector<1x5xf32>, vector<1x5xf32>, vector<1x5xf32>, vector<1x5xf32> -> vector<8x5xf32>
    %205 = tpu.concatenate %201, %202, %203, %204 in 1 : vector<8x5xf32>, vector<8x5xf32>, vector<8x5xf32>, vector<8x5xf32> -> vector<8x20xf32>
    %c0_43 = arith.constant 0 : index
    %c0_44 = arith.constant 0 : index
    %c0_45 = arith.constant 0 : index
    %206 = vector.load %arg2[%c0_43, %c0_44, %c0_45] : memref<3x20x40xf32, #tpu.memory_space<vmem>>, vector<1x20x40xf32>
    %207 = vector.shape_cast %206 : vector<1x20x40xf32> to vector<20x40xf32>
    %cst_46 = arith.constant dense<0.000000e+00> : vector<8x40xf32>
    %208 = tpu.matmul %205, %207, %cst_46 {dimension_numbers = #tpu.dot_dimension_numbers<[1], [0], [0], [1], [0, 0, 1, 1], [], []>} : vector<8x20xf32>, vector<20x40xf32>, vector<8x40xf32> -> vector<8x40xf32>
    %c1 = arith.constant 1 : index
    %c0_47 = arith.constant 0 : index
    %c0_48 = arith.constant 0 : index
    %209 = vector.load %arg4[%c1, %c0_47, %c0_48] : memref<4x1x40xf32, #tpu.memory_space<vmem>>, vector<1x1x40xf32>
    %210 = vector.shape_cast %209 : vector<1x1x40xf32> to vector<1x40xf32>
    %211 = vector.broadcast %210 : vector<1x40xf32> to vector<8x40xf32>
    %212 = arith.addf %208, %211 : vector<8x40xf32>
    %c1_49 = arith.constant 1 : index
    %c0_50 = arith.constant 0 : index
    %c0_51 = arith.constant 0 : index
    %213 = vector.load %arg3[%c1_49, %c0_50, %c0_51] : memref<4x10x40xf32, #tpu.memory_space<vmem>>, vector<1x10x40xf32>
    %214 = vector.shape_cast %213 : vector<1x10x40xf32> to vector<10x40xf32>
    %cst_52 = arith.constant 0.000000e+00 : f32
    %215 = vector.broadcast %cst_52 : f32 to vector<1x10xf32>
    %cst_53 = arith.constant 0.000000e+00 : f32
    %216 = vector.broadcast %cst_53 : f32 to vector<1x10xf32>
    %217 = vector.extract_strided_slice %212 {offsets = [0, 0], sizes = [1, 40], strides = [1, 1]} : vector<8x40xf32> to vector<1x40xf32>
    %cst_54 = arith.constant dense<0.000000e+00> : vector<1x40xf32>
    %218 = tpu.matmul %215, %214, %cst_54 {dimension_numbers = #tpu.dot_dimension_numbers<[1], [0], [0], [1], [0, 0, 1, 1], [], []>} : vector<1x10xf32>, vector<10x40xf32>, vector<1x40xf32> -> vector<1x40xf32>
    %219 = arith.addf %217, %218 : vector<1x40xf32>
    %cst_55 = arith.constant 5.000000e-01 : f32
    %220 = vector.broadcast %cst_55 : f32 to vector<1x40xf32>
    %221 = arith.mulf %220, %219 : vector<1x40xf32>
    %222 = arith.select %5, %219, %221 : vector<1x40xi1>, vector<1x40xf32>
    %223 = math.tanh %222 : vector<1x40xf32>
    %cst_56 = arith.constant 5.000000e-01 : f32
    %224 = vector.broadcast %cst_56 : f32 to vector<1x40xf32>
    %225 = arith.mulf %224, %223 : vector<1x40xf32>
    %cst_57 = arith.constant 5.000000e-01 : f32
    %226 = vector.broadcast %cst_57 : f32 to vector<1x40xf32>
    %227 = arith.addf %225, %226 : vector<1x40xf32>
    %228 = arith.select %5, %223, %227 : vector<1x40xi1>, vector<1x40xf32>
    %229 = vector.extract_strided_slice %228 {offsets = [0, 0], sizes = [1, 10], strides = [1, 1]} : vector<1x40xf32> to vector<1x10xf32>
    %230 = vector.extract_strided_slice %228 {offsets = [0, 10], sizes = [1, 10], strides = [1, 1]} : vector<1x40xf32> to vector<1x10xf32>
    %231 = vector.extract_strided_slice %228 {offsets = [0, 20], sizes = [1, 10], strides = [1, 1]} : vector<1x40xf32> to vector<1x10xf32>
    %232 = vector.extract_strided_slice %228 {offsets = [0, 30], sizes = [1, 10], strides = [1, 1]} : vector<1x40xf32> to vector<1x10xf32>
    %233 = arith.mulf %230, %216 : vector<1x10xf32>
    %234 = arith.mulf %229, %231 : vector<1x10xf32>
    %235 = arith.addf %233, %234 : vector<1x10xf32>
    %236 = math.tanh %235 : vector<1x10xf32>
    %237 = arith.mulf %232, %236 : vector<1x10xf32>
    %238 = vector.extract_strided_slice %237 {offsets = [0, 0], sizes = [1, 5], strides = [1, 1]} : vector<1x10xf32> to vector<1x5xf32>
    %239 = vector.extract_strided_slice %237 {offsets = [0, 5], sizes = [1, 5], strides = [1, 1]} : vector<1x10xf32> to vector<1x5xf32>
    %240 = vector.extract_strided_slice %212 {offsets = [1, 0], sizes = [1, 40], strides = [1, 1]} : vector<8x40xf32> to vector<1x40xf32>
    %cst_58 = arith.constant dense<0.000000e+00> : vector<1x40xf32>
    %241 = tpu.matmul %237, %214, %cst_58 {dimension_numbers = #tpu.dot_dimension_numbers<[1], [0], [0], [1], [0, 0, 1, 1], [], []>} : vector<1x10xf32>, vector<10x40xf32>, vector<1x40xf32> -> vector<1x40xf32>
    %242 = arith.addf %240, %241 : vector<1x40xf32>
    %cst_59 = arith.constant 5.000000e-01 : f32
    %243 = vector.broadcast %cst_59 : f32 to vector<1x40xf32>
    %244 = arith.mulf %243, %242 : vector<1x40xf32>
    %245 = arith.select %5, %242, %244 : vector<1x40xi1>, vector<1x40xf32>
    %246 = math.tanh %245 : vector<1x40xf32>
    %cst_60 = arith.constant 5.000000e-01 : f32
    %247 = vector.broadcast %cst_60 : f32 to vector<1x40xf32>
    %248 = arith.mulf %247, %246 : vector<1x40xf32>
    %cst_61 = arith.constant 5.000000e-01 : f32
    %249 = vector.broadcast %cst_61 : f32 to vector<1x40xf32>
    %250 = arith.addf %248, %249 : vector<1x40xf32>
    %251 = arith.select %5, %246, %250 : vector<1x40xi1>, vector<1x40xf32>
    %252 = vector.extract_strided_slice %251 {offsets = [0, 0], sizes = [1, 10], strides = [1, 1]} : vector<1x40xf32> to vector<1x10xf32>
    %253 = vector.extract_strided_slice %251 {offsets = [0, 10], sizes = [1, 10], strides = [1, 1]} : vector<1x40xf32> to vector<1x10xf32>
    %254 = vector.extract_strided_slice %251 {offsets = [0, 20], sizes = [1, 10], strides = [1, 1]} : vector<1x40xf32> to vector<1x10xf32>
    %255 = vector.extract_strided_slice %251 {offsets = [0, 30], sizes = [1, 10], strides = [1, 1]} : vector<1x40xf32> to vector<1x10xf32>
    %256 = arith.mulf %253, %235 : vector<1x10xf32>
    %257 = arith.mulf %252, %254 : vector<1x10xf32>
    %258 = arith.addf %256, %257 : vector<1x10xf32>
    %259 = math.tanh %258 : vector<1x10xf32>
    %260 = arith.mulf %255, %259 : vector<1x10xf32>
    %261 = vector.extract_strided_slice %260 {offsets = [0, 0], sizes = [1, 5], strides = [1, 1]} : vector<1x10xf32> to vector<1x5xf32>
    %262 = vector.extract_strided_slice %260 {offsets = [0, 5], sizes = [1, 5], strides = [1, 1]} : vector<1x10xf32> to vector<1x5xf32>
    %263 = vector.extract_strided_slice %212 {offsets = [2, 0], sizes = [1, 40], strides = [1, 1]} : vector<8x40xf32> to vector<1x40xf32>
    %cst_62 = arith.constant dense<0.000000e+00> : vector<1x40xf32>
    %264 = tpu.matmul %260, %214, %cst_62 {dimension_numbers = #tpu.dot_dimension_numbers<[1], [0], [0], [1], [0, 0, 1, 1], [], []>} : vector<1x10xf32>, vector<10x40xf32>, vector<1x40xf32> -> vector<1x40xf32>
    %265 = arith.addf %263, %264 : vector<1x40xf32>
    %cst_63 = arith.constant 5.000000e-01 : f32
    %266 = vector.broadcast %cst_63 : f32 to vector<1x40xf32>
    %267 = arith.mulf %266, %265 : vector<1x40xf32>
    %268 = arith.select %5, %265, %267 : vector<1x40xi1>, vector<1x40xf32>
    %269 = math.tanh %268 : vector<1x40xf32>
    %cst_64 = arith.constant 5.000000e-01 : f32
    %270 = vector.broadcast %cst_64 : f32 to vector<1x40xf32>
    %271 = arith.mulf %270, %269 : vector<1x40xf32>
    %cst_65 = arith.constant 5.000000e-01 : f32
    %272 = vector.broadcast %cst_65 : f32 to vector<1x40xf32>
    %273 = arith.addf %271, %272 : vector<1x40xf32>
    %274 = arith.select %5, %269, %273 : vector<1x40xi1>, vector<1x40xf32>
    %275 = vector.extract_strided_slice %274 {offsets = [0, 0], sizes = [1, 10], strides = [1, 1]} : vector<1x40xf32> to vector<1x10xf32>
    %276 = vector.extract_strided_slice %274 {offsets = [0, 10], sizes = [1, 10], strides = [1, 1]} : vector<1x40xf32> to vector<1x10xf32>
    %277 = vector.extract_strided_slice %274 {offsets = [0, 20], sizes = [1, 10], strides = [1, 1]} : vector<1x40xf32> to vector<1x10xf32>
    %278 = vector.extract_strided_slice %274 {offsets = [0, 30], sizes = [1, 10], strides = [1, 1]} : vector<1x40xf32> to vector<1x10xf32>
    %279 = arith.mulf %276, %258 : vector<1x10xf32>
    %280 = arith.mulf %275, %277 : vector<1x10xf32>
    %281 = arith.addf %279, %280 : vector<1x10xf32>
    %282 = math.tanh %281 : vector<1x10xf32>
    %283 = arith.mulf %278, %282 : vector<1x10xf32>
    %284 = vector.extract_strided_slice %283 {offsets = [0, 0], sizes = [1, 5], strides = [1, 1]} : vector<1x10xf32> to vector<1x5xf32>
    %285 = vector.extract_strided_slice %283 {offsets = [0, 5], sizes = [1, 5], strides = [1, 1]} : vector<1x10xf32> to vector<1x5xf32>
    %286 = vector.extract_strided_slice %212 {offsets = [3, 0], sizes = [1, 40], strides = [1, 1]} : vector<8x40xf32> to vector<1x40xf32>
    %cst_66 = arith.constant dense<0.000000e+00> : vector<1x40xf32>
    %287 = tpu.matmul %283, %214, %cst_66 {dimension_numbers = #tpu.dot_dimension_numbers<[1], [0], [0], [1], [0, 0, 1, 1], [], []>} : vector<1x10xf32>, vector<10x40xf32>, vector<1x40xf32> -> vector<1x40xf32>
    %288 = arith.addf %286, %287 : vector<1x40xf32>
    %cst_67 = arith.constant 5.000000e-01 : f32
    %289 = vector.broadcast %cst_67 : f32 to vector<1x40xf32>
    %290 = arith.mulf %289, %288 : vector<1x40xf32>
    %291 = arith.select %5, %288, %290 : vector<1x40xi1>, vector<1x40xf32>
    %292 = math.tanh %291 : vector<1x40xf32>
    %cst_68 = arith.constant 5.000000e-01 : f32
    %293 = vector.broadcast %cst_68 : f32 to vector<1x40xf32>
    %294 = arith.mulf %293, %292 : vector<1x40xf32>
    %cst_69 = arith.constant 5.000000e-01 : f32
    %295 = vector.broadcast %cst_69 : f32 to vector<1x40xf32>
    %296 = arith.addf %294, %295 : vector<1x40xf32>
    %297 = arith.select %5, %292, %296 : vector<1x40xi1>, vector<1x40xf32>
    %298 = vector.extract_strided_slice %297 {offsets = [0, 0], sizes = [1, 10], strides = [1, 1]} : vector<1x40xf32> to vector<1x10xf32>
    %299 = vector.extract_strided_slice %297 {offsets = [0, 10], sizes = [1, 10], strides = [1, 1]} : vector<1x40xf32> to vector<1x10xf32>
    %300 = vector.extract_strided_slice %297 {offsets = [0, 20], sizes = [1, 10], strides = [1, 1]} : vector<1x40xf32> to vector<1x10xf32>
    %301 = vector.extract_strided_slice %297 {offsets = [0, 30], sizes = [1, 10], strides = [1, 1]} : vector<1x40xf32> to vector<1x10xf32>
    %302 = arith.mulf %299, %281 : vector<1x10xf32>
    %303 = arith.mulf %298, %300 : vector<1x10xf32>
    %304 = arith.addf %302, %303 : vector<1x10xf32>
    %305 = math.tanh %304 : vector<1x10xf32>
    %306 = arith.mulf %301, %305 : vector<1x10xf32>
    %307 = vector.extract_strided_slice %306 {offsets = [0, 0], sizes = [1, 5], strides = [1, 1]} : vector<1x10xf32> to vector<1x5xf32>
    %308 = vector.extract_strided_slice %306 {offsets = [0, 5], sizes = [1, 5], strides = [1, 1]} : vector<1x10xf32> to vector<1x5xf32>
    %309 = vector.extract_strided_slice %212 {offsets = [4, 0], sizes = [1, 40], strides = [1, 1]} : vector<8x40xf32> to vector<1x40xf32>
    %cst_70 = arith.constant dense<0.000000e+00> : vector<1x40xf32>
    %310 = tpu.matmul %306, %214, %cst_70 {dimension_numbers = #tpu.dot_dimension_numbers<[1], [0], [0], [1], [0, 0, 1, 1], [], []>} : vector<1x10xf32>, vector<10x40xf32>, vector<1x40xf32> -> vector<1x40xf32>
    %311 = arith.addf %309, %310 : vector<1x40xf32>
    %cst_71 = arith.constant 5.000000e-01 : f32
    %312 = vector.broadcast %cst_71 : f32 to vector<1x40xf32>
    %313 = arith.mulf %312, %311 : vector<1x40xf32>
    %314 = arith.select %5, %311, %313 : vector<1x40xi1>, vector<1x40xf32>
    %315 = math.tanh %314 : vector<1x40xf32>
    %cst_72 = arith.constant 5.000000e-01 : f32
    %316 = vector.broadcast %cst_72 : f32 to vector<1x40xf32>
    %317 = arith.mulf %316, %315 : vector<1x40xf32>
    %cst_73 = arith.constant 5.000000e-01 : f32
    %318 = vector.broadcast %cst_73 : f32 to vector<1x40xf32>
    %319 = arith.addf %317, %318 : vector<1x40xf32>
    %320 = arith.select %5, %315, %319 : vector<1x40xi1>, vector<1x40xf32>
    %321 = vector.extract_strided_slice %320 {offsets = [0, 0], sizes = [1, 10], strides = [1, 1]} : vector<1x40xf32> to vector<1x10xf32>
    %322 = vector.extract_strided_slice %320 {offsets = [0, 10], sizes = [1, 10], strides = [1, 1]} : vector<1x40xf32> to vector<1x10xf32>
    %323 = vector.extract_strided_slice %320 {offsets = [0, 20], sizes = [1, 10], strides = [1, 1]} : vector<1x40xf32> to vector<1x10xf32>
    %324 = vector.extract_strided_slice %320 {offsets = [0, 30], sizes = [1, 10], strides = [1, 1]} : vector<1x40xf32> to vector<1x10xf32>
    %325 = arith.mulf %322, %304 : vector<1x10xf32>
    %326 = arith.mulf %321, %323 : vector<1x10xf32>
    %327 = arith.addf %325, %326 : vector<1x10xf32>
    %328 = math.tanh %327 : vector<1x10xf32>
    %329 = arith.mulf %324, %328 : vector<1x10xf32>
    %330 = vector.extract_strided_slice %329 {offsets = [0, 0], sizes = [1, 5], strides = [1, 1]} : vector<1x10xf32> to vector<1x5xf32>
    %331 = vector.extract_strided_slice %329 {offsets = [0, 5], sizes = [1, 5], strides = [1, 1]} : vector<1x10xf32> to vector<1x5xf32>
    %332 = vector.extract_strided_slice %212 {offsets = [5, 0], sizes = [1, 40], strides = [1, 1]} : vector<8x40xf32> to vector<1x40xf32>
    %cst_74 = arith.constant dense<0.000000e+00> : vector<1x40xf32>
    %333 = tpu.matmul %329, %214, %cst_74 {dimension_numbers = #tpu.dot_dimension_numbers<[1], [0], [0], [1], [0, 0, 1, 1], [], []>} : vector<1x10xf32>, vector<10x40xf32>, vector<1x40xf32> -> vector<1x40xf32>
    %334 = arith.addf %332, %333 : vector<1x40xf32>
    %cst_75 = arith.constant 5.000000e-01 : f32
    %335 = vector.broadcast %cst_75 : f32 to vector<1x40xf32>
    %336 = arith.mulf %335, %334 : vector<1x40xf32>
    %337 = arith.select %5, %334, %336 : vector<1x40xi1>, vector<1x40xf32>
    %338 = math.tanh %337 : vector<1x40xf32>
    %cst_76 = arith.constant 5.000000e-01 : f32
    %339 = vector.broadcast %cst_76 : f32 to vector<1x40xf32>
    %340 = arith.mulf %339, %338 : vector<1x40xf32>
    %cst_77 = arith.constant 5.000000e-01 : f32
    %341 = vector.broadcast %cst_77 : f32 to vector<1x40xf32>
    %342 = arith.addf %340, %341 : vector<1x40xf32>
    %343 = arith.select %5, %338, %342 : vector<1x40xi1>, vector<1x40xf32>
    %344 = vector.extract_strided_slice %343 {offsets = [0, 0], sizes = [1, 10], strides = [1, 1]} : vector<1x40xf32> to vector<1x10xf32>
    %345 = vector.extract_strided_slice %343 {offsets = [0, 10], sizes = [1, 10], strides = [1, 1]} : vector<1x40xf32> to vector<1x10xf32>
    %346 = vector.extract_strided_slice %343 {offsets = [0, 20], sizes = [1, 10], strides = [1, 1]} : vector<1x40xf32> to vector<1x10xf32>
    %347 = vector.extract_strided_slice %343 {offsets = [0, 30], sizes = [1, 10], strides = [1, 1]} : vector<1x40xf32> to vector<1x10xf32>
    %348 = arith.mulf %345, %327 : vector<1x10xf32>
    %349 = arith.mulf %344, %346 : vector<1x10xf32>
    %350 = arith.addf %348, %349 : vector<1x10xf32>
    %351 = math.tanh %350 : vector<1x10xf32>
    %352 = arith.mulf %347, %351 : vector<1x10xf32>
    %353 = vector.extract_strided_slice %352 {offsets = [0, 0], sizes = [1, 5], strides = [1, 1]} : vector<1x10xf32> to vector<1x5xf32>
    %354 = vector.extract_strided_slice %352 {offsets = [0, 5], sizes = [1, 5], strides = [1, 1]} : vector<1x10xf32> to vector<1x5xf32>
    %355 = vector.extract_strided_slice %212 {offsets = [6, 0], sizes = [1, 40], strides = [1, 1]} : vector<8x40xf32> to vector<1x40xf32>
    %cst_78 = arith.constant dense<0.000000e+00> : vector<1x40xf32>
    %356 = tpu.matmul %352, %214, %cst_78 {dimension_numbers = #tpu.dot_dimension_numbers<[1], [0], [0], [1], [0, 0, 1, 1], [], []>} : vector<1x10xf32>, vector<10x40xf32>, vector<1x40xf32> -> vector<1x40xf32>
    %357 = arith.addf %355, %356 : vector<1x40xf32>
    %cst_79 = arith.constant 5.000000e-01 : f32
    %358 = vector.broadcast %cst_79 : f32 to vector<1x40xf32>
    %359 = arith.mulf %358, %357 : vector<1x40xf32>
    %360 = arith.select %5, %357, %359 : vector<1x40xi1>, vector<1x40xf32>
    %361 = math.tanh %360 : vector<1x40xf32>
    %cst_80 = arith.constant 5.000000e-01 : f32
    %362 = vector.broadcast %cst_80 : f32 to vector<1x40xf32>
    %363 = arith.mulf %362, %361 : vector<1x40xf32>
    %cst_81 = arith.constant 5.000000e-01 : f32
    %364 = vector.broadcast %cst_81 : f32 to vector<1x40xf32>
    %365 = arith.addf %363, %364 : vector<1x40xf32>
    %366 = arith.select %5, %361, %365 : vector<1x40xi1>, vector<1x40xf32>
    %367 = vector.extract_strided_slice %366 {offsets = [0, 0], sizes = [1, 10], strides = [1, 1]} : vector<1x40xf32> to vector<1x10xf32>
    %368 = vector.extract_strided_slice %366 {offsets = [0, 10], sizes = [1, 10], strides = [1, 1]} : vector<1x40xf32> to vector<1x10xf32>
    %369 = vector.extract_strided_slice %366 {offsets = [0, 20], sizes = [1, 10], strides = [1, 1]} : vector<1x40xf32> to vector<1x10xf32>
    %370 = vector.extract_strided_slice %366 {offsets = [0, 30], sizes = [1, 10], strides = [1, 1]} : vector<1x40xf32> to vector<1x10xf32>
    %371 = arith.mulf %368, %350 : vector<1x10xf32>
    %372 = arith.mulf %367, %369 : vector<1x10xf32>
    %373 = arith.addf %371, %372 : vector<1x10xf32>
    %374 = math.tanh %373 : vector<1x10xf32>
    %375 = arith.mulf %370, %374 : vector<1x10xf32>
    %376 = vector.extract_strided_slice %375 {offsets = [0, 0], sizes = [1, 5], strides = [1, 1]} : vector<1x10xf32> to vector<1x5xf32>
    %377 = vector.extract_strided_slice %375 {offsets = [0, 5], sizes = [1, 5], strides = [1, 1]} : vector<1x10xf32> to vector<1x5xf32>
    %378 = vector.extract_strided_slice %212 {offsets = [7, 0], sizes = [1, 40], strides = [1, 1]} : vector<8x40xf32> to vector<1x40xf32>
    %cst_82 = arith.constant dense<0.000000e+00> : vector<1x40xf32>
    %379 = tpu.matmul %375, %214, %cst_82 {dimension_numbers = #tpu.dot_dimension_numbers<[1], [0], [0], [1], [0, 0, 1, 1], [], []>} : vector<1x10xf32>, vector<10x40xf32>, vector<1x40xf32> -> vector<1x40xf32>
    %380 = arith.addf %378, %379 : vector<1x40xf32>
    %cst_83 = arith.constant 5.000000e-01 : f32
    %381 = vector.broadcast %cst_83 : f32 to vector<1x40xf32>
    %382 = arith.mulf %381, %380 : vector<1x40xf32>
    %383 = arith.select %5, %380, %382 : vector<1x40xi1>, vector<1x40xf32>
    %384 = math.tanh %383 : vector<1x40xf32>
    %cst_84 = arith.constant 5.000000e-01 : f32
    %385 = vector.broadcast %cst_84 : f32 to vector<1x40xf32>
    %386 = arith.mulf %385, %384 : vector<1x40xf32>
    %cst_85 = arith.constant 5.000000e-01 : f32
    %387 = vector.broadcast %cst_85 : f32 to vector<1x40xf32>
    %388 = arith.addf %386, %387 : vector<1x40xf32>
    %389 = arith.select %5, %384, %388 : vector<1x40xi1>, vector<1x40xf32>
    %390 = vector.extract_strided_slice %389 {offsets = [0, 0], sizes = [1, 10], strides = [1, 1]} : vector<1x40xf32> to vector<1x10xf32>
    %391 = vector.extract_strided_slice %389 {offsets = [0, 10], sizes = [1, 10], strides = [1, 1]} : vector<1x40xf32> to vector<1x10xf32>
    %392 = vector.extract_strided_slice %389 {offsets = [0, 20], sizes = [1, 10], strides = [1, 1]} : vector<1x40xf32> to vector<1x10xf32>
    %393 = vector.extract_strided_slice %389 {offsets = [0, 30], sizes = [1, 10], strides = [1, 1]} : vector<1x40xf32> to vector<1x10xf32>
    %394 = arith.mulf %391, %373 : vector<1x10xf32>
    %395 = arith.mulf %390, %392 : vector<1x10xf32>
    %396 = arith.addf %394, %395 : vector<1x10xf32>
    %397 = math.tanh %396 : vector<1x10xf32>
    %398 = arith.mulf %393, %397 : vector<1x10xf32>
    %399 = vector.extract_strided_slice %398 {offsets = [0, 0], sizes = [1, 5], strides = [1, 1]} : vector<1x10xf32> to vector<1x5xf32>
    %400 = vector.extract_strided_slice %398 {offsets = [0, 5], sizes = [1, 5], strides = [1, 1]} : vector<1x10xf32> to vector<1x5xf32>
    %401 = tpu.concatenate %238, %261, %284, %307, %330, %353, %376, %399 in 0 : vector<1x5xf32>, vector<1x5xf32>, vector<1x5xf32>, vector<1x5xf32>, vector<1x5xf32>, vector<1x5xf32>, vector<1x5xf32>, vector<1x5xf32> -> vector<8x5xf32>
    %402 = tpu.concatenate %400, %377, %354, %331, %308, %285, %262, %239 in 0 : vector<1x5xf32>, vector<1x5xf32>, vector<1x5xf32>, vector<1x5xf32>, vector<1x5xf32>, vector<1x5xf32>, vector<1x5xf32>, vector<1x5xf32> -> vector<8x5xf32>
    %403 = tpu.concatenate %399, %376, %353, %330, %307, %284, %261, %238 in 0 : vector<1x5xf32>, vector<1x5xf32>, vector<1x5xf32>, vector<1x5xf32>, vector<1x5xf32>, vector<1x5xf32>, vector<1x5xf32>, vector<1x5xf32> -> vector<8x5xf32>
    %404 = tpu.concatenate %239, %262, %285, %308, %331, %354, %377, %400 in 0 : vector<1x5xf32>, vector<1x5xf32>, vector<1x5xf32>, vector<1x5xf32>, vector<1x5xf32>, vector<1x5xf32>, vector<1x5xf32>, vector<1x5xf32> -> vector<8x5xf32>
    %405 = tpu.concatenate %401, %402, %403, %404 in 1 : vector<8x5xf32>, vector<8x5xf32>, vector<8x5xf32>, vector<8x5xf32> -> vector<8x20xf32>
    %c1_86 = arith.constant 1 : index
    %c0_87 = arith.constant 0 : index
    %c0_88 = arith.constant 0 : index
    %406 = vector.load %arg2[%c1_86, %c0_87, %c0_88] : memref<3x20x40xf32, #tpu.memory_space<vmem>>, vector<1x20x40xf32>
    %407 = vector.shape_cast %406 : vector<1x20x40xf32> to vector<20x40xf32>
    %cst_89 = arith.constant dense<0.000000e+00> : vector<8x40xf32>
    %408 = tpu.matmul %405, %407, %cst_89 {dimension_numbers = #tpu.dot_dimension_numbers<[1], [0], [0], [1], [0, 0, 1, 1], [], []>} : vector<8x20xf32>, vector<20x40xf32>, vector<8x40xf32> -> vector<8x40xf32>
    %c2 = arith.constant 2 : index
    %c0_90 = arith.constant 0 : index
    %c0_91 = arith.constant 0 : index
    %409 = vector.load %arg4[%c2, %c0_90, %c0_91] : memref<4x1x40xf32, #tpu.memory_space<vmem>>, vector<1x1x40xf32>
    %410 = vector.shape_cast %409 : vector<1x1x40xf32> to vector<1x40xf32>
    %411 = vector.broadcast %410 : vector<1x40xf32> to vector<8x40xf32>
    %412 = arith.addf %408, %411 : vector<8x40xf32>
    %c2_92 = arith.constant 2 : index
    %c0_93 = arith.constant 0 : index
    %c0_94 = arith.constant 0 : index
    %413 = vector.load %arg3[%c2_92, %c0_93, %c0_94] : memref<4x10x40xf32, #tpu.memory_space<vmem>>, vector<1x10x40xf32>
    %414 = vector.shape_cast %413 : vector<1x10x40xf32> to vector<10x40xf32>
    %cst_95 = arith.constant 0.000000e+00 : f32
    %415 = vector.broadcast %cst_95 : f32 to vector<1x10xf32>
    %cst_96 = arith.constant 0.000000e+00 : f32
    %416 = vector.broadcast %cst_96 : f32 to vector<1x10xf32>
    %417 = vector.extract_strided_slice %412 {offsets = [0, 0], sizes = [1, 40], strides = [1, 1]} : vector<8x40xf32> to vector<1x40xf32>
    %cst_97 = arith.constant dense<0.000000e+00> : vector<1x40xf32>
    %418 = tpu.matmul %415, %414, %cst_97 {dimension_numbers = #tpu.dot_dimension_numbers<[1], [0], [0], [1], [0, 0, 1, 1], [], []>} : vector<1x10xf32>, vector<10x40xf32>, vector<1x40xf32> -> vector<1x40xf32>
    %419 = arith.addf %417, %418 : vector<1x40xf32>
    %cst_98 = arith.constant 5.000000e-01 : f32
    %420 = vector.broadcast %cst_98 : f32 to vector<1x40xf32>
    %421 = arith.mulf %420, %419 : vector<1x40xf32>
    %422 = arith.select %5, %419, %421 : vector<1x40xi1>, vector<1x40xf32>
    %423 = math.tanh %422 : vector<1x40xf32>
    %cst_99 = arith.constant 5.000000e-01 : f32
    %424 = vector.broadcast %cst_99 : f32 to vector<1x40xf32>
    %425 = arith.mulf %424, %423 : vector<1x40xf32>
    %cst_100 = arith.constant 5.000000e-01 : f32
    %426 = vector.broadcast %cst_100 : f32 to vector<1x40xf32>
    %427 = arith.addf %425, %426 : vector<1x40xf32>
    %428 = arith.select %5, %423, %427 : vector<1x40xi1>, vector<1x40xf32>
    %429 = vector.extract_strided_slice %428 {offsets = [0, 0], sizes = [1, 10], strides = [1, 1]} : vector<1x40xf32> to vector<1x10xf32>
    %430 = vector.extract_strided_slice %428 {offsets = [0, 10], sizes = [1, 10], strides = [1, 1]} : vector<1x40xf32> to vector<1x10xf32>
    %431 = vector.extract_strided_slice %428 {offsets = [0, 20], sizes = [1, 10], strides = [1, 1]} : vector<1x40xf32> to vector<1x10xf32>
    %432 = vector.extract_strided_slice %428 {offsets = [0, 30], sizes = [1, 10], strides = [1, 1]} : vector<1x40xf32> to vector<1x10xf32>
    %433 = arith.mulf %430, %416 : vector<1x10xf32>
    %434 = arith.mulf %429, %431 : vector<1x10xf32>
    %435 = arith.addf %433, %434 : vector<1x10xf32>
    %436 = math.tanh %435 : vector<1x10xf32>
    %437 = arith.mulf %432, %436 : vector<1x10xf32>
    %438 = vector.extract_strided_slice %437 {offsets = [0, 0], sizes = [1, 5], strides = [1, 1]} : vector<1x10xf32> to vector<1x5xf32>
    %439 = vector.extract_strided_slice %437 {offsets = [0, 5], sizes = [1, 5], strides = [1, 1]} : vector<1x10xf32> to vector<1x5xf32>
    %440 = vector.extract_strided_slice %412 {offsets = [1, 0], sizes = [1, 40], strides = [1, 1]} : vector<8x40xf32> to vector<1x40xf32>
    %cst_101 = arith.constant dense<0.000000e+00> : vector<1x40xf32>
    %441 = tpu.matmul %437, %414, %cst_101 {dimension_numbers = #tpu.dot_dimension_numbers<[1], [0], [0], [1], [0, 0, 1, 1], [], []>} : vector<1x10xf32>, vector<10x40xf32>, vector<1x40xf32> -> vector<1x40xf32>
    %442 = arith.addf %440, %441 : vector<1x40xf32>
    %cst_102 = arith.constant 5.000000e-01 : f32
    %443 = vector.broadcast %cst_102 : f32 to vector<1x40xf32>
    %444 = arith.mulf %443, %442 : vector<1x40xf32>
    %445 = arith.select %5, %442, %444 : vector<1x40xi1>, vector<1x40xf32>
    %446 = math.tanh %445 : vector<1x40xf32>
    %cst_103 = arith.constant 5.000000e-01 : f32
    %447 = vector.broadcast %cst_103 : f32 to vector<1x40xf32>
    %448 = arith.mulf %447, %446 : vector<1x40xf32>
    %cst_104 = arith.constant 5.000000e-01 : f32
    %449 = vector.broadcast %cst_104 : f32 to vector<1x40xf32>
    %450 = arith.addf %448, %449 : vector<1x40xf32>
    %451 = arith.select %5, %446, %450 : vector<1x40xi1>, vector<1x40xf32>
    %452 = vector.extract_strided_slice %451 {offsets = [0, 0], sizes = [1, 10], strides = [1, 1]} : vector<1x40xf32> to vector<1x10xf32>
    %453 = vector.extract_strided_slice %451 {offsets = [0, 10], sizes = [1, 10], strides = [1, 1]} : vector<1x40xf32> to vector<1x10xf32>
    %454 = vector.extract_strided_slice %451 {offsets = [0, 20], sizes = [1, 10], strides = [1, 1]} : vector<1x40xf32> to vector<1x10xf32>
    %455 = vector.extract_strided_slice %451 {offsets = [0, 30], sizes = [1, 10], strides = [1, 1]} : vector<1x40xf32> to vector<1x10xf32>
    %456 = arith.mulf %453, %435 : vector<1x10xf32>
    %457 = arith.mulf %452, %454 : vector<1x10xf32>
    %458 = arith.addf %456, %457 : vector<1x10xf32>
    %459 = math.tanh %458 : vector<1x10xf32>
    %460 = arith.mulf %455, %459 : vector<1x10xf32>
    %461 = vector.extract_strided_slice %460 {offsets = [0, 0], sizes = [1, 5], strides = [1, 1]} : vector<1x10xf32> to vector<1x5xf32>
    %462 = vector.extract_strided_slice %460 {offsets = [0, 5], sizes = [1, 5], strides = [1, 1]} : vector<1x10xf32> to vector<1x5xf32>
    %463 = vector.extract_strided_slice %412 {offsets = [2, 0], sizes = [1, 40], strides = [1, 1]} : vector<8x40xf32> to vector<1x40xf32>
    %cst_105 = arith.constant dense<0.000000e+00> : vector<1x40xf32>
    %464 = tpu.matmul %460, %414, %cst_105 {dimension_numbers = #tpu.dot_dimension_numbers<[1], [0], [0], [1], [0, 0, 1, 1], [], []>} : vector<1x10xf32>, vector<10x40xf32>, vector<1x40xf32> -> vector<1x40xf32>
    %465 = arith.addf %463, %464 : vector<1x40xf32>
    %cst_106 = arith.constant 5.000000e-01 : f32
    %466 = vector.broadcast %cst_106 : f32 to vector<1x40xf32>
    %467 = arith.mulf %466, %465 : vector<1x40xf32>
    %468 = arith.select %5, %465, %467 : vector<1x40xi1>, vector<1x40xf32>
    %469 = math.tanh %468 : vector<1x40xf32>
    %cst_107 = arith.constant 5.000000e-01 : f32
    %470 = vector.broadcast %cst_107 : f32 to vector<1x40xf32>
    %471 = arith.mulf %470, %469 : vector<1x40xf32>
    %cst_108 = arith.constant 5.000000e-01 : f32
    %472 = vector.broadcast %cst_108 : f32 to vector<1x40xf32>
    %473 = arith.addf %471, %472 : vector<1x40xf32>
    %474 = arith.select %5, %469, %473 : vector<1x40xi1>, vector<1x40xf32>
    %475 = vector.extract_strided_slice %474 {offsets = [0, 0], sizes = [1, 10], strides = [1, 1]} : vector<1x40xf32> to vector<1x10xf32>
    %476 = vector.extract_strided_slice %474 {offsets = [0, 10], sizes = [1, 10], strides = [1, 1]} : vector<1x40xf32> to vector<1x10xf32>
    %477 = vector.extract_strided_slice %474 {offsets = [0, 20], sizes = [1, 10], strides = [1, 1]} : vector<1x40xf32> to vector<1x10xf32>
    %478 = vector.extract_strided_slice %474 {offsets = [0, 30], sizes = [1, 10], strides = [1, 1]} : vector<1x40xf32> to vector<1x10xf32>
    %479 = arith.mulf %476, %458 : vector<1x10xf32>
    %480 = arith.mulf %475, %477 : vector<1x10xf32>
    %481 = arith.addf %479, %480 : vector<1x10xf32>
    %482 = math.tanh %481 : vector<1x10xf32>
    %483 = arith.mulf %478, %482 : vector<1x10xf32>
    %484 = vector.extract_strided_slice %483 {offsets = [0, 0], sizes = [1, 5], strides = [1, 1]} : vector<1x10xf32> to vector<1x5xf32>
    %485 = vector.extract_strided_slice %483 {offsets = [0, 5], sizes = [1, 5], strides = [1, 1]} : vector<1x10xf32> to vector<1x5xf32>
    %486 = vector.extract_strided_slice %412 {offsets = [3, 0], sizes = [1, 40], strides = [1, 1]} : vector<8x40xf32> to vector<1x40xf32>
    %cst_109 = arith.constant dense<0.000000e+00> : vector<1x40xf32>
    %487 = tpu.matmul %483, %414, %cst_109 {dimension_numbers = #tpu.dot_dimension_numbers<[1], [0], [0], [1], [0, 0, 1, 1], [], []>} : vector<1x10xf32>, vector<10x40xf32>, vector<1x40xf32> -> vector<1x40xf32>
    %488 = arith.addf %486, %487 : vector<1x40xf32>
    %cst_110 = arith.constant 5.000000e-01 : f32
    %489 = vector.broadcast %cst_110 : f32 to vector<1x40xf32>
    %490 = arith.mulf %489, %488 : vector<1x40xf32>
    %491 = arith.select %5, %488, %490 : vector<1x40xi1>, vector<1x40xf32>
    %492 = math.tanh %491 : vector<1x40xf32>
    %cst_111 = arith.constant 5.000000e-01 : f32
    %493 = vector.broadcast %cst_111 : f32 to vector<1x40xf32>
    %494 = arith.mulf %493, %492 : vector<1x40xf32>
    %cst_112 = arith.constant 5.000000e-01 : f32
    %495 = vector.broadcast %cst_112 : f32 to vector<1x40xf32>
    %496 = arith.addf %494, %495 : vector<1x40xf32>
    %497 = arith.select %5, %492, %496 : vector<1x40xi1>, vector<1x40xf32>
    %498 = vector.extract_strided_slice %497 {offsets = [0, 0], sizes = [1, 10], strides = [1, 1]} : vector<1x40xf32> to vector<1x10xf32>
    %499 = vector.extract_strided_slice %497 {offsets = [0, 10], sizes = [1, 10], strides = [1, 1]} : vector<1x40xf32> to vector<1x10xf32>
    %500 = vector.extract_strided_slice %497 {offsets = [0, 20], sizes = [1, 10], strides = [1, 1]} : vector<1x40xf32> to vector<1x10xf32>
    %501 = vector.extract_strided_slice %497 {offsets = [0, 30], sizes = [1, 10], strides = [1, 1]} : vector<1x40xf32> to vector<1x10xf32>
    %502 = arith.mulf %499, %481 : vector<1x10xf32>
    %503 = arith.mulf %498, %500 : vector<1x10xf32>
    %504 = arith.addf %502, %503 : vector<1x10xf32>
    %505 = math.tanh %504 : vector<1x10xf32>
    %506 = arith.mulf %501, %505 : vector<1x10xf32>
    %507 = vector.extract_strided_slice %506 {offsets = [0, 0], sizes = [1, 5], strides = [1, 1]} : vector<1x10xf32> to vector<1x5xf32>
    %508 = vector.extract_strided_slice %506 {offsets = [0, 5], sizes = [1, 5], strides = [1, 1]} : vector<1x10xf32> to vector<1x5xf32>
    %509 = vector.extract_strided_slice %412 {offsets = [4, 0], sizes = [1, 40], strides = [1, 1]} : vector<8x40xf32> to vector<1x40xf32>
    %cst_113 = arith.constant dense<0.000000e+00> : vector<1x40xf32>
    %510 = tpu.matmul %506, %414, %cst_113 {dimension_numbers = #tpu.dot_dimension_numbers<[1], [0], [0], [1], [0, 0, 1, 1], [], []>} : vector<1x10xf32>, vector<10x40xf32>, vector<1x40xf32> -> vector<1x40xf32>
    %511 = arith.addf %509, %510 : vector<1x40xf32>
    %cst_114 = arith.constant 5.000000e-01 : f32
    %512 = vector.broadcast %cst_114 : f32 to vector<1x40xf32>
    %513 = arith.mulf %512, %511 : vector<1x40xf32>
    %514 = arith.select %5, %511, %513 : vector<1x40xi1>, vector<1x40xf32>
    %515 = math.tanh %514 : vector<1x40xf32>
    %cst_115 = arith.constant 5.000000e-01 : f32
    %516 = vector.broadcast %cst_115 : f32 to vector<1x40xf32>
    %517 = arith.mulf %516, %515 : vector<1x40xf32>
    %cst_116 = arith.constant 5.000000e-01 : f32
    %518 = vector.broadcast %cst_116 : f32 to vector<1x40xf32>
    %519 = arith.addf %517, %518 : vector<1x40xf32>
    %520 = arith.select %5, %515, %519 : vector<1x40xi1>, vector<1x40xf32>
    %521 = vector.extract_strided_slice %520 {offsets = [0, 0], sizes = [1, 10], strides = [1, 1]} : vector<1x40xf32> to vector<1x10xf32>
    %522 = vector.extract_strided_slice %520 {offsets = [0, 10], sizes = [1, 10], strides = [1, 1]} : vector<1x40xf32> to vector<1x10xf32>
    %523 = vector.extract_strided_slice %520 {offsets = [0, 20], sizes = [1, 10], strides = [1, 1]} : vector<1x40xf32> to vector<1x10xf32>
    %524 = vector.extract_strided_slice %520 {offsets = [0, 30], sizes = [1, 10], strides = [1, 1]} : vector<1x40xf32> to vector<1x10xf32>
    %525 = arith.mulf %522, %504 : vector<1x10xf32>
    %526 = arith.mulf %521, %523 : vector<1x10xf32>
    %527 = arith.addf %525, %526 : vector<1x10xf32>
    %528 = math.tanh %527 : vector<1x10xf32>
    %529 = arith.mulf %524, %528 : vector<1x10xf32>
    %530 = vector.extract_strided_slice %529 {offsets = [0, 0], sizes = [1, 5], strides = [1, 1]} : vector<1x10xf32> to vector<1x5xf32>
    %531 = vector.extract_strided_slice %529 {offsets = [0, 5], sizes = [1, 5], strides = [1, 1]} : vector<1x10xf32> to vector<1x5xf32>
    %532 = vector.extract_strided_slice %412 {offsets = [5, 0], sizes = [1, 40], strides = [1, 1]} : vector<8x40xf32> to vector<1x40xf32>
    %cst_117 = arith.constant dense<0.000000e+00> : vector<1x40xf32>
    %533 = tpu.matmul %529, %414, %cst_117 {dimension_numbers = #tpu.dot_dimension_numbers<[1], [0], [0], [1], [0, 0, 1, 1], [], []>} : vector<1x10xf32>, vector<10x40xf32>, vector<1x40xf32> -> vector<1x40xf32>
    %534 = arith.addf %532, %533 : vector<1x40xf32>
    %cst_118 = arith.constant 5.000000e-01 : f32
    %535 = vector.broadcast %cst_118 : f32 to vector<1x40xf32>
    %536 = arith.mulf %535, %534 : vector<1x40xf32>
    %537 = arith.select %5, %534, %536 : vector<1x40xi1>, vector<1x40xf32>
    %538 = math.tanh %537 : vector<1x40xf32>
    %cst_119 = arith.constant 5.000000e-01 : f32
    %539 = vector.broadcast %cst_119 : f32 to vector<1x40xf32>
    %540 = arith.mulf %539, %538 : vector<1x40xf32>
    %cst_120 = arith.constant 5.000000e-01 : f32
    %541 = vector.broadcast %cst_120 : f32 to vector<1x40xf32>
    %542 = arith.addf %540, %541 : vector<1x40xf32>
    %543 = arith.select %5, %538, %542 : vector<1x40xi1>, vector<1x40xf32>
    %544 = vector.extract_strided_slice %543 {offsets = [0, 0], sizes = [1, 10], strides = [1, 1]} : vector<1x40xf32> to vector<1x10xf32>
    %545 = vector.extract_strided_slice %543 {offsets = [0, 10], sizes = [1, 10], strides = [1, 1]} : vector<1x40xf32> to vector<1x10xf32>
    %546 = vector.extract_strided_slice %543 {offsets = [0, 20], sizes = [1, 10], strides = [1, 1]} : vector<1x40xf32> to vector<1x10xf32>
    %547 = vector.extract_strided_slice %543 {offsets = [0, 30], sizes = [1, 10], strides = [1, 1]} : vector<1x40xf32> to vector<1x10xf32>
    %548 = arith.mulf %545, %527 : vector<1x10xf32>
    %549 = arith.mulf %544, %546 : vector<1x10xf32>
    %550 = arith.addf %548, %549 : vector<1x10xf32>
    %551 = math.tanh %550 : vector<1x10xf32>
    %552 = arith.mulf %547, %551 : vector<1x10xf32>
    %553 = vector.extract_strided_slice %552 {offsets = [0, 0], sizes = [1, 5], strides = [1, 1]} : vector<1x10xf32> to vector<1x5xf32>
    %554 = vector.extract_strided_slice %552 {offsets = [0, 5], sizes = [1, 5], strides = [1, 1]} : vector<1x10xf32> to vector<1x5xf32>
    %555 = vector.extract_strided_slice %412 {offsets = [6, 0], sizes = [1, 40], strides = [1, 1]} : vector<8x40xf32> to vector<1x40xf32>
    %cst_121 = arith.constant dense<0.000000e+00> : vector<1x40xf32>
    %556 = tpu.matmul %552, %414, %cst_121 {dimension_numbers = #tpu.dot_dimension_numbers<[1], [0], [0], [1], [0, 0, 1, 1], [], []>} : vector<1x10xf32>, vector<10x40xf32>, vector<1x40xf32> -> vector<1x40xf32>
    %557 = arith.addf %555, %556 : vector<1x40xf32>
    %cst_122 = arith.constant 5.000000e-01 : f32
    %558 = vector.broadcast %cst_122 : f32 to vector<1x40xf32>
    %559 = arith.mulf %558, %557 : vector<1x40xf32>
    %560 = arith.select %5, %557, %559 : vector<1x40xi1>, vector<1x40xf32>
    %561 = math.tanh %560 : vector<1x40xf32>
    %cst_123 = arith.constant 5.000000e-01 : f32
    %562 = vector.broadcast %cst_123 : f32 to vector<1x40xf32>
    %563 = arith.mulf %562, %561 : vector<1x40xf32>
    %cst_124 = arith.constant 5.000000e-01 : f32
    %564 = vector.broadcast %cst_124 : f32 to vector<1x40xf32>
    %565 = arith.addf %563, %564 : vector<1x40xf32>
    %566 = arith.select %5, %561, %565 : vector<1x40xi1>, vector<1x40xf32>
    %567 = vector.extract_strided_slice %566 {offsets = [0, 0], sizes = [1, 10], strides = [1, 1]} : vector<1x40xf32> to vector<1x10xf32>
    %568 = vector.extract_strided_slice %566 {offsets = [0, 10], sizes = [1, 10], strides = [1, 1]} : vector<1x40xf32> to vector<1x10xf32>
    %569 = vector.extract_strided_slice %566 {offsets = [0, 20], sizes = [1, 10], strides = [1, 1]} : vector<1x40xf32> to vector<1x10xf32>
    %570 = vector.extract_strided_slice %566 {offsets = [0, 30], sizes = [1, 10], strides = [1, 1]} : vector<1x40xf32> to vector<1x10xf32>
    %571 = arith.mulf %568, %550 : vector<1x10xf32>
    %572 = arith.mulf %567, %569 : vector<1x10xf32>
    %573 = arith.addf %571, %572 : vector<1x10xf32>
    %574 = math.tanh %573 : vector<1x10xf32>
    %575 = arith.mulf %570, %574 : vector<1x10xf32>
    %576 = vector.extract_strided_slice %575 {offsets = [0, 0], sizes = [1, 5], strides = [1, 1]} : vector<1x10xf32> to vector<1x5xf32>
    %577 = vector.extract_strided_slice %575 {offsets = [0, 5], sizes = [1, 5], strides = [1, 1]} : vector<1x10xf32> to vector<1x5xf32>
    %578 = vector.extract_strided_slice %412 {offsets = [7, 0], sizes = [1, 40], strides = [1, 1]} : vector<8x40xf32> to vector<1x40xf32>
    %cst_125 = arith.constant dense<0.000000e+00> : vector<1x40xf32>
    %579 = tpu.matmul %575, %414, %cst_125 {dimension_numbers = #tpu.dot_dimension_numbers<[1], [0], [0], [1], [0, 0, 1, 1], [], []>} : vector<1x10xf32>, vector<10x40xf32>, vector<1x40xf32> -> vector<1x40xf32>
    %580 = arith.addf %578, %579 : vector<1x40xf32>
    %cst_126 = arith.constant 5.000000e-01 : f32
    %581 = vector.broadcast %cst_126 : f32 to vector<1x40xf32>
    %582 = arith.mulf %581, %580 : vector<1x40xf32>
    %583 = arith.select %5, %580, %582 : vector<1x40xi1>, vector<1x40xf32>
    %584 = math.tanh %583 : vector<1x40xf32>
    %cst_127 = arith.constant 5.000000e-01 : f32
    %585 = vector.broadcast %cst_127 : f32 to vector<1x40xf32>
    %586 = arith.mulf %585, %584 : vector<1x40xf32>
    %cst_128 = arith.constant 5.000000e-01 : f32
    %587 = vector.broadcast %cst_128 : f32 to vector<1x40xf32>
    %588 = arith.addf %586, %587 : vector<1x40xf32>
    %589 = arith.select %5, %584, %588 : vector<1x40xi1>, vector<1x40xf32>
    %590 = vector.extract_strided_slice %589 {offsets = [0, 0], sizes = [1, 10], strides = [1, 1]} : vector<1x40xf32> to vector<1x10xf32>
    %591 = vector.extract_strided_slice %589 {offsets = [0, 10], sizes = [1, 10], strides = [1, 1]} : vector<1x40xf32> to vector<1x10xf32>
    %592 = vector.extract_strided_slice %589 {offsets = [0, 20], sizes = [1, 10], strides = [1, 1]} : vector<1x40xf32> to vector<1x10xf32>
    %593 = vector.extract_strided_slice %589 {offsets = [0, 30], sizes = [1, 10], strides = [1, 1]} : vector<1x40xf32> to vector<1x10xf32>
    %594 = arith.mulf %591, %573 : vector<1x10xf32>
    %595 = arith.mulf %590, %592 : vector<1x10xf32>
    %596 = arith.addf %594, %595 : vector<1x10xf32>
    %597 = math.tanh %596 : vector<1x10xf32>
    %598 = arith.mulf %593, %597 : vector<1x10xf32>
    %599 = vector.extract_strided_slice %598 {offsets = [0, 0], sizes = [1, 5], strides = [1, 1]} : vector<1x10xf32> to vector<1x5xf32>
    %600 = vector.extract_strided_slice %598 {offsets = [0, 5], sizes = [1, 5], strides = [1, 1]} : vector<1x10xf32> to vector<1x5xf32>
    %601 = tpu.concatenate %438, %461, %484, %507, %530, %553, %576, %599 in 0 : vector<1x5xf32>, vector<1x5xf32>, vector<1x5xf32>, vector<1x5xf32>, vector<1x5xf32>, vector<1x5xf32>, vector<1x5xf32>, vector<1x5xf32> -> vector<8x5xf32>
    %602 = tpu.concatenate %600, %577, %554, %531, %508, %485, %462, %439 in 0 : vector<1x5xf32>, vector<1x5xf32>, vector<1x5xf32>, vector<1x5xf32>, vector<1x5xf32>, vector<1x5xf32>, vector<1x5xf32>, vector<1x5xf32> -> vector<8x5xf32>
    %603 = tpu.concatenate %599, %576, %553, %530, %507, %484, %461, %438 in 0 : vector<1x5xf32>, vector<1x5xf32>, vector<1x5xf32>, vector<1x5xf32>, vector<1x5xf32>, vector<1x5xf32>, vector<1x5xf32>, vector<1x5xf32> -> vector<8x5xf32>
    %604 = tpu.concatenate %439, %462, %485, %508, %531, %554, %577, %600 in 0 : vector<1x5xf32>, vector<1x5xf32>, vector<1x5xf32>, vector<1x5xf32>, vector<1x5xf32>, vector<1x5xf32>, vector<1x5xf32>, vector<1x5xf32> -> vector<8x5xf32>
    %605 = tpu.concatenate %601, %602, %603, %604 in 1 : vector<8x5xf32>, vector<8x5xf32>, vector<8x5xf32>, vector<8x5xf32> -> vector<8x20xf32>
    %c2_129 = arith.constant 2 : index
    %c0_130 = arith.constant 0 : index
    %c0_131 = arith.constant 0 : index
    %606 = vector.load %arg2[%c2_129, %c0_130, %c0_131] : memref<3x20x40xf32, #tpu.memory_space<vmem>>, vector<1x20x40xf32>
    %607 = vector.shape_cast %606 : vector<1x20x40xf32> to vector<20x40xf32>
    %cst_132 = arith.constant dense<0.000000e+00> : vector<8x40xf32>
    %608 = tpu.matmul %605, %607, %cst_132 {dimension_numbers = #tpu.dot_dimension_numbers<[1], [0], [0], [1], [0, 0, 1, 1], [], []>} : vector<8x20xf32>, vector<20x40xf32>, vector<8x40xf32> -> vector<8x40xf32>
    %c3 = arith.constant 3 : index
    %c0_133 = arith.constant 0 : index
    %c0_134 = arith.constant 0 : index
    %609 = vector.load %arg4[%c3, %c0_133, %c0_134] : memref<4x1x40xf32, #tpu.memory_space<vmem>>, vector<1x1x40xf32>
    %610 = vector.shape_cast %609 : vector<1x1x40xf32> to vector<1x40xf32>
    %611 = vector.broadcast %610 : vector<1x40xf32> to vector<8x40xf32>
    %612 = arith.addf %608, %611 : vector<8x40xf32>
    %c3_135 = arith.constant 3 : index
    %c0_136 = arith.constant 0 : index
    %c0_137 = arith.constant 0 : index
    %613 = vector.load %arg3[%c3_135, %c0_136, %c0_137] : memref<4x10x40xf32, #tpu.memory_space<vmem>>, vector<1x10x40xf32>
    %614 = vector.shape_cast %613 : vector<1x10x40xf32> to vector<10x40xf32>
    %cst_138 = arith.constant 0.000000e+00 : f32
    %615 = vector.broadcast %cst_138 : f32 to vector<1x10xf32>
    %cst_139 = arith.constant 0.000000e+00 : f32
    %616 = vector.broadcast %cst_139 : f32 to vector<1x10xf32>
    %617 = vector.extract_strided_slice %612 {offsets = [0, 0], sizes = [1, 40], strides = [1, 1]} : vector<8x40xf32> to vector<1x40xf32>
    %cst_140 = arith.constant dense<0.000000e+00> : vector<1x40xf32>
    %618 = tpu.matmul %615, %614, %cst_140 {dimension_numbers = #tpu.dot_dimension_numbers<[1], [0], [0], [1], [0, 0, 1, 1], [], []>} : vector<1x10xf32>, vector<10x40xf32>, vector<1x40xf32> -> vector<1x40xf32>
    %619 = arith.addf %617, %618 : vector<1x40xf32>
    %cst_141 = arith.constant 5.000000e-01 : f32
    %620 = vector.broadcast %cst_141 : f32 to vector<1x40xf32>
    %621 = arith.mulf %620, %619 : vector<1x40xf32>
    %622 = arith.select %5, %619, %621 : vector<1x40xi1>, vector<1x40xf32>
    %623 = math.tanh %622 : vector<1x40xf32>
    %cst_142 = arith.constant 5.000000e-01 : f32
    %624 = vector.broadcast %cst_142 : f32 to vector<1x40xf32>
    %625 = arith.mulf %624, %623 : vector<1x40xf32>
    %cst_143 = arith.constant 5.000000e-01 : f32
    %626 = vector.broadcast %cst_143 : f32 to vector<1x40xf32>
    %627 = arith.addf %625, %626 : vector<1x40xf32>
    %628 = arith.select %5, %623, %627 : vector<1x40xi1>, vector<1x40xf32>
    %629 = vector.extract_strided_slice %628 {offsets = [0, 0], sizes = [1, 10], strides = [1, 1]} : vector<1x40xf32> to vector<1x10xf32>
    %630 = vector.extract_strided_slice %628 {offsets = [0, 10], sizes = [1, 10], strides = [1, 1]} : vector<1x40xf32> to vector<1x10xf32>
    %631 = vector.extract_strided_slice %628 {offsets = [0, 20], sizes = [1, 10], strides = [1, 1]} : vector<1x40xf32> to vector<1x10xf32>
    %632 = vector.extract_strided_slice %628 {offsets = [0, 30], sizes = [1, 10], strides = [1, 1]} : vector<1x40xf32> to vector<1x10xf32>
    %633 = arith.mulf %630, %616 : vector<1x10xf32>
    %634 = arith.mulf %629, %631 : vector<1x10xf32>
    %635 = arith.addf %633, %634 : vector<1x10xf32>
    %636 = math.tanh %635 : vector<1x10xf32>
    %637 = arith.mulf %632, %636 : vector<1x10xf32>
    %638 = vector.extract_strided_slice %637 {offsets = [0, 0], sizes = [1, 5], strides = [1, 1]} : vector<1x10xf32> to vector<1x5xf32>
    %639 = vector.extract_strided_slice %637 {offsets = [0, 5], sizes = [1, 5], strides = [1, 1]} : vector<1x10xf32> to vector<1x5xf32>
    %640 = vector.extract_strided_slice %612 {offsets = [1, 0], sizes = [1, 40], strides = [1, 1]} : vector<8x40xf32> to vector<1x40xf32>
    %cst_144 = arith.constant dense<0.000000e+00> : vector<1x40xf32>
    %641 = tpu.matmul %637, %614, %cst_144 {dimension_numbers = #tpu.dot_dimension_numbers<[1], [0], [0], [1], [0, 0, 1, 1], [], []>} : vector<1x10xf32>, vector<10x40xf32>, vector<1x40xf32> -> vector<1x40xf32>
    %642 = arith.addf %640, %641 : vector<1x40xf32>
    %cst_145 = arith.constant 5.000000e-01 : f32
    %643 = vector.broadcast %cst_145 : f32 to vector<1x40xf32>
    %644 = arith.mulf %643, %642 : vector<1x40xf32>
    %645 = arith.select %5, %642, %644 : vector<1x40xi1>, vector<1x40xf32>
    %646 = math.tanh %645 : vector<1x40xf32>
    %cst_146 = arith.constant 5.000000e-01 : f32
    %647 = vector.broadcast %cst_146 : f32 to vector<1x40xf32>
    %648 = arith.mulf %647, %646 : vector<1x40xf32>
    %cst_147 = arith.constant 5.000000e-01 : f32
    %649 = vector.broadcast %cst_147 : f32 to vector<1x40xf32>
    %650 = arith.addf %648, %649 : vector<1x40xf32>
    %651 = arith.select %5, %646, %650 : vector<1x40xi1>, vector<1x40xf32>
    %652 = vector.extract_strided_slice %651 {offsets = [0, 0], sizes = [1, 10], strides = [1, 1]} : vector<1x40xf32> to vector<1x10xf32>
    %653 = vector.extract_strided_slice %651 {offsets = [0, 10], sizes = [1, 10], strides = [1, 1]} : vector<1x40xf32> to vector<1x10xf32>
    %654 = vector.extract_strided_slice %651 {offsets = [0, 20], sizes = [1, 10], strides = [1, 1]} : vector<1x40xf32> to vector<1x10xf32>
    %655 = vector.extract_strided_slice %651 {offsets = [0, 30], sizes = [1, 10], strides = [1, 1]} : vector<1x40xf32> to vector<1x10xf32>
    %656 = arith.mulf %653, %635 : vector<1x10xf32>
    %657 = arith.mulf %652, %654 : vector<1x10xf32>
    %658 = arith.addf %656, %657 : vector<1x10xf32>
    %659 = math.tanh %658 : vector<1x10xf32>
    %660 = arith.mulf %655, %659 : vector<1x10xf32>
    %661 = vector.extract_strided_slice %660 {offsets = [0, 0], sizes = [1, 5], strides = [1, 1]} : vector<1x10xf32> to vector<1x5xf32>
    %662 = vector.extract_strided_slice %660 {offsets = [0, 5], sizes = [1, 5], strides = [1, 1]} : vector<1x10xf32> to vector<1x5xf32>
    %663 = vector.extract_strided_slice %612 {offsets = [2, 0], sizes = [1, 40], strides = [1, 1]} : vector<8x40xf32> to vector<1x40xf32>
    %cst_148 = arith.constant dense<0.000000e+00> : vector<1x40xf32>
    %664 = tpu.matmul %660, %614, %cst_148 {dimension_numbers = #tpu.dot_dimension_numbers<[1], [0], [0], [1], [0, 0, 1, 1], [], []>} : vector<1x10xf32>, vector<10x40xf32>, vector<1x40xf32> -> vector<1x40xf32>
    %665 = arith.addf %663, %664 : vector<1x40xf32>
    %cst_149 = arith.constant 5.000000e-01 : f32
    %666 = vector.broadcast %cst_149 : f32 to vector<1x40xf32>
    %667 = arith.mulf %666, %665 : vector<1x40xf32>
    %668 = arith.select %5, %665, %667 : vector<1x40xi1>, vector<1x40xf32>
    %669 = math.tanh %668 : vector<1x40xf32>
    %cst_150 = arith.constant 5.000000e-01 : f32
    %670 = vector.broadcast %cst_150 : f32 to vector<1x40xf32>
    %671 = arith.mulf %670, %669 : vector<1x40xf32>
    %cst_151 = arith.constant 5.000000e-01 : f32
    %672 = vector.broadcast %cst_151 : f32 to vector<1x40xf32>
    %673 = arith.addf %671, %672 : vector<1x40xf32>
    %674 = arith.select %5, %669, %673 : vector<1x40xi1>, vector<1x40xf32>
    %675 = vector.extract_strided_slice %674 {offsets = [0, 0], sizes = [1, 10], strides = [1, 1]} : vector<1x40xf32> to vector<1x10xf32>
    %676 = vector.extract_strided_slice %674 {offsets = [0, 10], sizes = [1, 10], strides = [1, 1]} : vector<1x40xf32> to vector<1x10xf32>
    %677 = vector.extract_strided_slice %674 {offsets = [0, 20], sizes = [1, 10], strides = [1, 1]} : vector<1x40xf32> to vector<1x10xf32>
    %678 = vector.extract_strided_slice %674 {offsets = [0, 30], sizes = [1, 10], strides = [1, 1]} : vector<1x40xf32> to vector<1x10xf32>
    %679 = arith.mulf %676, %658 : vector<1x10xf32>
    %680 = arith.mulf %675, %677 : vector<1x10xf32>
    %681 = arith.addf %679, %680 : vector<1x10xf32>
    %682 = math.tanh %681 : vector<1x10xf32>
    %683 = arith.mulf %678, %682 : vector<1x10xf32>
    %684 = vector.extract_strided_slice %683 {offsets = [0, 0], sizes = [1, 5], strides = [1, 1]} : vector<1x10xf32> to vector<1x5xf32>
    %685 = vector.extract_strided_slice %683 {offsets = [0, 5], sizes = [1, 5], strides = [1, 1]} : vector<1x10xf32> to vector<1x5xf32>
    %686 = vector.extract_strided_slice %612 {offsets = [3, 0], sizes = [1, 40], strides = [1, 1]} : vector<8x40xf32> to vector<1x40xf32>
    %cst_152 = arith.constant dense<0.000000e+00> : vector<1x40xf32>
    %687 = tpu.matmul %683, %614, %cst_152 {dimension_numbers = #tpu.dot_dimension_numbers<[1], [0], [0], [1], [0, 0, 1, 1], [], []>} : vector<1x10xf32>, vector<10x40xf32>, vector<1x40xf32> -> vector<1x40xf32>
    %688 = arith.addf %686, %687 : vector<1x40xf32>
    %cst_153 = arith.constant 5.000000e-01 : f32
    %689 = vector.broadcast %cst_153 : f32 to vector<1x40xf32>
    %690 = arith.mulf %689, %688 : vector<1x40xf32>
    %691 = arith.select %5, %688, %690 : vector<1x40xi1>, vector<1x40xf32>
    %692 = math.tanh %691 : vector<1x40xf32>
    %cst_154 = arith.constant 5.000000e-01 : f32
    %693 = vector.broadcast %cst_154 : f32 to vector<1x40xf32>
    %694 = arith.mulf %693, %692 : vector<1x40xf32>
    %cst_155 = arith.constant 5.000000e-01 : f32
    %695 = vector.broadcast %cst_155 : f32 to vector<1x40xf32>
    %696 = arith.addf %694, %695 : vector<1x40xf32>
    %697 = arith.select %5, %692, %696 : vector<1x40xi1>, vector<1x40xf32>
    %698 = vector.extract_strided_slice %697 {offsets = [0, 0], sizes = [1, 10], strides = [1, 1]} : vector<1x40xf32> to vector<1x10xf32>
    %699 = vector.extract_strided_slice %697 {offsets = [0, 10], sizes = [1, 10], strides = [1, 1]} : vector<1x40xf32> to vector<1x10xf32>
    %700 = vector.extract_strided_slice %697 {offsets = [0, 20], sizes = [1, 10], strides = [1, 1]} : vector<1x40xf32> to vector<1x10xf32>
    %701 = vector.extract_strided_slice %697 {offsets = [0, 30], sizes = [1, 10], strides = [1, 1]} : vector<1x40xf32> to vector<1x10xf32>
    %702 = arith.mulf %699, %681 : vector<1x10xf32>
    %703 = arith.mulf %698, %700 : vector<1x10xf32>
    %704 = arith.addf %702, %703 : vector<1x10xf32>
    %705 = math.tanh %704 : vector<1x10xf32>
    %706 = arith.mulf %701, %705 : vector<1x10xf32>
    %707 = vector.extract_strided_slice %706 {offsets = [0, 0], sizes = [1, 5], strides = [1, 1]} : vector<1x10xf32> to vector<1x5xf32>
    %708 = vector.extract_strided_slice %706 {offsets = [0, 5], sizes = [1, 5], strides = [1, 1]} : vector<1x10xf32> to vector<1x5xf32>
    %709 = vector.extract_strided_slice %612 {offsets = [4, 0], sizes = [1, 40], strides = [1, 1]} : vector<8x40xf32> to vector<1x40xf32>
    %cst_156 = arith.constant dense<0.000000e+00> : vector<1x40xf32>
    %710 = tpu.matmul %706, %614, %cst_156 {dimension_numbers = #tpu.dot_dimension_numbers<[1], [0], [0], [1], [0, 0, 1, 1], [], []>} : vector<1x10xf32>, vector<10x40xf32>, vector<1x40xf32> -> vector<1x40xf32>
    %711 = arith.addf %709, %710 : vector<1x40xf32>
    %cst_157 = arith.constant 5.000000e-01 : f32
    %712 = vector.broadcast %cst_157 : f32 to vector<1x40xf32>
    %713 = arith.mulf %712, %711 : vector<1x40xf32>
    %714 = arith.select %5, %711, %713 : vector<1x40xi1>, vector<1x40xf32>
    %715 = math.tanh %714 : vector<1x40xf32>
    %cst_158 = arith.constant 5.000000e-01 : f32
    %716 = vector.broadcast %cst_158 : f32 to vector<1x40xf32>
    %717 = arith.mulf %716, %715 : vector<1x40xf32>
    %cst_159 = arith.constant 5.000000e-01 : f32
    %718 = vector.broadcast %cst_159 : f32 to vector<1x40xf32>
    %719 = arith.addf %717, %718 : vector<1x40xf32>
    %720 = arith.select %5, %715, %719 : vector<1x40xi1>, vector<1x40xf32>
    %721 = vector.extract_strided_slice %720 {offsets = [0, 0], sizes = [1, 10], strides = [1, 1]} : vector<1x40xf32> to vector<1x10xf32>
    %722 = vector.extract_strided_slice %720 {offsets = [0, 10], sizes = [1, 10], strides = [1, 1]} : vector<1x40xf32> to vector<1x10xf32>
    %723 = vector.extract_strided_slice %720 {offsets = [0, 20], sizes = [1, 10], strides = [1, 1]} : vector<1x40xf32> to vector<1x10xf32>
    %724 = vector.extract_strided_slice %720 {offsets = [0, 30], sizes = [1, 10], strides = [1, 1]} : vector<1x40xf32> to vector<1x10xf32>
    %725 = arith.mulf %722, %704 : vector<1x10xf32>
    %726 = arith.mulf %721, %723 : vector<1x10xf32>
    %727 = arith.addf %725, %726 : vector<1x10xf32>
    %728 = math.tanh %727 : vector<1x10xf32>
    %729 = arith.mulf %724, %728 : vector<1x10xf32>
    %730 = vector.extract_strided_slice %729 {offsets = [0, 0], sizes = [1, 5], strides = [1, 1]} : vector<1x10xf32> to vector<1x5xf32>
    %731 = vector.extract_strided_slice %729 {offsets = [0, 5], sizes = [1, 5], strides = [1, 1]} : vector<1x10xf32> to vector<1x5xf32>
    %732 = vector.extract_strided_slice %612 {offsets = [5, 0], sizes = [1, 40], strides = [1, 1]} : vector<8x40xf32> to vector<1x40xf32>
    %cst_160 = arith.constant dense<0.000000e+00> : vector<1x40xf32>
    %733 = tpu.matmul %729, %614, %cst_160 {dimension_numbers = #tpu.dot_dimension_numbers<[1], [0], [0], [1], [0, 0, 1, 1], [], []>} : vector<1x10xf32>, vector<10x40xf32>, vector<1x40xf32> -> vector<1x40xf32>
    %734 = arith.addf %732, %733 : vector<1x40xf32>
    %cst_161 = arith.constant 5.000000e-01 : f32
    %735 = vector.broadcast %cst_161 : f32 to vector<1x40xf32>
    %736 = arith.mulf %735, %734 : vector<1x40xf32>
    %737 = arith.select %5, %734, %736 : vector<1x40xi1>, vector<1x40xf32>
    %738 = math.tanh %737 : vector<1x40xf32>
    %cst_162 = arith.constant 5.000000e-01 : f32
    %739 = vector.broadcast %cst_162 : f32 to vector<1x40xf32>
    %740 = arith.mulf %739, %738 : vector<1x40xf32>
    %cst_163 = arith.constant 5.000000e-01 : f32
    %741 = vector.broadcast %cst_163 : f32 to vector<1x40xf32>
    %742 = arith.addf %740, %741 : vector<1x40xf32>
    %743 = arith.select %5, %738, %742 : vector<1x40xi1>, vector<1x40xf32>
    %744 = vector.extract_strided_slice %743 {offsets = [0, 0], sizes = [1, 10], strides = [1, 1]} : vector<1x40xf32> to vector<1x10xf32>
    %745 = vector.extract_strided_slice %743 {offsets = [0, 10], sizes = [1, 10], strides = [1, 1]} : vector<1x40xf32> to vector<1x10xf32>
    %746 = vector.extract_strided_slice %743 {offsets = [0, 20], sizes = [1, 10], strides = [1, 1]} : vector<1x40xf32> to vector<1x10xf32>
    %747 = vector.extract_strided_slice %743 {offsets = [0, 30], sizes = [1, 10], strides = [1, 1]} : vector<1x40xf32> to vector<1x10xf32>
    %748 = arith.mulf %745, %727 : vector<1x10xf32>
    %749 = arith.mulf %744, %746 : vector<1x10xf32>
    %750 = arith.addf %748, %749 : vector<1x10xf32>
    %751 = math.tanh %750 : vector<1x10xf32>
    %752 = arith.mulf %747, %751 : vector<1x10xf32>
    %753 = vector.extract_strided_slice %752 {offsets = [0, 0], sizes = [1, 5], strides = [1, 1]} : vector<1x10xf32> to vector<1x5xf32>
    %754 = vector.extract_strided_slice %752 {offsets = [0, 5], sizes = [1, 5], strides = [1, 1]} : vector<1x10xf32> to vector<1x5xf32>
    %755 = vector.extract_strided_slice %612 {offsets = [6, 0], sizes = [1, 40], strides = [1, 1]} : vector<8x40xf32> to vector<1x40xf32>
    %cst_164 = arith.constant dense<0.000000e+00> : vector<1x40xf32>
    %756 = tpu.matmul %752, %614, %cst_164 {dimension_numbers = #tpu.dot_dimension_numbers<[1], [0], [0], [1], [0, 0, 1, 1], [], []>} : vector<1x10xf32>, vector<10x40xf32>, vector<1x40xf32> -> vector<1x40xf32>
    %757 = arith.addf %755, %756 : vector<1x40xf32>
    %cst_165 = arith.constant 5.000000e-01 : f32
    %758 = vector.broadcast %cst_165 : f32 to vector<1x40xf32>
    %759 = arith.mulf %758, %757 : vector<1x40xf32>
    %760 = arith.select %5, %757, %759 : vector<1x40xi1>, vector<1x40xf32>
    %761 = math.tanh %760 : vector<1x40xf32>
    %cst_166 = arith.constant 5.000000e-01 : f32
    %762 = vector.broadcast %cst_166 : f32 to vector<1x40xf32>
    %763 = arith.mulf %762, %761 : vector<1x40xf32>
    %cst_167 = arith.constant 5.000000e-01 : f32
    %764 = vector.broadcast %cst_167 : f32 to vector<1x40xf32>
    %765 = arith.addf %763, %764 : vector<1x40xf32>
    %766 = arith.select %5, %761, %765 : vector<1x40xi1>, vector<1x40xf32>
    %767 = vector.extract_strided_slice %766 {offsets = [0, 0], sizes = [1, 10], strides = [1, 1]} : vector<1x40xf32> to vector<1x10xf32>
    %768 = vector.extract_strided_slice %766 {offsets = [0, 10], sizes = [1, 10], strides = [1, 1]} : vector<1x40xf32> to vector<1x10xf32>
    %769 = vector.extract_strided_slice %766 {offsets = [0, 20], sizes = [1, 10], strides = [1, 1]} : vector<1x40xf32> to vector<1x10xf32>
    %770 = vector.extract_strided_slice %766 {offsets = [0, 30], sizes = [1, 10], strides = [1, 1]} : vector<1x40xf32> to vector<1x10xf32>
    %771 = arith.mulf %768, %750 : vector<1x10xf32>
    %772 = arith.mulf %767, %769 : vector<1x10xf32>
    %773 = arith.addf %771, %772 : vector<1x10xf32>
    %774 = math.tanh %773 : vector<1x10xf32>
    %775 = arith.mulf %770, %774 : vector<1x10xf32>
    %776 = vector.extract_strided_slice %775 {offsets = [0, 0], sizes = [1, 5], strides = [1, 1]} : vector<1x10xf32> to vector<1x5xf32>
    %777 = vector.extract_strided_slice %775 {offsets = [0, 5], sizes = [1, 5], strides = [1, 1]} : vector<1x10xf32> to vector<1x5xf32>
    %778 = vector.extract_strided_slice %612 {offsets = [7, 0], sizes = [1, 40], strides = [1, 1]} : vector<8x40xf32> to vector<1x40xf32>
    %cst_168 = arith.constant dense<0.000000e+00> : vector<1x40xf32>
    %779 = tpu.matmul %775, %614, %cst_168 {dimension_numbers = #tpu.dot_dimension_numbers<[1], [0], [0], [1], [0, 0, 1, 1], [], []>} : vector<1x10xf32>, vector<10x40xf32>, vector<1x40xf32> -> vector<1x40xf32>
    %780 = arith.addf %778, %779 : vector<1x40xf32>
    %cst_169 = arith.constant 5.000000e-01 : f32
    %781 = vector.broadcast %cst_169 : f32 to vector<1x40xf32>
    %782 = arith.mulf %781, %780 : vector<1x40xf32>
    %783 = arith.select %5, %780, %782 : vector<1x40xi1>, vector<1x40xf32>
    %784 = math.tanh %783 : vector<1x40xf32>
    %cst_170 = arith.constant 5.000000e-01 : f32
    %785 = vector.broadcast %cst_170 : f32 to vector<1x40xf32>
    %786 = arith.mulf %785, %784 : vector<1x40xf32>
    %cst_171 = arith.constant 5.000000e-01 : f32
    %787 = vector.broadcast %cst_171 : f32 to vector<1x40xf32>
    %788 = arith.addf %786, %787 : vector<1x40xf32>
    %789 = arith.select %5, %784, %788 : vector<1x40xi1>, vector<1x40xf32>
    %790 = vector.extract_strided_slice %789 {offsets = [0, 0], sizes = [1, 10], strides = [1, 1]} : vector<1x40xf32> to vector<1x10xf32>
    %791 = vector.extract_strided_slice %789 {offsets = [0, 10], sizes = [1, 10], strides = [1, 1]} : vector<1x40xf32> to vector<1x10xf32>
    %792 = vector.extract_strided_slice %789 {offsets = [0, 20], sizes = [1, 10], strides = [1, 1]} : vector<1x40xf32> to vector<1x10xf32>
    %793 = vector.extract_strided_slice %789 {offsets = [0, 30], sizes = [1, 10], strides = [1, 1]} : vector<1x40xf32> to vector<1x10xf32>
    %794 = arith.mulf %791, %773 : vector<1x10xf32>
    %795 = arith.mulf %790, %792 : vector<1x10xf32>
    %796 = arith.addf %794, %795 : vector<1x10xf32>
    %797 = math.tanh %796 : vector<1x10xf32>
    %798 = arith.mulf %793, %797 : vector<1x10xf32>
    %799 = vector.extract_strided_slice %798 {offsets = [0, 0], sizes = [1, 5], strides = [1, 1]} : vector<1x10xf32> to vector<1x5xf32>
    %800 = vector.extract_strided_slice %798 {offsets = [0, 5], sizes = [1, 5], strides = [1, 1]} : vector<1x10xf32> to vector<1x5xf32>
    %801 = tpu.concatenate %638, %661, %684, %707, %730, %753, %776, %799 in 0 : vector<1x5xf32>, vector<1x5xf32>, vector<1x5xf32>, vector<1x5xf32>, vector<1x5xf32>, vector<1x5xf32>, vector<1x5xf32>, vector<1x5xf32> -> vector<8x5xf32>
    %802 = tpu.concatenate %800, %777, %754, %731, %708, %685, %662, %639 in 0 : vector<1x5xf32>, vector<1x5xf32>, vector<1x5xf32>, vector<1x5xf32>, vector<1x5xf32>, vector<1x5xf32>, vector<1x5xf32>, vector<1x5xf32> -> vector<8x5xf32>
    %803 = tpu.concatenate %801, %802 in 1 : vector<8x5xf32>, vector<8x5xf32> -> vector<8x10xf32>
    %c0_172 = arith.constant 0 : index
    %c0_173 = arith.constant 0 : index
    %804 = vector.load %arg5[%c0_172, %c0_173] : memref<10x128xf32, #tpu.memory_space<vmem>>, vector<10x128xf32>
    %cst_174 = arith.constant dense<0.000000e+00> : vector<8x128xf32>
    %805 = tpu.matmul %803, %804, %cst_174 {dimension_numbers = #tpu.dot_dimension_numbers<[1], [0], [0], [1], [0, 0, 1, 1], [], []>} : vector<8x10xf32>, vector<10x128xf32>, vector<8x128xf32> -> vector<8x128xf32>
    %c0_175 = arith.constant 0 : index
    %c0_176 = arith.constant 0 : index
    %806 = vector.load %arg6[%c0_175, %c0_176] : memref<1x128xf32, #tpu.memory_space<vmem>>, vector<1x128xf32>
    %807 = vector.broadcast %806 : vector<1x128xf32> to vector<8x128xf32>
    %808 = arith.addf %805, %807 : vector<8x128xf32>
    %c0_177 = arith.constant 0 : index
    %c0_178 = arith.constant 0 : index
    %809 = vector.load %arg7[%c0_177, %c0_178] : memref<8x128xf32, #tpu.memory_space<vmem>>, vector<8x128xf32>
    tpu.vector_store %arg7[%c0_177, %c0_178], %808 {strides = array<i32>} : memref<8x128xf32, #tpu.memory_space<vmem>>, vector<8x128xf32>,
    return
  }
}

</mosaic_0001>

<llo_original>
// kernel: tpu_custom_call.1
$region0: #{tpu_custom_call.1}
  #allocation0 [shape = 'u32[]', space=smem, size = 0x4, offset = 0x4, fixed_abs, tag = 'smem constant byte address 0x4 - core index']
  #allocation1 [shape = 'u32[144,128]{1,0:T(1,128)}', space=vmem, size = 0x12000, scoped, tag = 'internal scratch']
  %s0 = inlined_call_operand.hbm [shape: f32[8,32], index: 0, kind: input, shape index: {}]
  %s1 = inlined_call_operand.vmem [shape: f32[32,40], index: 1, kind: input, shape index: {}]
  %s2 = inlined_call_operand.vmem [shape: f32[3,20,40], index: 2, kind: input, shape index: {}]
  %s3 = inlined_call_operand.vmem [shape: f32[4,10,40], index: 3, kind: input, shape index: {}]
  %s4 = inlined_call_operand.hbm [shape: f32[4,1,40], index: 4, kind: input, shape index: {}]
  %s5 = inlined_call_operand.vmem [shape: f32[10,128], index: 5, kind: input, shape index: {}]
  %s6 = inlined_call_operand.vmem [shape: f32[1,128], index: 6, kind: input, shape index: {}]
  %s7 = inlined_call_operand.hbm [shape: f32[8,128], index: 7, kind: output, shape index: {}]
  %s8 = sld [smem:[#allocation0]]
  $region46: #{tpu_custom_call.1} parent=0
    _
  %s10 = ssub.s32 1, %s8
  %s11 = scalar_select 0, %s10, %s8
  $region1: #{tpu_custom_call.1} parent=0
    #allocation2 [shape = 'u8[4096]{0}', space=vmem, size = 0x1000, scoped, tag = 'input window, operand 0, single buffered']
    #allocation3 [shape = 's32[1]{0}', space=sflag, size = 0x4, scoped, tag = 'scoped memory for tpu_custom_call.1']
    #allocation4 [shape = 's32[1]{0}', space=sflag, size = 0x4, scoped, tag = 'scoped memory for tpu_custom_call.1']
    #allocation5 [shape = 'u8[2048]{0}', space=vmem, size = 0x800, scoped, tag = 'input window, operand 4, single buffered']
    #allocation6 [shape = 's32[1]{0}', space=sflag, size = 0x4, scoped, tag = 'scoped memory for tpu_custom_call.1']
    #allocation7 [shape = 'u8[4096]{0}', space=vmem, size = 0x1000, scoped, tag = 'output window, operand 0, single buffered']
    %12 = vsyncpa [#allocation3], 0
    %13 = vsyncpa [#allocation6], 0
    %14 = vsyncpa [#allocation4], 0
    // Predicated region
    $region2: #{tpu_custom_call.1} parent=1 // pred_check
      _
    $region3: #{tpu_custom_call.1} parent=1 // pred_check_branch
      %16 = sbr.rel (0) target = $region5
    $region4: #{tpu_custom_call.1} parent=1 // pred_region
      %s18 = ssub.s32 128, 128
      %19 = vsyncadd [#allocation3], %s18
      %s21 = sshll.u32 [#allocation2], 4
      %s22 = int_to_ptr.vmem [resolvable:$true] %s21
      %24 = dma.hbm_to_vmem [thread:$0]  %s0, 128, %s22, [#allocation3]
    $region5: #{tpu_custom_call.1} parent=1 // pred_fallthru
      _
    // Predicated region
    $region6: #{tpu_custom_call.1} parent=1 // pred_check
      _
    $region7: #{tpu_custom_call.1} parent=1 // pred_check_branch
      %26 = sbr.rel (0) target = $region9
    $region8: #{tpu_custom_call.1} parent=1 // pred_region
      _
    $region9: #{tpu_custom_call.1} parent=1 // pred_fallthru
      _
    // Predicated region
    $region10: #{tpu_custom_call.1} parent=1 // pred_check
      _
    $region11: #{tpu_custom_call.1} parent=1 // pred_check_branch
      %28 = sbr.rel (0) target = $region13
    $region12: #{tpu_custom_call.1} parent=1 // pred_region
      _
    $region13: #{tpu_custom_call.1} parent=1 // pred_fallthru
      _
    // Predicated region
    $region14: #{tpu_custom_call.1} parent=1 // pred_check
      _
    $region15: #{tpu_custom_call.1} parent=1 // pred_check_branch
      %30 = sbr.rel (0) target = $region17
    $region16: #{tpu_custom_call.1} parent=1 // pred_region
      _
    $region17: #{tpu_custom_call.1} parent=1 // pred_fallthru
      _
    // Predicated region
    $region18: #{tpu_custom_call.1} parent=1 // pred_check
      _
    $region19: #{tpu_custom_call.1} parent=1 // pred_check_branch
      %32 = sbr.rel (0) target = $region21
    $region20: #{tpu_custom_call.1} parent=1 // pred_region
      %s34 = ssub.s32 64, 64
      %35 = vsyncadd [#allocation6], %s34
      %s36 = sshll.u32 [#allocation5], 4
      %s37 = int_to_ptr.vmem [resolvable:$true] %s36
      %42 = dma.hbm_to_vmem [thread:$0]  %s4, 64, %s37, [#allocation6], 16, 16, 1
    $region21: #{tpu_custom_call.1} parent=1 // pred_fallthru
      _
    // Predicated region
    $region22: #{tpu_custom_call.1} parent=1 // pred_check
      _
    $region23: #{tpu_custom_call.1} parent=1 // pred_check_branch
      %44 = sbr.rel (0) target = $region25
    $region24: #{tpu_custom_call.1} parent=1 // pred_region
      _
    $region25: #{tpu_custom_call.1} parent=1 // pred_fallthru
      _
    // Predicated region
    $region26: #{tpu_custom_call.1} parent=1 // pred_check
      _
    $region27: #{tpu_custom_call.1} parent=1 // pred_check_branch
      %46 = sbr.rel (0) target = $region29
    $region28: #{tpu_custom_call.1} parent=1 // pred_region
      _
    $region29: #{tpu_custom_call.1} parent=1 // pred_fallthru
      _
    // Predicated region
    $region30: #{tpu_custom_call.1} parent=1 // pred_check
      _
    $region31: #{tpu_custom_call.1} parent=1 // pred_check_branch
      %48 = sbr.rel (0) target = $region33
    $region32: #{tpu_custom_call.1} parent=1 // pred_region
      %49 = dma.done [#allocation3], 128
    $region33: #{tpu_custom_call.1} parent=1 // pred_fallthru
      _
    // Predicated region
    $region34: #{tpu_custom_call.1} parent=1 // pred_check
      _
    $region35: #{tpu_custom_call.1} parent=1 // pred_check_branch
      %51 = sbr.rel (0) target = $region37
    $region36: #{tpu_custom_call.1} parent=1 // pred_region
      %52 = dma.done [#allocation6], 64
    $region37: #{tpu_custom_call.1} parent=1 // pred_fallthru
      _
    %v53 = vlaneseq
    %v54 = vand.u32 %v53, 127
    %vm55 = vcmp.ge.s32.totalorder %v54, 20
    %vm56 = vcmp.lt.s32.totalorder %v54, 30
    %vm57 = vmand %vm55, %vm56
    %v58 = vld [vmem:[#allocation2] sm:$0xff]
    %v59 = vld [vmem:[%s1] sm:$0xff]
    %v60 = vld [vmem:[%s1 + $0x8] sm:$0xff]
    %v61 = vld [vmem:[%s1 + $0x10] sm:$0xff]
    %v62 = vld [vmem:[%s1 + $0x18] sm:$0xff]
    %v63 = vld [vmem:[#allocation5] sm:$0x1]
    %v65 = vlaneseq
    %v66 = vshrl.u32 %v65, 7
    %v67 = vsub.s32 0, %v66
    %v68 = vrot.slane %v63, %v67
    %vm70 = vcmask 261120
    %v72 = vsel %vm70, %v58, 0
    %74 = vmatprep.subr.mxu0 0.0
    %75 = vmatpush1.msra.mxu0 %v59
    %76 = vmatprep.subr.mxu0 0.0
    %77 = vmatpush1.msra.mxu0 %v60
    %78 = vmatprep.subr.mxu0 0.0
    %79 = vmatpush1.msra.mxu0 %v61
    %80 = vmatprep.subr.mxu0 0.0
    %81 = vmatpush1.msra.mxu0 %v62
    %82 = vmatprep.subr.mxu0 0.0
    %83 = vmatpush1.msra.mxu0 0.0
    %84 = vmatprep.subr.mxu0 0.0
    %85 = vmatpush1.msra.mxu0 0.0
    %86 = vmatprep.subr.mxu0 0.0
    %87 = vmatpush1.msra.mxu0 0.0
    %88 = vmatprep.subr.mxu0 0.0
    %89 = vmatpush1.msra.mxu0 0.0
    %90 = vmatprep.subr.mxu0 0.0
    %91 = vmatpush1.msra.mxu0 0.0
    %92 = vmatprep.subr.mxu0 0.0
    %93 = vmatpush1.msra.mxu0 0.0
    %94 = vmatprep.subr.mxu0 0.0
    %95 = vmatpush1.msra.mxu0 0.0
    %96 = vmatprep.subr.mxu0 0.0
    %97 = vmatpush1.msra.mxu0 0.0
    %98 = vmatprep.subr.mxu0 0.0
    %99 = vmatpush1.msra.mxu0 0.0
    %100 = vmatprep.subr.mxu0 0.0
    %101 = vmatpush1.msra.mxu0 0.0
    %102 = vmatprep.subr.mxu0 0.0
    %103 = vmatpush1.msra.mxu0 0.0
    %104 = vmatprep.subr.mxu0 0.0
    %105 = vmatpush1.msra.mxu0 0.0
    %106 = vmatprep.subr.mxu0 0.0
    %107 = vmatpush1.msra.mxu0 0.0
    %108 = vmatprep.subr.mxu0 0.0
    %109 = vmatpush1.msra.mxu0 0.0
    %110 = vmatprep.subr.mxu0 0.0
    %111 = vmatpush1.msra.mxu0 0.0
    %112 = vmatprep.subr.mxu0 0.0
    %113 = vmatpush1.msra.mxu0 0.0
    %114 = vmatprep.subr.mxu0 0.0
    %115 = vmatpush1.msra.mxu0 0.0
    %116 = vmatprep.subr.mxu0 0.0
    %117 = vmatpush1.msra.mxu0 0.0
    %118 = vmatprep.subr.mxu0 0.0
    %119 = vmatpush1.msra.mxu0 0.0
    %120 = vmatprep.subr.mxu0 0.0
    %121 = vmatpush1.msra.mxu0 0.0
    %122 = vmatprep.subr.mxu0 0.0
    %123 = vmatpush1.msra.mxu0 0.0
    %124 = vmatprep.subr.mxu0 0.0
    %125 = vmatpush1.msra.mxu0 0.0
    %126 = vmatprep.subr.mxu0 0.0
    %127 = vmatpush1.msra.mxu0 0.0
    %128 = vmatprep.subr.mxu0 0.0
    %129 = vmatpush1.msra.mxu0 0.0
    %130 = vmatprep.subr.mxu0 0.0
    %131 = vmatpush1.msra.mxu0 0.0
    %132 = vmatprep.subr.mxu0 0.0
    %133 = vmatpush1.msra.mxu0 0.0
    %134 = vmatprep.subr.mxu0 0.0
    %135 = vmatpush1.msra.mxu0 0.0
    %136 = vmatprep.subr.mxu0 0.0
    %137 = vmatpush1.msra.mxu0 0.0
    %138 = vmatprep.mubr.f32.mxu0 0.0
    %139 = vmatmul.mubr.f32.gmra.mrb[0].mxu0 %v72
    %v140 = vpop.f32.mrb[0].mxu0
    %v141 = vadd.f32 %v68, %v140
    %v142 = vpop.f32.mrb[0].mxu0
    %143 = vdwg.mxu0
    %v144 = vld [vmem:[%s3] sm:$0xff]
    %v145 = vld [vmem:[%s3 + $0x8] sm:$0x3]
    %vm146 = vcmask 80896
    %v148 = vsel %vm146, 0.0, 0
    %vm150 = vcmask 1041408
    %v152 = vsel %vm150, %v145, 0
    %154 = vmatprep.subr.mxu0 0.0
    %155 = vmatpush1.msra.mxu0 %v144
    %156 = vmatprep.subr.mxu0 0.0
    %157 = vmatpush1.msra.mxu0 %v152
    %158 = vmatprep.subr.mxu0 0.0
    %159 = vmatpush1.msra.mxu0 0.0
    %160 = vmatprep.subr.mxu0 0.0
    %161 = vmatpush1.msra.mxu0 0.0
    %162 = vmatprep.subr.mxu0 0.0
    %163 = vmatpush1.msra.mxu0 0.0
    %164 = vmatprep.subr.mxu0 0.0
    %165 = vmatpush1.msra.mxu0 0.0
    %166 = vmatprep.subr.mxu0 0.0
    %167 = vmatpush1.msra.mxu0 0.0
    %168 = vmatprep.subr.mxu0 0.0
    %169 = vmatpush1.msra.mxu0 0.0
    %170 = vmatprep.subr.mxu0 0.0
    %171 = vmatpush1.msra.mxu0 0.0
    %172 = vmatprep.subr.mxu0 0.0
    %173 = vmatpush1.msra.mxu0 0.0
    %174 = vmatprep.subr.mxu0 0.0
    %175 = vmatpush1.msra.mxu0 0.0
    %176 = vmatprep.subr.mxu0 0.0
    %177 = vmatpush1.msra.mxu0 0.0
    %178 = vmatprep.subr.mxu0 0.0
    %179 = vmatpush1.msra.mxu0 0.0
    %180 = vmatprep.subr.mxu0 0.0
    %181 = vmatpush1.msra.mxu0 0.0
    %182 = vmatprep.subr.mxu0 0.0
    %183 = vmatpush1.msra.mxu0 0.0
    %184 = vmatprep.subr.mxu0 0.0
    %185 = vmatpush1.msra.mxu0 0.0
    %186 = vmatprep.subr.mxu0 0.0
    %187 = vmatpush1.msra.mxu0 0.0
    %188 = vmatprep.subr.mxu0 0.0
    %189 = vmatpush1.msra.mxu0 0.0
    %190 = vmatprep.subr.mxu0 0.0
    %191 = vmatpush1.msra.mxu0 0.0
    %192 = vmatprep.subr.mxu0 0.0
    %193 = vmatpush1.msra.mxu0 0.0
    %194 = vmatprep.subr.mxu0 0.0
    %195 = vmatpush1.msra.mxu0 0.0
    %196 = vmatprep.subr.mxu0 0.0
    %197 = vmatpush1.msra.mxu0 0.0
    %198 = vmatprep.subr.mxu0 0.0
    %199 = vmatpush1.msra.mxu0 0.0
    %200 = vmatprep.subr.mxu0 0.0
    %201 = vmatpush1.msra.mxu0 0.0
    %202 = vmatprep.subr.mxu0 0.0
    %203 = vmatpush1.msra.mxu0 0.0
    %204 = vmatprep.subr.mxu0 0.0
    %205 = vmatpush1.msra.mxu0 0.0
    %206 = vmatprep.subr.mxu0 0.0
    %207 = vmatpush1.msra.mxu0 0.0
    %208 = vmatprep.subr.mxu0 0.0
    %209 = vmatpush1.msra.mxu0 0.0
    %210 = vmatprep.subr.mxu0 0.0
    %211 = vmatpush1.msra.mxu0 0.0
    %212 = vmatprep.subr.mxu0 0.0
    %213 = vmatpush1.msra.mxu0 0.0
    %214 = vmatprep.subr.mxu0 0.0
    %215 = vmatpush1.msra.mxu0 0.0
    %216 = vmatprep.subr.mxu0 0.0
    %217 = vmatpush1.msra.mxu0 0.0
    %218 = vmatprep.mubr.f32.mxu0 0.0
    %219 = vmatmul.mubr.f32.gmra.mrb[0].mxu0 %v148
    %v220 = vpop.f32.mrb[0].mxu0
    %v221 = vadd.f32 0.0, %v220
    %v222 = vpop.f32.mrb[0].mxu0
    %223 = vdwg.mxu0
    %v224 = vadd.f32 %v141, %v221
    %v225 = vmul.f32 %v224, 0.5
    %v226 = vsel %vm57, %v224, %v225
    %v227 = vtanh.pop %v226
    %v228 = vmul.f32 %v227, 0.5
    %v229 = vadd.f32 %v228, 0.5
    %v230 = vsel %vm57, %v227, %v229
    %v231 = vmul.f32 %v230, 0.0
    %233 = vrot.lane.b32.xlu0 %v230, 108
    %v234 = vpop.permute.xlu0 %233
    %v236 = vmul.f32 %v230, %v234
    %238 = vrot.lane.b32.xlu0 %v236, 10
    %v239 = vpop.permute.xlu0 %238
    %v241 = vadd.f32 %v231, %v239
    %v242 = vtanh.pop %v241
    %244 = vrot.lane.b32.xlu0 %v242, 20
    %v245 = vpop.permute.xlu0 %244
    %v247 = vmul.f32 %v230, %v245
    %249 = vrot.lane.b32.xlu0 %v247, 98
    %v250 = vpop.permute.xlu0 %249
    %v251 = vsel %vm146, %v250, 0
    %253 = vmatprep.subr.mxu0 0.0
    %254 = vmatpush1.msra.mxu0 %v144
    %255 = vmatprep.subr.mxu0 0.0
    %256 = vmatpush1.msra.mxu0 %v152
    %257 = vmatprep.subr.mxu0 0.0
    %258 = vmatpush1.msra.mxu0 0.0
    %259 = vmatprep.subr.mxu0 0.0
    %260 = vmatpush1.msra.mxu0 0.0
    %261 = vmatprep.subr.mxu0 0.0
    %262 = vmatpush1.msra.mxu0 0.0
    %263 = vmatprep.subr.mxu0 0.0
    %264 = vmatpush1.msra.mxu0 0.0
    %265 = vmatprep.subr.mxu0 0.0
    %266 = vmatpush1.msra.mxu0 0.0
    %267 = vmatprep.subr.mxu0 0.0
    %268 = vmatpush1.msra.mxu0 0.0
    %269 = vmatprep.subr.mxu0 0.0
    %270 = vmatpush1.msra.mxu0 0.0
    %271 = vmatprep.subr.mxu0 0.0
    %272 = vmatpush1.msra.mxu0 0.0
    %273 = vmatprep.subr.mxu0 0.0
    %274 = vmatpush1.msra.mxu0 0.0
    %275 = vmatprep.subr.mxu0 0.0
    %276 = vmatpush1.msra.mxu0 0.0
    %277 = vmatprep.subr.mxu0 0.0
    %278 = vmatpush1.msra.mxu0 0.0
    %279 = vmatprep.subr.mxu0 0.0
    %280 = vmatpush1.msra.mxu0 0.0
    %281 = vmatprep.subr.mxu0 0.0
    %282 = vmatpush1.msra.mxu0 0.0
    %283 = vmatprep.subr.mxu0 0.0
    %284 = vmatpush1.msra.mxu0 0.0
    %285 = vmatprep.subr.mxu0 0.0
    %286 = vmatpush1.msra.mxu0 0.0
    %287 = vmatprep.subr.mxu0 0.0
    %288 = vmatpush1.msra.mxu0 0.0
    %289 = vmatprep.subr.mxu0 0.0
    %290 = vmatpush1.msra.mxu0 0.0
    %291 = vmatprep.subr.mxu0 0.0
    %292 = vmatpush1.msra.mxu0 0.0
    %293 = vmatprep.subr.mxu0 0.0
    %294 = vmatpush1.msra.mxu0 0.0
    %295 = vmatprep.subr.mxu0 0.0
    %296 = vmatpush1.msra.mxu0 0.0
    %297 = vmatprep.subr.mxu0 0.0
    %298 = vmatpush1.msra.mxu0 0.0
    %299 = vmatprep.subr.mxu0 0.0
    %300 = vmatpush1.msra.mxu0 0.0
    %301 = vmatprep.subr.mxu0 0.0
    %302 = vmatpush1.msra.mxu0 0.0
    %303 = vmatprep.subr.mxu0 0.0
    %304 = vmatpush1.msra.mxu0 0.0
    %305 = vmatprep.subr.mxu0 0.0
    %306 = vmatpush1.msra.mxu0 0.0
    %307 = vmatprep.subr.mxu0 0.0
    %308 = vmatpush1.msra.mxu0 0.0
    %309 = vmatprep.subr.mxu0 0.0
    %310 = vmatpush1.msra.mxu0 0.0
    %311 = vmatprep.subr.mxu0 0.0
    %312 = vmatpush1.msra.mxu0 0.0
    %313 = vmatprep.subr.mxu0 0.0
    %314 = vmatpush1.msra.mxu0 0.0
    %315 = vmatprep.subr.mxu0 0.0
    %316 = vmatpush1.msra.mxu0 0.0
    %317 = vmatprep.mubr.f32.mxu0 0.0
    %318 = vmatmul.mubr.f32.gmra.mrb[0].mxu0 %v251
    %v319 = vpop.f32.mrb[0].mxu0
    %v320 = vadd.f32 0.0, %v319
    %v321 = vpop.f32.mrb[0].mxu0
    %322 = vdwg.mxu0
    %v324 = vrot.slane %v320, 7
    %v326 = vadd.f32 %v141, %v324
    %v327 = vmul.f32 %v326, 0.5
    %v328 = vsel %vm57, %v326, %v327
    %v329 = vtanh.pop %v328
    %v330 = vmul.f32 %v329, 0.5
    %v331 = vadd.f32 %v330, 0.5
    %v332 = vsel %vm57, %v329, %v331
    %v334 = vrot.slane %v241, 7
    %v336 = vmul.f32 %v332, %v334
    %338 = vrot.lane.b32.xlu0 %v332, 108
    %v339 = vpop.permute.xlu0 %338
    %v341 = vmul.f32 %v332, %v339
    %343 = vrot.lane.b32.xlu0 %v341, 10
    %v344 = vpop.permute.xlu0 %343
    %v346 = vadd.f32 %v336, %v344
    %v347 = vtanh.pop %v346
    %349 = vrot.lane.b32.xlu0 %v347, 20
    %v350 = vpop.permute.xlu0 %349
    %v352 = vmul.f32 %v332, %v350
    %v354 = vrot.slane %v352, 1
    %355 = vrot.lane.b32.xlu0 %v354, 98
    %v356 = vpop.permute.xlu0 %355
    %v357 = vsel %vm146, %v356, 0
    %359 = vmatprep.subr.mxu0 0.0
    %360 = vmatpush1.msra.mxu0 %v144
    %361 = vmatprep.subr.mxu0 0.0
    %362 = vmatpush1.msra.mxu0 %v152
    %363 = vmatprep.subr.mxu0 0.0
    %364 = vmatpush1.msra.mxu0 0.0
    %365 = vmatprep.subr.mxu0 0.0
    %366 = vmatpush1.msra.mxu0 0.0
    %367 = vmatprep.subr.mxu0 0.0
    %368 = vmatpush1.msra.mxu0 0.0
    %369 = vmatprep.subr.mxu0 0.0
    %370 = vmatpush1.msra.mxu0 0.0
    %371 = vmatprep.subr.mxu0 0.0
    %372 = vmatpush1.msra.mxu0 0.0
    %373 = vmatprep.subr.mxu0 0.0
    %374 = vmatpush1.msra.mxu0 0.0
    %375 = vmatprep.subr.mxu0 0.0
    %376 = vmatpush1.msra.mxu0 0.0
    %377 = vmatprep.subr.mxu0 0.0
    %378 = vmatpush1.msra.mxu0 0.0
    %379 = vmatprep.subr.mxu0 0.0
    %380 = vmatpush1.msra.mxu0 0.0
    %381 = vmatprep.subr.mxu0 0.0
    %382 = vmatpush1.msra.mxu0 0.0
    %383 = vmatprep.subr.mxu0 0.0
    %384 = vmatpush1.msra.mxu0 0.0
    %385 = vmatprep.subr.mxu0 0.0
    %386 = vmatpush1.msra.mxu0 0.0
    %387 = vmatprep.subr.mxu0 0.0
    %388 = vmatpush1.msra.mxu0 0.0
    %389 = vmatprep.subr.mxu0 0.0
    %390 = vmatpush1.msra.mxu0 0.0
    %391 = vmatprep.subr.mxu0 0.0
    %392 = vmatpush1.msra.mxu0 0.0
    %393 = vmatprep.subr.mxu0 0.0
    %394 = vmatpush1.msra.mxu0 0.0
    %395 = vmatprep.subr.mxu0 0.0
    %396 = vmatpush1.msra.mxu0 0.0
    %397 = vmatprep.subr.mxu0 0.0
    %398 = vmatpush1.msra.mxu0 0.0
    %399 = vmatprep.subr.mxu0 0.0
    %400 = vmatpush1.msra.mxu0 0.0
    %401 = vmatprep.subr.mxu0 0.0
    %402 = vmatpush1.msra.mxu0 0.0
    %403 = vmatprep.subr.mxu0 0.0
    %404 = vmatpush1.msra.mxu0 0.0
    %405 = vmatprep.subr.mxu0 0.0
    %406 = vmatpush1.msra.mxu0 0.0
    %407 = vmatprep.subr.mxu0 0.0
    %408 = vmatpush1.msra.mxu0 0.0
    %409 = vmatprep.subr.mxu0 0.0
    %410 = vmatpush1.msra.mxu0 0.0
    %411 = vmatprep.subr.mxu0 0.0
    %412 = vmatpush1.msra.mxu0 0.0
    %413 = vmatprep.subr.mxu0 0.0
    %414 = vmatpush1.msra.mxu0 0.0
    %415 = vmatprep.subr.mxu0 0.0
    %416 = vmatpush1.msra.mxu0 0.0
    %417 = vmatprep.subr.mxu0 0.0
    %418 = vmatpush1.msra.mxu0 0.0
    %419 = vmatprep.subr.mxu0 0.0
    %420 = vmatpush1.msra.mxu0 0.0
    %421 = vmatprep.subr.mxu0 0.0
    %422 = vmatpush1.msra.mxu0 0.0
    %423 = vmatprep.mubr.f32.mxu0 0.0
    %424 = vmatmul.mubr.f32.gmra.mrb[0].mxu0 %v357
    %v425 = vpop.f32.mrb[0].mxu0
    %v426 = vadd.f32 0.0, %v425
    %v427 = vpop.f32.mrb[0].mxu0
    %428 = vdwg.mxu0
    %v430 = vrot.slane %v426, 6
    %v432 = vadd.f32 %v141, %v430
    %v433 = vmul.f32 %v432, 0.5
    %v434 = vsel %vm57, %v432, %v433
    %v435 = vtanh.pop %v434
    %v436 = vmul.f32 %v435, 0.5
    %v437 = vadd.f32 %v436, 0.5
    %v438 = vsel %vm57, %v435, %v437
    %v440 = vrot.slane %v346, 7
    %v442 = vmul.f32 %v438, %v440
    %444 = vrot.lane.b32.xlu0 %v438, 108
    %v445 = vpop.permute.xlu0 %444
    %v447 = vmul.f32 %v438, %v445
    %449 = vrot.lane.b32.xlu0 %v447, 10
    %v450 = vpop.permute.xlu0 %449
    %v452 = vadd.f32 %v442, %v450
    %v453 = vtanh.pop %v452
    %455 = vrot.lane.b32.xlu0 %v453, 20
    %v456 = vpop.permute.xlu0 %455
    %v458 = vmul.f32 %v438, %v456
    %v460 = vrot.slane %v458, 2
    %461 = vrot.lane.b32.xlu0 %v460, 98
    %v462 = vpop.permute.xlu0 %461
    %v463 = vsel %vm146, %v462, 0
    %465 = vmatprep.subr.mxu0 0.0
    %466 = vmatpush1.msra.mxu0 %v144
    %467 = vmatprep.subr.mxu0 0.0
    %468 = vmatpush1.msra.mxu0 %v152
    %469 = vmatprep.subr.mxu0 0.0
    %470 = vmatpush1.msra.mxu0 0.0
    %471 = vmatprep.subr.mxu0 0.0
    %472 = vmatpush1.msra.mxu0 0.0
    %473 = vmatprep.subr.mxu0 0.0
    %474 = vmatpush1.msra.mxu0 0.0
    %475 = vmatprep.subr.mxu0 0.0
    %476 = vmatpush1.msra.mxu0 0.0
    %477 = vmatprep.subr.mxu0 0.0
    %478 = vmatpush1.msra.mxu0 0.0
    %479 = vmatprep.subr.mxu0 0.0
    %480 = vmatpush1.msra.mxu0 0.0
    %481 = vmatprep.subr.mxu0 0.0
    %482 = vmatpush1.msra.mxu0 0.0
    %483 = vmatprep.subr.mxu0 0.0
    %484 = vmatpush1.msra.mxu0 0.0
    %485 = vmatprep.subr.mxu0 0.0
    %486 = vmatpush1.msra.mxu0 0.0
    %487 = vmatprep.subr.mxu0 0.0
    %488 = vmatpush1.msra.mxu0 0.0
    %489 = vmatprep.subr.mxu0 0.0
    %490 = vmatpush1.msra.mxu0 0.0
    %491 = vmatprep.subr.mxu0 0.0
    %492 = vmatpush1.msra.mxu0 0.0
    %493 = vmatprep.subr.mxu0 0.0
    %494 = vmatpush1.msra.mxu0 0.0
    %495 = vmatprep.subr.mxu0 0.0
    %496 = vmatpush1.msra.mxu0 0.0
    %497 = vmatprep.subr.mxu0 0.0
    %498 = vmatpush1.msra.mxu0 0.0
    %499 = vmatprep.subr.mxu0 0.0
    %500 = vmatpush1.msra.mxu0 0.0
    %501 = vmatprep.subr.mxu0 0.0
    %502 = vmatpush1.msra.mxu0 0.0
    %503 = vmatprep.subr.mxu0 0.0
    %504 = vmatpush1.msra.mxu0 0.0
    %505 = vmatprep.subr.mxu0 0.0
    %506 = vmatpush1.msra.mxu0 0.0
    %507 = vmatprep.subr.mxu0 0.0
    %508 = vmatpush1.msra.mxu0 0.0
    %509 = vmatprep.subr.mxu0 0.0
    %510 = vmatpush1.msra.mxu0 0.0
    %511 = vmatprep.subr.mxu0 0.0
    %512 = vmatpush1.msra.mxu0 0.0
    %513 = vmatprep.subr.mxu0 0.0
    %514 = vmatpush1.msra.mxu0 0.0
    %515 = vmatprep.subr.mxu0 0.0
    %516 = vmatpush1.msra.mxu0 0.0
    %517 = vmatprep.subr.mxu0 0.0
    %518 = vmatpush1.msra.mxu0 0.0
    %519 = vmatprep.subr.mxu0 0.0
    %520 = vmatpush1.msra.mxu0 0.0
    %521 = vmatprep.subr.mxu0 0.0
    %522 = vmatpush1.msra.mxu0 0.0
    %523 = vmatprep.subr.mxu0 0.0
    %524 = vmatpush1.msra.mxu0 0.0
    %525 = vmatprep.subr.mxu0 0.0
    %526 = vmatpush1.msra.mxu0 0.0
    %527 = vmatprep.subr.mxu0 0.0
    %528 = vmatpush1.msra.mxu0 0.0
    %529 = vmatprep.mubr.f32.mxu0 0.0
    %530 = vmatmul.mubr.f32.gmra.mrb[0].mxu0 %v463
    %v531 = vpop.f32.mrb[0].mxu0
    %v532 = vadd.f32 0.0, %v531
    %v533 = vpop.f32.mrb[0].mxu0
    %534 = vdwg.mxu0
    %v536 = vrot.slane %v532, 5
    %v538 = vadd.f32 %v141, %v536
    %v539 = vmul.f32 %v538, 0.5
    %v540 = vsel %vm57, %v538, %v539
    %v541 = vtanh.pop %v540
    %v542 = vmul.f32 %v541, 0.5
    %v543 = vadd.f32 %v542, 0.5
    %v544 = vsel %vm57, %v541, %v543
    %v546 = vrot.slane %v452, 7
    %v548 = vmul.f32 %v544, %v546
    %550 = vrot.lane.b32.xlu0 %v544, 108
    %v551 = vpop.permute.xlu0 %550
    %v553 = vmul.f32 %v544, %v551
    %555 = vrot.lane.b32.xlu0 %v553, 10
    %v556 = vpop.permute.xlu0 %555
    %v558 = vadd.f32 %v548, %v556
    %v559 = vtanh.pop %v558
    %561 = vrot.lane.b32.xlu0 %v559, 20
    %v562 = vpop.permute.xlu0 %561
    %v564 = vmul.f32 %v544, %v562
    %v566 = vrot.slane %v564, 3
    %567 = vrot.lane.b32.xlu0 %v566, 98
    %v568 = vpop.permute.xlu0 %567
    %v569 = vsel %vm146, %v568, 0
    %571 = vmatprep.subr.mxu0 0.0
    %572 = vmatpush1.msra.mxu0 %v144
    %573 = vmatprep.subr.mxu0 0.0
    %574 = vmatpush1.msra.mxu0 %v152
    %575 = vmatprep.subr.mxu0 0.0
    %576 = vmatpush1.msra.mxu0 0.0
    %577 = vmatprep.subr.mxu0 0.0
    %578 = vmatpush1.msra.mxu0 0.0
    %579 = vmatprep.subr.mxu0 0.0
    %580 = vmatpush1.msra.mxu0 0.0
    %581 = vmatprep.subr.mxu0 0.0
    %582 = vmatpush1.msra.mxu0 0.0
    %583 = vmatprep.subr.mxu0 0.0
    %584 = vmatpush1.msra.mxu0 0.0
    %585 = vmatprep.subr.mxu0 0.0
    %586 = vmatpush1.msra.mxu0 0.0
    %587 = vmatprep.subr.mxu0 0.0
    %588 = vmatpush1.msra.mxu0 0.0
    %589 = vmatprep.subr.mxu0 0.0
    %590 = vmatpush1.msra.mxu0 0.0
    %591 = vmatprep.subr.mxu0 0.0
    %592 = vmatpush1.msra.mxu0 0.0
    %593 = vmatprep.subr.mxu0 0.0
    %594 = vmatpush1.msra.mxu0 0.0
    %595 = vmatprep.subr.mxu0 0.0
    %596 = vmatpush1.msra.mxu0 0.0
    %597 = vmatprep.subr.mxu0 0.0
    %598 = vmatpush1.msra.mxu0 0.0
    %599 = vmatprep.subr.mxu0 0.0
    %600 = vmatpush1.msra.mxu0 0.0
    %601 = vmatprep.subr.mxu0 0.0
    %602 = vmatpush1.msra.mxu0 0.0
    %603 = vmatprep.subr.mxu0 0.0
    %604 = vmatpush1.msra.mxu0 0.0
    %605 = vmatprep.subr.mxu0 0.0
    %606 = vmatpush1.msra.mxu0 0.0
    %607 = vmatprep.subr.mxu0 0.0
    %608 = vmatpush1.msra.mxu0 0.0
    %609 = vmatprep.subr.mxu0 0.0
    %610 = vmatpush1.msra.mxu0 0.0
    %611 = vmatprep.subr.mxu0 0.0
    %612 = vmatpush1.msra.mxu0 0.0
    %613 = vmatprep.subr.mxu0 0.0
    %614 = vmatpush1.msra.mxu0 0.0
    %615 = vmatprep.subr.mxu0 0.0
    %616 = vmatpush1.msra.mxu0 0.0
    %617 = vmatprep.subr.mxu0 0.0
    %618 = vmatpush1.msra.mxu0 0.0
    %619 = vmatprep.subr.mxu0 0.0
    %620 = vmatpush1.msra.mxu0 0.0
    %621 = vmatprep.subr.mxu0 0.0
    %622 = vmatpush1.msra.mxu0 0.0
    %623 = vmatprep.subr.mxu0 0.0
    %624 = vmatpush1.msra.mxu0 0.0
    %625 = vmatprep.subr.mxu0 0.0
    %626 = vmatpush1.msra.mxu0 0.0
    %627 = vmatprep.subr.mxu0 0.0
    %628 = vmatpush1.msra.mxu0 0.0
    %629 = vmatprep.subr.mxu0 0.0
    %630 = vmatpush1.msra.mxu0 0.0
    %631 = vmatprep.subr.mxu0 0.0
    %632 = vmatpush1.msra.mxu0 0.0
    %633 = vmatprep.subr.mxu0 0.0
    %634 = vmatpush1.msra.mxu0 0.0
    %635 = vmatprep.mubr.f32.mxu0 0.0
    %636 = vmatmul.mubr.f32.gmra.mrb[0].mxu0 %v569
    %v637 = vpop.f32.mrb[0].mxu0
    %v638 = vadd.f32 0.0, %v637
    %v639 = vpop.f32.mrb[0].mxu0
    %640 = vdwg.mxu0
    %v642 = vrot.slane %v638, 4
    %v644 = vadd.f32 %v141, %v642
    %v645 = vmul.f32 %v644, 0.5
    %v646 = vsel %vm57, %v644, %v645
    %v647 = vtanh.pop %v646
    %v648 = vmul.f32 %v647, 0.5
    %v649 = vadd.f32 %v648, 0.5
    %v650 = vsel %vm57, %v647, %v649
    %v652 = vrot.slane %v558, 7
    %v654 = vmul.f32 %v650, %v652
    %656 = vrot.lane.b32.xlu0 %v650, 108
    %v657 = vpop.permute.xlu0 %656
    %v659 = vmul.f32 %v650, %v657
    %661 = vrot.lane.b32.xlu0 %v659, 10
    %v662 = vpop.permute.xlu0 %661
    %v664 = vadd.f32 %v654, %v662
    %v665 = vtanh.pop %v664
    %667 = vrot.lane.b32.xlu0 %v665, 20
    %v668 = vpop.permute.xlu0 %667
    %v670 = vmul.f32 %v650, %v668
    %v672 = vrot.slane %v670, 4
    %673 = vrot.lane.b32.xlu0 %v672, 98
    %v674 = vpop.permute.xlu0 %673
    %v675 = vsel %vm146, %v674, 0
    %677 = vmatprep.subr.mxu0 0.0
    %678 = vmatpush1.msra.mxu0 %v144
    %679 = vmatprep.subr.mxu0 0.0
    %680 = vmatpush1.msra.mxu0 %v152
    %681 = vmatprep.subr.mxu0 0.0
    %682 = vmatpush1.msra.mxu0 0.0
    %683 = vmatprep.subr.mxu0 0.0
    %684 = vmatpush1.msra.mxu0 0.0
    %685 = vmatprep.subr.mxu0 0.0
    %686 = vmatpush1.msra.mxu0 0.0
    %687 = vmatprep.subr.mxu0 0.0
    %688 = vmatpush1.msra.mxu0 0.0
    %689 = vmatprep.subr.mxu0 0.0
    %690 = vmatpush1.msra.mxu0 0.0
    %691 = vmatprep.subr.mxu0 0.0
    %692 = vmatpush1.msra.mxu0 0.0
    %693 = vmatprep.subr.mxu0 0.0
    %694 = vmatpush1.msra.mxu0 0.0
    %695 = vmatprep.subr.mxu0 0.0
    %696 = vmatpush1.msra.mxu0 0.0
    %697 = vmatprep.subr.mxu0 0.0
    %698 = vmatpush1.msra.mxu0 0.0
    %699 = vmatprep.subr.mxu0 0.0
    %700 = vmatpush1.msra.mxu0 0.0
    %701 = vmatprep.subr.mxu0 0.0
    %702 = vmatpush1.msra.mxu0 0.0
    %703 = vmatprep.subr.mxu0 0.0
    %704 = vmatpush1.msra.mxu0 0.0
    %705 = vmatprep.subr.mxu0 0.0
    %706 = vmatpush1.msra.mxu0 0.0
    %707 = vmatprep.subr.mxu0 0.0
    %708 = vmatpush1.msra.mxu0 0.0
    %709 = vmatprep.subr.mxu0 0.0
    %710 = vmatpush1.msra.mxu0 0.0
    %711 = vmatprep.subr.mxu0 0.0
    %712 = vmatpush1.msra.mxu0 0.0
    %713 = vmatprep.subr.mxu0 0.0
    %714 = vmatpush1.msra.mxu0 0.0
    %715 = vmatprep.subr.mxu0 0.0
    %716 = vmatpush1.msra.mxu0 0.0
    %717 = vmatprep.subr.mxu0 0.0
    %718 = vmatpush1.msra.mxu0 0.0
    %719 = vmatprep.subr.mxu0 0.0
    %720 = vmatpush1.msra.mxu0 0.0
    %721 = vmatprep.subr.mxu0 0.0
    %722 = vmatpush1.msra.mxu0 0.0
    %723 = vmatprep.subr.mxu0 0.0
    %724 = vmatpush1.msra.mxu0 0.0
    %725 = vmatprep.subr.mxu0 0.0
    %726 = vmatpush1.msra.mxu0 0.0
    %727 = vmatprep.subr.mxu0 0.0
    %728 = vmatpush1.msra.mxu0 0.0
    %729 = vmatprep.subr.mxu0 0.0
    %730 = vmatpush1.msra.mxu0 0.0
    %731 = vmatprep.subr.mxu0 0.0
    %732 = vmatpush1.msra.mxu0 0.0
    %733 = vmatprep.subr.mxu0 0.0
    %734 = vmatpush1.msra.mxu0 0.0
    %735 = vmatprep.subr.mxu0 0.0
    %736 = vmatpush1.msra.mxu0 0.0
    %737 = vmatprep.subr.mxu0 0.0
    %738 = vmatpush1.msra.mxu0 0.0
    %739 = vmatprep.subr.mxu0 0.0
    %740 = vmatpush1.msra.mxu0 0.0
    %741 = vmatprep.mubr.f32.mxu0 0.0
    %742 = vmatmul.mubr.f32.gmra.mrb[0].mxu0 %v675
    %v743 = vpop.f32.mrb[0].mxu0
    %v744 = vadd.f32 0.0, %v743
    %v745 = vpop.f32.mrb[0].mxu0
    %746 = vdwg.mxu0
    %v748 = vrot.slane %v744, 3
    %v750 = vadd.f32 %v141, %v748
    %v751 = vmul.f32 %v750, 0.5
    %v752 = vsel %vm57, %v750, %v751
    %v753 = vtanh.pop %v752
    %v754 = vmul.f32 %v753, 0.5
    %v755 = vadd.f32 %v754, 0.5
    %v756 = vsel %vm57, %v753, %v755
    %v758 = vrot.slane %v664, 7
    %v760 = vmul.f32 %v756, %v758
    %762 = vrot.lane.b32.xlu0 %v756, 108
    %v763 = vpop.permute.xlu0 %762
    %v765 = vmul.f32 %v756, %v763
    %767 = vrot.lane.b32.xlu0 %v765, 10
    %v768 = vpop.permute.xlu0 %767
    %v770 = vadd.f32 %v760, %v768
    %v771 = vtanh.pop %v770
    %773 = vrot.lane.b32.xlu0 %v771, 20
    %v774 = vpop.permute.xlu0 %773
    %v776 = vmul.f32 %v756, %v774
    %v778 = vrot.slane %v776, 5
    %779 = vrot.lane.b32.xlu0 %v778, 98
    %v780 = vpop.permute.xlu0 %779
    %v781 = vsel %vm146, %v780, 0
    %783 = vmatprep.subr.mxu0 0.0
    %784 = vmatpush1.msra.mxu0 %v144
    %785 = vmatprep.subr.mxu0 0.0
    %786 = vmatpush1.msra.mxu0 %v152
    %787 = vmatprep.subr.mxu0 0.0
    %788 = vmatpush1.msra.mxu0 0.0
    %789 = vmatprep.subr.mxu0 0.0
    %790 = vmatpush1.msra.mxu0 0.0
    %791 = vmatprep.subr.mxu0 0.0
    %792 = vmatpush1.msra.mxu0 0.0
    %793 = vmatprep.subr.mxu0 0.0
    %794 = vmatpush1.msra.mxu0 0.0
    %795 = vmatprep.subr.mxu0 0.0
    %796 = vmatpush1.msra.mxu0 0.0
    %797 = vmatprep.subr.mxu0 0.0
    %798 = vmatpush1.msra.mxu0 0.0
    %799 = vmatprep.subr.mxu0 0.0
    %800 = vmatpush1.msra.mxu0 0.0
    %801 = vmatprep.subr.mxu0 0.0
    %802 = vmatpush1.msra.mxu0 0.0
    %803 = vmatprep.subr.mxu0 0.0
    %804 = vmatpush1.msra.mxu0 0.0
    %805 = vmatprep.subr.mxu0 0.0
    %806 = vmatpush1.msra.mxu0 0.0
    %807 = vmatprep.subr.mxu0 0.0
    %808 = vmatpush1.msra.mxu0 0.0
    %809 = vmatprep.subr.mxu0 0.0
    %810 = vmatpush1.msra.mxu0 0.0
    %811 = vmatprep.subr.mxu0 0.0
    %812 = vmatpush1.msra.mxu0 0.0
    %813 = vmatprep.subr.mxu0 0.0
    %814 = vmatpush1.msra.mxu0 0.0
    %815 = vmatprep.subr.mxu0 0.0
    %816 = vmatpush1.msra.mxu0 0.0
    %817 = vmatprep.subr.mxu0 0.0
    %818 = vmatpush1.msra.mxu0 0.0
    %819 = vmatprep.subr.mxu0 0.0
    %820 = vmatpush1.msra.mxu0 0.0
    %821 = vmatprep.subr.mxu0 0.0
    %822 = vmatpush1.msra.mxu0 0.0
    %823 = vmatprep.subr.mxu0 0.0
    %824 = vmatpush1.msra.mxu0 0.0
    %825 = vmatprep.subr.mxu0 0.0
    %826 = vmatpush1.msra.mxu0 0.0
    %827 = vmatprep.subr.mxu0 0.0
    %828 = vmatpush1.msra.mxu0 0.0
    %829 = vmatprep.subr.mxu0 0.0
    %830 = vmatpush1.msra.mxu0 0.0
    %831 = vmatprep.subr.mxu0 0.0
    %832 = vmatpush1.msra.mxu0 0.0
    %833 = vmatprep.subr.mxu0 0.0
    %834 = vmatpush1.msra.mxu0 0.0
    %835 = vmatprep.subr.mxu0 0.0
    %836 = vmatpush1.msra.mxu0 0.0
    %837 = vmatprep.subr.mxu0 0.0
    %838 = vmatpush1.msra.mxu0 0.0
    %839 = vmatprep.subr.mxu0 0.0
    %840 = vmatpush1.msra.mxu0 0.0
    %841 = vmatprep.subr.mxu0 0.0
    %842 = vmatpush1.msra.mxu0 0.0
    %843 = vmatprep.subr.mxu0 0.0
    %844 = vmatpush1.msra.mxu0 0.0
    %845 = vmatprep.subr.mxu0 0.0
    %846 = vmatpush1.msra.mxu0 0.0
    %847 = vmatprep.mubr.f32.mxu0 0.0
    %848 = vmatmul.mubr.f32.gmra.mrb[0].mxu0 %v781
    %v849 = vpop.f32.mrb[0].mxu0
    %v850 = vadd.f32 0.0, %v849
    %v851 = vpop.f32.mrb[0].mxu0
    %852 = vdwg.mxu0
    %v854 = vrot.slane %v850, 2
    %v856 = vadd.f32 %v141, %v854
    %v857 = vmul.f32 %v856, 0.5
    %v858 = vsel %vm57, %v856, %v857
    %v859 = vtanh.pop %v858
    %v860 = vmul.f32 %v859, 0.5
    %v861 = vadd.f32 %v860, 0.5
    %v862 = vsel %vm57, %v859, %v861
    %v864 = vrot.slane %v770, 7
    %v866 = vmul.f32 %v862, %v864
    %868 = vrot.lane.b32.xlu0 %v862, 108
    %v869 = vpop.permute.xlu0 %868
    %v871 = vmul.f32 %v862, %v869
    %873 = vrot.lane.b32.xlu0 %v871, 10
    %v874 = vpop.permute.xlu0 %873
    %v876 = vadd.f32 %v866, %v874
    %v877 = vtanh.pop %v876
    %879 = vrot.lane.b32.xlu0 %v877, 20
    %v880 = vpop.permute.xlu0 %879
    %v882 = vmul.f32 %v862, %v880
    %v884 = vrot.slane %v882, 6
    %885 = vrot.lane.b32.xlu0 %v884, 98
    %v886 = vpop.permute.xlu0 %885
    %v887 = vsel %vm146, %v886, 0
    %889 = vmatprep.subr.mxu0 0.0
    %890 = vmatpush1.msra.mxu0 %v144
    %891 = vmatprep.subr.mxu0 0.0
    %892 = vmatpush1.msra.mxu0 %v152
    %893 = vmatprep.subr.mxu0 0.0
    %894 = vmatpush1.msra.mxu0 0.0
    %895 = vmatprep.subr.mxu0 0.0
    %896 = vmatpush1.msra.mxu0 0.0
    %897 = vmatprep.subr.mxu0 0.0
    %898 = vmatpush1.msra.mxu0 0.0
    %899 = vmatprep.subr.mxu0 0.0
    %900 = vmatpush1.msra.mxu0 0.0
    %901 = vmatprep.subr.mxu0 0.0
    %902 = vmatpush1.msra.mxu0 0.0
    %903 = vmatprep.subr.mxu0 0.0
    %904 = vmatpush1.msra.mxu0 0.0
    %905 = vmatprep.subr.mxu0 0.0
    %906 = vmatpush1.msra.mxu0 0.0
    %907 = vmatprep.subr.mxu0 0.0
    %908 = vmatpush1.msra.mxu0 0.0
    %909 = vmatprep.subr.mxu0 0.0
    %910 = vmatpush1.msra.mxu0 0.0
    %911 = vmatprep.subr.mxu0 0.0
    %912 = vmatpush1.msra.mxu0 0.0
    %913 = vmatprep.subr.mxu0 0.0
    %914 = vmatpush1.msra.mxu0 0.0
    %915 = vmatprep.subr.mxu0 0.0
    %916 = vmatpush1.msra.mxu0 0.0
    %917 = vmatprep.subr.mxu0 0.0
    %918 = vmatpush1.msra.mxu0 0.0
    %919 = vmatprep.subr.mxu0 0.0
    %920 = vmatpush1.msra.mxu0 0.0
    %921 = vmatprep.subr.mxu0 0.0
    %922 = vmatpush1.msra.mxu0 0.0
    %923 = vmatprep.subr.mxu0 0.0
    %924 = vmatpush1.msra.mxu0 0.0
    %925 = vmatprep.subr.mxu0 0.0
    %926 = vmatpush1.msra.mxu0 0.0
    %927 = vmatprep.subr.mxu0 0.0
    %928 = vmatpush1.msra.mxu0 0.0
    %929 = vmatprep.subr.mxu0 0.0
    %930 = vmatpush1.msra.mxu0 0.0
    %931 = vmatprep.subr.mxu0 0.0
    %932 = vmatpush1.msra.mxu0 0.0
    %933 = vmatprep.subr.mxu0 0.0
    %934 = vmatpush1.msra.mxu0 0.0
    %935 = vmatprep.subr.mxu0 0.0
    %936 = vmatpush1.msra.mxu0 0.0
    %937 = vmatprep.subr.mxu0 0.0
    %938 = vmatpush1.msra.mxu0 0.0
    %939 = vmatprep.subr.mxu0 0.0
    %940 = vmatpush1.msra.mxu0 0.0
    %941 = vmatprep.subr.mxu0 0.0
    %942 = vmatpush1.msra.mxu0 0.0
    %943 = vmatprep.subr.mxu0 0.0
    %944 = vmatpush1.msra.mxu0 0.0
    %945 = vmatprep.subr.mxu0 0.0
    %946 = vmatpush1.msra.mxu0 0.0
    %947 = vmatprep.subr.mxu0 0.0
    %948 = vmatpush1.msra.mxu0 0.0
    %949 = vmatprep.subr.mxu0 0.0
    %950 = vmatpush1.msra.mxu0 0.0
    %951 = vmatprep.subr.mxu0 0.0
    %952 = vmatpush1.msra.mxu0 0.0
    %953 = vmatprep.mubr.f32.mxu0 0.0
    %954 = vmatmul.mubr.f32.gmra.mrb[0].mxu0 %v887
    %v955 = vpop.f32.mrb[0].mxu0
    %v956 = vadd.f32 0.0, %v955
    %v957 = vpop.f32.mrb[0].mxu0
    %958 = vdwg.mxu0
    %v960 = vrot.slane %v956, 1
    %v962 = vadd.f32 %v141, %v960
    %v963 = vmul.f32 %v962, 0.5
    %v964 = vsel %vm57, %v962, %v963
    %v965 = vtanh.pop %v964
    %v966 = vmul.f32 %v965, 0.5
    %v967 = vadd.f32 %v966, 0.5
    %v968 = vsel %vm57, %v965, %v967
    %v970 = vrot.slane %v876, 7
    %v972 = vmul.f32 %v968, %v970
    %974 = vrot.lane.b32.xlu0 %v968, 108
    %v975 = vpop.permute.xlu0 %974
    %v977 = vmul.f32 %v968, %v975
    %979 = vrot.lane.b32.xlu0 %v977, 10
    %v980 = vpop.permute.xlu0 %979
    %v982 = vadd.f32 %v972, %v980
    %v983 = vtanh.pop %v982
    %985 = vrot.lane.b32.xlu0 %v983, 20
    %v986 = vpop.permute.xlu0 %985
    %v988 = vmul.f32 %v968, %v986
    %vm989 = vcmask 1040384
    %v990 = vsel %vm989, %v247, %v352
    %v991 = vsel %vm150, %v990, %v458
    %vm992 = vcmask 1042432
    %v993 = vsel %vm992, %v991, %v564
    %vm994 = vcmask 1043456
    %v995 = vsel %vm994, %v993, %v670
    %vm996 = vcmask 1044480
    %v997 = vsel %vm996, %v995, %v776
    %vm998 = vcmask 1045504
    %v999 = vsel %vm998, %v997, %v882
    %vm1000 = vcmask 1046528
    %v1001 = vsel %vm1000, %v999, %v988
    %v1003 = vrot.slane %v988, 7
    %v1005 = vrot.slane %v882, 5
    %v1007 = vrot.slane %v776, 3
    %v1009 = vrot.slane %v670, 1
    %v1011 = vrot.slane %v564, 7
    %v1013 = vrot.slane %v458, 5
    %v1015 = vrot.slane %v352, 3
    %v1017 = vrot.slane %v247, 1
    %v1019 = vsel %vm989, %v1003, %v1005
    %v1020 = vsel %vm150, %v1019, %v1007
    %v1021 = vsel %vm992, %v1020, %v1009
    %v1022 = vsel %vm994, %v1021, %v1011
    %v1023 = vsel %vm996, %v1022, %v1013
    %v1024 = vsel %vm998, %v1023, %v1015
    %v1025 = vsel %vm1000, %v1024, %v1017
    %1027 = vrot.lane.b32.xlu0 %v1001, 98
    %v1028 = vpop.permute.xlu0 %1027
    %1031 = vrot.lane.b32.xlu0 %v1025, 98
    %v1032 = vpop.permute.xlu0 %1031
    %1034 = vrot.lane.b32.xlu0 %v1025, 108
    %v1035 = vpop.permute.xlu0 %1034
    %1037 = vrot.lane.b32.xlu0 %v1001, 108
    %v1038 = vpop.permute.xlu0 %1037
    %vm1040 = vcmask 39936
    %v1041 = vsel %vm1040, %v1028, %v1032
    %v1042 = vsel %vm146, %v1041, %v1035
    %vm1043 = vcmask 121856
    %v1044 = vsel %vm1043, %v1042, %v1038
    %v1045 = vld [vmem:[%s2] sm:$0xff]
    %v1046 = vld [vmem:[%s2 + $0x8] sm:$0xff]
    %v1047 = vld [vmem:[%s2 + $0x10] sm:$0xf]
    %s1048 = scalar_lea.vmem [#allocation5], 1
    %v1049 = vld [vmem:[%s1048] sm:$0x1]
    %v1051 = vlaneseq
    %v1052 = vshrl.u32 %v1051, 7
    %v1053 = vsub.s32 0, %v1052
    %v1054 = vrot.slane %v1049, %v1053
    %vm1056 = vcmask 162816
    %v1058 = vsel %vm1056, %v1044, 0
    %v1061 = vsel %vm994, %v1047, 0
    %1063 = vmatprep.subr.mxu0 0.0
    %1064 = vmatpush1.msra.mxu0 %v1045
    %1065 = vmatprep.subr.mxu0 0.0
    %1066 = vmatpush1.msra.mxu0 %v1046
    %1067 = vmatprep.subr.mxu0 0.0
    %1068 = vmatpush1.msra.mxu0 %v1061
    %1069 = vmatprep.subr.mxu0 0.0
    %1070 = vmatpush1.msra.mxu0 0.0
    %1071 = vmatprep.subr.mxu0 0.0
    %1072 = vmatpush1.msra.mxu0 0.0
    %1073 = vmatprep.subr.mxu0 0.0
    %1074 = vmatpush1.msra.mxu0 0.0
    %1075 = vmatprep.subr.mxu0 0.0
    %1076 = vmatpush1.msra.mxu0 0.0
    %1077 = vmatprep.subr.mxu0 0.0
    %1078 = vmatpush1.msra.mxu0 0.0
    %1079 = vmatprep.subr.mxu0 0.0
    %1080 = vmatpush1.msra.mxu0 0.0
    %1081 = vmatprep.subr.mxu0 0.0
    %1082 = vmatpush1.msra.mxu0 0.0
    %1083 = vmatprep.subr.mxu0 0.0
    %1084 = vmatpush1.msra.mxu0 0.0
    %1085 = vmatprep.subr.mxu0 0.0
    %1086 = vmatpush1.msra.mxu0 0.0
    %1087 = vmatprep.subr.mxu0 0.0
    %1088 = vmatpush1.msra.mxu0 0.0
    %1089 = vmatprep.subr.mxu0 0.0
    %1090 = vmatpush1.msra.mxu0 0.0
    %1091 = vmatprep.subr.mxu0 0.0
    %1092 = vmatpush1.msra.mxu0 0.0
    %1093 = vmatprep.subr.mxu0 0.0
    %1094 = vmatpush1.msra.mxu0 0.0
    %1095 = vmatprep.subr.mxu0 0.0
    %1096 = vmatpush1.msra.mxu0 0.0
    %1097 = vmatprep.subr.mxu0 0.0
    %1098 = vmatpush1.msra.mxu0 0.0
    %1099 = vmatprep.subr.mxu0 0.0
    %1100 = vmatpush1.msra.mxu0 0.0
    %1101 = vmatprep.subr.mxu0 0.0
    %1102 = vmatpush1.msra.mxu0 0.0
    %1103 = vmatprep.subr.mxu0 0.0
    %1104 = vmatpush1.msra.mxu0 0.0
    %1105 = vmatprep.subr.mxu0 0.0
    %1106 = vmatpush1.msra.mxu0 0.0
    %1107 = vmatprep.subr.mxu0 0.0
    %1108 = vmatpush1.msra.mxu0 0.0
    %1109 = vmatprep.subr.mxu0 0.0
    %1110 = vmatpush1.msra.mxu0 0.0
    %1111 = vmatprep.subr.mxu0 0.0
    %1112 = vmatpush1.msra.mxu0 0.0
    %1113 = vmatprep.subr.mxu0 0.0
    %1114 = vmatpush1.msra.mxu0 0.0
    %1115 = vmatprep.subr.mxu0 0.0
    %1116 = vmatpush1.msra.mxu0 0.0
    %1117 = vmatprep.subr.mxu0 0.0
    %1118 = vmatpush1.msra.mxu0 0.0
    %1119 = vmatprep.subr.mxu0 0.0
    %1120 = vmatpush1.msra.mxu0 0.0
    %1121 = vmatprep.subr.mxu0 0.0
    %1122 = vmatpush1.msra.mxu0 0.0
    %1123 = vmatprep.subr.mxu0 0.0
    %1124 = vmatpush1.msra.mxu0 0.0
    %1125 = vmatprep.subr.mxu0 0.0
    %1126 = vmatpush1.msra.mxu0 0.0
    %1127 = vmatprep.mubr.f32.mxu0 0.0
    %1128 = vmatmul.mubr.f32.gmra.mrb[0].mxu0 %v1058
    %v1129 = vpop.f32.mrb[0].mxu0
    %v1130 = vadd.f32 %v1054, %v1129
    %v1131 = vpop.f32.mrb[0].mxu0
    %1132 = vdwg.mxu0
    %s1133 = scalar_lea.vmem %s3, 16
    %v1134 = vld [vmem:[%s1133] sm:$0xff]
    %v1135 = vld [vmem:[%s1133 + $0x8] sm:$0x3]
    %v1137 = vsel %vm150, %v1135, 0
    %1139 = vmatprep.subr.mxu0 0.0
    %1140 = vmatpush1.msra.mxu0 %v1134
    %1141 = vmatprep.subr.mxu0 0.0
    %1142 = vmatpush1.msra.mxu0 %v1137
    %1143 = vmatprep.subr.mxu0 0.0
    %1144 = vmatpush1.msra.mxu0 0.0
    %1145 = vmatprep.subr.mxu0 0.0
    %1146 = vmatpush1.msra.mxu0 0.0
    %1147 = vmatprep.subr.mxu0 0.0
    %1148 = vmatpush1.msra.mxu0 0.0
    %1149 = vmatprep.subr.mxu0 0.0
    %1150 = vmatpush1.msra.mxu0 0.0
    %1151 = vmatprep.subr.mxu0 0.0
    %1152 = vmatpush1.msra.mxu0 0.0
    %1153 = vmatprep.subr.mxu0 0.0
    %1154 = vmatpush1.msra.mxu0 0.0
    %1155 = vmatprep.subr.mxu0 0.0
    %1156 = vmatpush1.msra.mxu0 0.0
    %1157 = vmatprep.subr.mxu0 0.0
    %1158 = vmatpush1.msra.mxu0 0.0
    %1159 = vmatprep.subr.mxu0 0.0
    %1160 = vmatpush1.msra.mxu0 0.0
    %1161 = vmatprep.subr.mxu0 0.0
    %1162 = vmatpush1.msra.mxu0 0.0
    %1163 = vmatprep.subr.mxu0 0.0
    %1164 = vmatpush1.msra.mxu0 0.0
    %1165 = vmatprep.subr.mxu0 0.0
    %1166 = vmatpush1.msra.mxu0 0.0
    %1167 = vmatprep.subr.mxu0 0.0
    %1168 = vmatpush1.msra.mxu0 0.0
    %1169 = vmatprep.subr.mxu0 0.0
    %1170 = vmatpush1.msra.mxu0 0.0
    %1171 = vmatprep.subr.mxu0 0.0
    %1172 = vmatpush1.msra.mxu0 0.0
    %1173 = vmatprep.subr.mxu0 0.0
    %1174 = vmatpush1.msra.mxu0 0.0
    %1175 = vmatprep.subr.mxu0 0.0
    %1176 = vmatpush1.msra.mxu0 0.0
    %1177 = vmatprep.subr.mxu0 0.0
    %1178 = vmatpush1.msra.mxu0 0.0
    %1179 = vmatprep.subr.mxu0 0.0
    %1180 = vmatpush1.msra.mxu0 0.0
    %1181 = vmatprep.subr.mxu0 0.0
    %1182 = vmatpush1.msra.mxu0 0.0
    %1183 = vmatprep.subr.mxu0 0.0
    %1184 = vmatpush1.msra.mxu0 0.0
    %1185 = vmatprep.subr.mxu0 0.0
    %1186 = vmatpush1.msra.mxu0 0.0
    %1187 = vmatprep.subr.mxu0 0.0
    %1188 = vmatpush1.msra.mxu0 0.0
    %1189 = vmatprep.subr.mxu0 0.0
    %1190 = vmatpush1.msra.mxu0 0.0
    %1191 = vmatprep.subr.mxu0 0.0
    %1192 = vmatpush1.msra.mxu0 0.0
    %1193 = vmatprep.subr.mxu0 0.0
    %1194 = vmatpush1.msra.mxu0 0.0
    %1195 = vmatprep.subr.mxu0 0.0
    %1196 = vmatpush1.msra.mxu0 0.0
    %1197 = vmatprep.subr.mxu0 0.0
    %1198 = vmatpush1.msra.mxu0 0.0
    %1199 = vmatprep.subr.mxu0 0.0
    %1200 = vmatpush1.msra.mxu0 0.0
    %1201 = vmatprep.subr.mxu0 0.0
    %1202 = vmatpush1.msra.mxu0 0.0
    %1203 = vmatprep.mubr.f32.mxu0 0.0
    %1204 = vmatmul.mubr.f32.gmra.mrb[0].mxu0 %v148
    %v1205 = vpop.f32.mrb[0].mxu0
    %v1206 = vadd.f32 0.0, %v1205
    %v1207 = vpop.f32.mrb[0].mxu0
    %1208 = vdwg.mxu0
    %v1209 = vadd.f32 %v1130, %v1206
    %v1210 = vmul.f32 %v1209, 0.5
    %v1211 = vsel %vm57, %v1209, %v1210
    %v1212 = vtanh.pop %v1211
    %v1213 = vmul.f32 %v1212, 0.5
    %v1214 = vadd.f32 %v1213, 0.5
    %v1215 = vsel %vm57, %v1212, %v1214
    %v1216 = vmul.f32 %v1215, 0.0
    %1218 = vrot.lane.b32.xlu0 %v1215, 108
    %v1219 = vpop.permute.xlu0 %1218
    %v1221 = vmul.f32 %v1215, %v1219
    %1223 = vrot.lane.b32.xlu0 %v1221, 10
    %v1224 = vpop.permute.xlu0 %1223
    %v1226 = vadd.f32 %v1216, %v1224
    %v1227 = vtanh.pop %v1226
    %1229 = vrot.lane.b32.xlu0 %v1227, 20
    %v1230 = vpop.permute.xlu0 %1229
    %v1232 = vmul.f32 %v1215, %v1230
    %1234 = vrot.lane.b32.xlu0 %v1232, 98
    %v1235 = vpop.permute.xlu0 %1234
    %v1236 = vsel %vm146, %v1235, 0
    %1238 = vmatprep.subr.mxu0 0.0
    %1239 = vmatpush1.msra.mxu0 %v1134
    %1240 = vmatprep.subr.mxu0 0.0
    %1241 = vmatpush1.msra.mxu0 %v1137
    %1242 = vmatprep.subr.mxu0 0.0
    %1243 = vmatpush1.msra.mxu0 0.0
    %1244 = vmatprep.subr.mxu0 0.0
    %1245 = vmatpush1.msra.mxu0 0.0
    %1246 = vmatprep.subr.mxu0 0.0
    %1247 = vmatpush1.msra.mxu0 0.0
    %1248 = vmatprep.subr.mxu0 0.0
    %1249 = vmatpush1.msra.mxu0 0.0
    %1250 = vmatprep.subr.mxu0 0.0
    %1251 = vmatpush1.msra.mxu0 0.0
    %1252 = vmatprep.subr.mxu0 0.0
    %1253 = vmatpush1.msra.mxu0 0.0
    %1254 = vmatprep.subr.mxu0 0.0
    %1255 = vmatpush1.msra.mxu0 0.0
    %1256 = vmatprep.subr.mxu0 0.0
    %1257 = vmatpush1.msra.mxu0 0.0
    %1258 = vmatprep.subr.mxu0 0.0
    %1259 = vmatpush1.msra.mxu0 0.0
    %1260 = vmatprep.subr.mxu0 0.0
    %1261 = vmatpush1.msra.mxu0 0.0
    %1262 = vmatprep.subr.mxu0 0.0
    %1263 = vmatpush1.msra.mxu0 0.0
    %1264 = vmatprep.subr.mxu0 0.0
    %1265 = vmatpush1.msra.mxu0 0.0
    %1266 = vmatprep.subr.mxu0 0.0
    %1267 = vmatpush1.msra.mxu0 0.0
    %1268 = vmatprep.subr.mxu0 0.0
    %1269 = vmatpush1.msra.mxu0 0.0
    %1270 = vmatprep.subr.mxu0 0.0
    %1271 = vmatpush1.msra.mxu0 0.0
    %1272 = vmatprep.subr.mxu0 0.0
    %1273 = vmatpush1.msra.mxu0 0.0
    %1274 = vmatprep.subr.mxu0 0.0
    %1275 = vmatpush1.msra.mxu0 0.0
    %1276 = vmatprep.subr.mxu0 0.0
    %1277 = vmatpush1.msra.mxu0 0.0
    %1278 = vmatprep.subr.mxu0 0.0
    %1279 = vmatpush1.msra.mxu0 0.0
    %1280 = vmatprep.subr.mxu0 0.0
    %1281 = vmatpush1.msra.mxu0 0.0
    %1282 = vmatprep.subr.mxu0 0.0
    %1283 = vmatpush1.msra.mxu0 0.0
    %1284 = vmatprep.subr.mxu0 0.0
    %1285 = vmatpush1.msra.mxu0 0.0
    %1286 = vmatprep.subr.mxu0 0.0
    %1287 = vmatpush1.msra.mxu0 0.0
    %1288 = vmatprep.subr.mxu0 0.0
    %1289 = vmatpush1.msra.mxu0 0.0
    %1290 = vmatprep.subr.mxu0 0.0
    %1291 = vmatpush1.msra.mxu0 0.0
    %1292 = vmatprep.subr.mxu0 0.0
    %1293 = vmatpush1.msra.mxu0 0.0
    %1294 = vmatprep.subr.mxu0 0.0
    %1295 = vmatpush1.msra.mxu0 0.0
    %1296 = vmatprep.subr.mxu0 0.0
    %1297 = vmatpush1.msra.mxu0 0.0
    %1298 = vmatprep.subr.mxu0 0.0
    %1299 = vmatpush1.msra.mxu0 0.0
    %1300 = vmatprep.subr.mxu0 0.0
    %1301 = vmatpush1.msra.mxu0 0.0
    %1302 = vmatprep.mubr.f32.mxu0 0.0
    %1303 = vmatmul.mubr.f32.gmra.mrb[0].mxu0 %v1236
    %v1304 = vpop.f32.mrb[0].mxu0
    %v1305 = vadd.f32 0.0, %v1304
    %v1306 = vpop.f32.mrb[0].mxu0
    %1307 = vdwg.mxu0
    %v1309 = vrot.slane %v1305, 7
    %v1311 = vadd.f32 %v1130, %v1309
    %v1312 = vmul.f32 %v1311, 0.5
    %v1313 = vsel %vm57, %v1311, %v1312
    %v1314 = vtanh.pop %v1313
    %v1315 = vmul.f32 %v1314, 0.5
    %v1316 = vadd.f32 %v1315, 0.5
    %v1317 = vsel %vm57, %v1314, %v1316
    %v1319 = vrot.slane %v1226, 7
    %v1321 = vmul.f32 %v1317, %v1319
    %1323 = vrot.lane.b32.xlu0 %v1317, 108
    %v1324 = vpop.permute.xlu0 %1323
    %v1326 = vmul.f32 %v1317, %v1324
    %1328 = vrot.lane.b32.xlu0 %v1326, 10
    %v1329 = vpop.permute.xlu0 %1328
    %v1331 = vadd.f32 %v1321, %v1329
    %v1332 = vtanh.pop %v1331
    %1334 = vrot.lane.b32.xlu0 %v1332, 20
    %v1335 = vpop.permute.xlu0 %1334
    %v1337 = vmul.f32 %v1317, %v1335
    %v1339 = vrot.slane %v1337, 1
    %1340 = vrot.lane.b32.xlu0 %v1339, 98
    %v1341 = vpop.permute.xlu0 %1340
    %v1342 = vsel %vm146, %v1341, 0
    %1344 = vmatprep.subr.mxu0 0.0
    %1345 = vmatpush1.msra.mxu0 %v1134
    %1346 = vmatprep.subr.mxu0 0.0
    %1347 = vmatpush1.msra.mxu0 %v1137
    %1348 = vmatprep.subr.mxu0 0.0
    %1349 = vmatpush1.msra.mxu0 0.0
    %1350 = vmatprep.subr.mxu0 0.0
    %1351 = vmatpush1.msra.mxu0 0.0
    %1352 = vmatprep.subr.mxu0 0.0
    %1353 = vmatpush1.msra.mxu0 0.0
    %1354 = vmatprep.subr.mxu0 0.0
    %1355 = vmatpush1.msra.mxu0 0.0
    %1356 = vmatprep.subr.mxu0 0.0
    %1357 = vmatpush1.msra.mxu0 0.0
    %1358 = vmatprep.subr.mxu0 0.0
    %1359 = vmatpush1.msra.mxu0 0.0
    %1360 = vmatprep.subr.mxu0 0.0
    %1361 = vmatpush1.msra.mxu0 0.0
    %1362 = vmatprep.subr.mxu0 0.0
    %1363 = vmatpush1.msra.mxu0 0.0
    %1364 = vmatprep.subr.mxu0 0.0
    %1365 = vmatpush1.msra.mxu0 0.0
    %1366 = vmatprep.subr.mxu0 0.0
    %1367 = vmatpush1.msra.mxu0 0.0
    %1368 = vmatprep.subr.mxu0 0.0
    %1369 = vmatpush1.msra.mxu0 0.0
    %1370 = vmatprep.subr.mxu0 0.0
    %1371 = vmatpush1.msra.mxu0 0.0
    %1372 = vmatprep.subr.mxu0 0.0
    %1373 = vmatpush1.msra.mxu0 0.0
    %1374 = vmatprep.subr.mxu0 0.0
    %1375 = vmatpush1.msra.mxu0 0.0
    %1376 = vmatprep.subr.mxu0 0.0
    %1377 = vmatpush1.msra.mxu0 0.0
    %1378 = vmatprep.subr.mxu0 0.0
    %1379 = vmatpush1.msra.mxu0 0.0
    %1380 = vmatprep.subr.mxu0 0.0
    %1381 = vmatpush1.msra.mxu0 0.0
    %1382 = vmatprep.subr.mxu0 0.0
    %1383 = vmatpush1.msra.mxu0 0.0
    %1384 = vmatprep.subr.mxu0 0.0
    %1385 = vmatpush1.msra.mxu0 0.0
    %1386 = vmatprep.subr.mxu0 0.0
    %1387 = vmatpush1.msra.mxu0 0.0
    %1388 = vmatprep.subr.mxu0 0.0
    %1389 = vmatpush1.msra.mxu0 0.0
    %1390 = vmatprep.subr.mxu0 0.0
    %1391 = vmatpush1.msra.mxu0 0.0
    %1392 = vmatprep.subr.mxu0 0.0
    %1393 = vmatpush1.msra.mxu0 0.0
    %1394 = vmatprep.subr.mxu0 0.0
    %1395 = vmatpush1.msra.mxu0 0.0
    %1396 = vmatprep.subr.mxu0 0.0
    %1397 = vmatpush1.msra.mxu0 0.0
    %1398 = vmatprep.subr.mxu0 0.0
    %1399 = vmatpush1.msra.mxu0 0.0
    %1400 = vmatprep.subr.mxu0 0.0
    %1401 = vmatpush1.msra.mxu0 0.0
    %1402 = vmatprep.subr.mxu0 0.0
    %1403 = vmatpush1.msra.mxu0 0.0
    %1404 = vmatprep.subr.mxu0 0.0
    %1405 = vmatpush1.msra.mxu0 0.0
    %1406 = vmatprep.subr.mxu0 0.0
    %1407 = vmatpush1.msra.mxu0 0.0
    %1408 = vmatprep.mubr.f32.mxu0 0.0
    %1409 = vmatmul.mubr.f32.gmra.mrb[0].mxu0 %v1342
    %v1410 = vpop.f32.mrb[0].mxu0
    %v1411 = vadd.f32 0.0, %v1410
    %v1412 = vpop.f32.mrb[0].mxu0
    %1413 = vdwg.mxu0
    %v1415 = vrot.slane %v1411, 6
    %v1417 = vadd.f32 %v1130, %v1415
    %v1418 = vmul.f32 %v1417, 0.5
    %v1419 = vsel %vm57, %v1417, %v1418
    %v1420 = vtanh.pop %v1419
    %v1421 = vmul.f32 %v1420, 0.5
    %v1422 = vadd.f32 %v1421, 0.5
    %v1423 = vsel %vm57, %v1420, %v1422
    %v1425 = vrot.slane %v1331, 7
    %v1427 = vmul.f32 %v1423, %v1425
    %1429 = vrot.lane.b32.xlu0 %v1423, 108
    %v1430 = vpop.permute.xlu0 %1429
    %v1432 = vmul.f32 %v1423, %v1430
    %1434 = vrot.lane.b32.xlu0 %v1432, 10
    %v1435 = vpop.permute.xlu0 %1434
    %v1437 = vadd.f32 %v1427, %v1435
    %v1438 = vtanh.pop %v1437
    %1440 = vrot.lane.b32.xlu0 %v1438, 20
    %v1441 = vpop.permute.xlu0 %1440
    %v1443 = vmul.f32 %v1423, %v1441
    %v1445 = vrot.slane %v1443, 2
    %1446 = vrot.lane.b32.xlu0 %v1445, 98
    %v1447 = vpop.permute.xlu0 %1446
    %v1448 = vsel %vm146, %v1447, 0
    %1450 = vmatprep.subr.mxu0 0.0
    %1451 = vmatpush1.msra.mxu0 %v1134
    %1452 = vmatprep.subr.mxu0 0.0
    %1453 = vmatpush1.msra.mxu0 %v1137
    %1454 = vmatprep.subr.mxu0 0.0
    %1455 = vmatpush1.msra.mxu0 0.0
    %1456 = vmatprep.subr.mxu0 0.0
    %1457 = vmatpush1.msra.mxu0 0.0
    %1458 = vmatprep.subr.mxu0 0.0
    %1459 = vmatpush1.msra.mxu0 0.0
    %1460 = vmatprep.subr.mxu0 0.0
    %1461 = vmatpush1.msra.mxu0 0.0
    %1462 = vmatprep.subr.mxu0 0.0
    %1463 = vmatpush1.msra.mxu0 0.0
    %1464 = vmatprep.subr.mxu0 0.0
    %1465 = vmatpush1.msra.mxu0 0.0
    %1466 = vmatprep.subr.mxu0 0.0
    %1467 = vmatpush1.msra.mxu0 0.0
    %1468 = vmatprep.subr.mxu0 0.0
    %1469 = vmatpush1.msra.mxu0 0.0
    %1470 = vmatprep.subr.mxu0 0.0
    %1471 = vmatpush1.msra.mxu0 0.0
    %1472 = vmatprep.subr.mxu0 0.0
    %1473 = vmatpush1.msra.mxu0 0.0
    %1474 = vmatprep.subr.mxu0 0.0
    %1475 = vmatpush1.msra.mxu0 0.0
    %1476 = vmatprep.subr.mxu0 0.0
    %1477 = vmatpush1.msra.mxu0 0.0
    %1478 = vmatprep.subr.mxu0 0.0
    %1479 = vmatpush1.msra.mxu0 0.0
    %1480 = vmatprep.subr.mxu0 0.0
    %1481 = vmatpush1.msra.mxu0 0.0
    %1482 = vmatprep.subr.mxu0 0.0
    %1483 = vmatpush1.msra.mxu0 0.0
    %1484 = vmatprep.subr.mxu0 0.0
    %1485 = vmatpush1.msra.mxu0 0.0
    %1486 = vmatprep.subr.mxu0 0.0
    %1487 = vmatpush1.msra.mxu0 0.0
    %1488 = vmatprep.subr.mxu0 0.0
    %1489 = vmatpush1.msra.mxu0 0.0
    %1490 = vmatprep.subr.mxu0 0.0
    %1491 = vmatpush1.msra.mxu0 0.0
    %1492 = vmatprep.subr.mxu0 0.0
    %1493 = vmatpush1.msra.mxu0 0.0
    %1494 = vmatprep.subr.mxu0 0.0
    %1495 = vmatpush1.msra.mxu0 0.0
    %1496 = vmatprep.subr.mxu0 0.0
    %1497 = vmatpush1.msra.mxu0 0.0
    %1498 = vmatprep.subr.mxu0 0.0
    %1499 = vmatpush1.msra.mxu0 0.0
    %1500 = vmatprep.subr.mxu0 0.0
    %1501 = vmatpush1.msra.mxu0 0.0
    %1502 = vmatprep.subr.mxu0 0.0
    %1503 = vmatpush1.msra.mxu0 0.0
    %1504 = vmatprep.subr.mxu0 0.0
    %1505 = vmatpush1.msra.mxu0 0.0
    %1506 = vmatprep.subr.mxu0 0.0
    %1507 = vmatpush1.msra.mxu0 0.0
    %1508 = vmatprep.subr.mxu0 0.0
    %1509 = vmatpush1.msra.mxu0 0.0
    %1510 = vmatprep.subr.mxu0 0.0
    %1511 = vmatpush1.msra.mxu0 0.0
    %1512 = vmatprep.subr.mxu0 0.0
    %1513 = vmatpush1.msra.mxu0 0.0
    %1514 = vmatprep.mubr.f32.mxu0 0.0
    %1515 = vmatmul.mubr.f32.gmra.mrb[0].mxu0 %v1448
    %v1516 = vpop.f32.mrb[0].mxu0
    %v1517 = vadd.f32 0.0, %v1516
    %v1518 = vpop.f32.mrb[0].mxu0
    %1519 = vdwg.mxu0
    %v1521 = vrot.slane %v1517, 5
    %v1523 = vadd.f32 %v1130, %v1521
    %v1524 = vmul.f32 %v1523, 0.5
    %v1525 = vsel %vm57, %v1523, %v1524
    %v1526 = vtanh.pop %v1525
    %v1527 = vmul.f32 %v1526, 0.5
    %v1528 = vadd.f32 %v1527, 0.5
    %v1529 = vsel %vm57, %v1526, %v1528
    %v1531 = vrot.slane %v1437, 7
    %v1533 = vmul.f32 %v1529, %v1531
    %1535 = vrot.lane.b32.xlu0 %v1529, 108
    %v1536 = vpop.permute.xlu0 %1535
    %v1538 = vmul.f32 %v1529, %v1536
    %1540 = vrot.lane.b32.xlu0 %v1538, 10
    %v1541 = vpop.permute.xlu0 %1540
    %v1543 = vadd.f32 %v1533, %v1541
    %v1544 = vtanh.pop %v1543
    %1546 = vrot.lane.b32.xlu0 %v1544, 20
    %v1547 = vpop.permute.xlu0 %1546
    %v1549 = vmul.f32 %v1529, %v1547
    %v1551 = vrot.slane %v1549, 3
    %1552 = vrot.lane.b32.xlu0 %v1551, 98
    %v1553 = vpop.permute.xlu0 %1552
    %v1554 = vsel %vm146, %v1553, 0
    %1556 = vmatprep.subr.mxu0 0.0
    %1557 = vmatpush1.msra.mxu0 %v1134
    %1558 = vmatprep.subr.mxu0 0.0
    %1559 = vmatpush1.msra.mxu0 %v1137
    %1560 = vmatprep.subr.mxu0 0.0
    %1561 = vmatpush1.msra.mxu0 0.0
    %1562 = vmatprep.subr.mxu0 0.0
    %1563 = vmatpush1.msra.mxu0 0.0
    %1564 = vmatprep.subr.mxu0 0.0
    %1565 = vmatpush1.msra.mxu0 0.0
    %1566 = vmatprep.subr.mxu0 0.0
    %1567 = vmatpush1.msra.mxu0 0.0
    %1568 = vmatprep.subr.mxu0 0.0
    %1569 = vmatpush1.msra.mxu0 0.0
    %1570 = vmatprep.subr.mxu0 0.0
    %1571 = vmatpush1.msra.mxu0 0.0
    %1572 = vmatprep.subr.mxu0 0.0
    %1573 = vmatpush1.msra.mxu0 0.0
    %1574 = vmatprep.subr.mxu0 0.0
    %1575 = vmatpush1.msra.mxu0 0.0
    %1576 = vmatprep.subr.mxu0 0.0
    %1577 = vmatpush1.msra.mxu0 0.0
    %1578 = vmatprep.subr.mxu0 0.0
    %1579 = vmatpush1.msra.mxu0 0.0
    %1580 = vmatprep.subr.mxu0 0.0
    %1581 = vmatpush1.msra.mxu0 0.0
    %1582 = vmatprep.subr.mxu0 0.0
    %1583 = vmatpush1.msra.mxu0 0.0
    %1584 = vmatprep.subr.mxu0 0.0
    %1585 = vmatpush1.msra.mxu0 0.0
    %1586 = vmatprep.subr.mxu0 0.0
    %1587 = vmatpush1.msra.mxu0 0.0
    %1588 = vmatprep.subr.mxu0 0.0
    %1589 = vmatpush1.msra.mxu0 0.0
    %1590 = vmatprep.subr.mxu0 0.0
    %1591 = vmatpush1.msra.mxu0 0.0
    %1592 = vmatprep.subr.mxu0 0.0
    %1593 = vmatpush1.msra.mxu0 0.0
    %1594 = vmatprep.subr.mxu0 0.0
    %1595 = vmatpush1.msra.mxu0 0.0
    %1596 = vmatprep.subr.mxu0 0.0
    %1597 = vmatpush1.msra.mxu0 0.0
    %1598 = vmatprep.subr.mxu0 0.0
    %1599 = vmatpush1.msra.mxu0 0.0
    %1600 = vmatprep.subr.mxu0 0.0
    %1601 = vmatpush1.msra.mxu0 0.0
    %1602 = vmatprep.subr.mxu0 0.0
    %1603 = vmatpush1.msra.mxu0 0.0
    %1604 = vmatprep.subr.mxu0 0.0
    %1605 = vmatpush1.msra.mxu0 0.0
    %1606 = vmatprep.subr.mxu0 0.0
    %1607 = vmatpush1.msra.mxu0 0.0
    %1608 = vmatprep.subr.mxu0 0.0
    %1609 = vmatpush1.msra.mxu0 0.0
    %1610 = vmatprep.subr.mxu0 0.0
    %1611 = vmatpush1.msra.mxu0 0.0
    %1612 = vmatprep.subr.mxu0 0.0
    %1613 = vmatpush1.msra.mxu0 0.0
    %1614 = vmatprep.subr.mxu0 0.0
    %1615 = vmatpush1.msra.mxu0 0.0
    %1616 = vmatprep.subr.mxu0 0.0
    %1617 = vmatpush1.msra.mxu0 0.0
    %1618 = vmatprep.subr.mxu0 0.0
    %1619 = vmatpush1.msra.mxu0 0.0
    %1620 = vmatprep.mubr.f32.mxu0 0.0
    %1621 = vmatmul.mubr.f32.gmra.mrb[0].mxu0 %v1554
    %v1622 = vpop.f32.mrb[0].mxu0
    %v1623 = vadd.f32 0.0, %v1622
    %v1624 = vpop.f32.mrb[0].mxu0
    %1625 = vdwg.mxu0
    %v1627 = vrot.slane %v1623, 4
    %v1629 = vadd.f32 %v1130, %v1627
    %v1630 = vmul.f32 %v1629, 0.5
    %v1631 = vsel %vm57, %v1629, %v1630
    %v1632 = vtanh.pop %v1631
    %v1633 = vmul.f32 %v1632, 0.5
    %v1634 = vadd.f32 %v1633, 0.5
    %v1635 = vsel %vm57, %v1632, %v1634
    %v1637 = vrot.slane %v1543, 7
    %v1639 = vmul.f32 %v1635, %v1637
    %1641 = vrot.lane.b32.xlu0 %v1635, 108
    %v1642 = vpop.permute.xlu0 %1641
    %v1644 = vmul.f32 %v1635, %v1642
    %1646 = vrot.lane.b32.xlu0 %v1644, 10
    %v1647 = vpop.permute.xlu0 %1646
    %v1649 = vadd.f32 %v1639, %v1647
    %v1650 = vtanh.pop %v1649
    %1652 = vrot.lane.b32.xlu0 %v1650, 20
    %v1653 = vpop.permute.xlu0 %1652
    %v1655 = vmul.f32 %v1635, %v1653
    %v1657 = vrot.slane %v1655, 4
    %1658 = vrot.lane.b32.xlu0 %v1657, 98
    %v1659 = vpop.permute.xlu0 %1658
    %v1660 = vsel %vm146, %v1659, 0
    %1662 = vmatprep.subr.mxu0 0.0
    %1663 = vmatpush1.msra.mxu0 %v1134
    %1664 = vmatprep.subr.mxu0 0.0
    %1665 = vmatpush1.msra.mxu0 %v1137
    %1666 = vmatprep.subr.mxu0 0.0
    %1667 = vmatpush1.msra.mxu0 0.0
    %1668 = vmatprep.subr.mxu0 0.0
    %1669 = vmatpush1.msra.mxu0 0.0
    %1670 = vmatprep.subr.mxu0 0.0
    %1671 = vmatpush1.msra.mxu0 0.0
    %1672 = vmatprep.subr.mxu0 0.0
    %1673 = vmatpush1.msra.mxu0 0.0
    %1674 = vmatprep.subr.mxu0 0.0
    %1675 = vmatpush1.msra.mxu0 0.0
    %1676 = vmatprep.subr.mxu0 0.0
    %1677 = vmatpush1.msra.mxu0 0.0
    %1678 = vmatprep.subr.mxu0 0.0
    %1679 = vmatpush1.msra.mxu0 0.0
    %1680 = vmatprep.subr.mxu0 0.0
    %1681 = vmatpush1.msra.mxu0 0.0
    %1682 = vmatprep.subr.mxu0 0.0
    %1683 = vmatpush1.msra.mxu0 0.0
    %1684 = vmatprep.subr.mxu0 0.0
    %1685 = vmatpush1.msra.mxu0 0.0
    %1686 = vmatprep.subr.mxu0 0.0
    %1687 = vmatpush1.msra.mxu0 0.0
    %1688 = vmatprep.subr.mxu0 0.0
    %1689 = vmatpush1.msra.mxu0 0.0
    %1690 = vmatprep.subr.mxu0 0.0
    %1691 = vmatpush1.msra.mxu0 0.0
    %1692 = vmatprep.subr.mxu0 0.0
    %1693 = vmatpush1.msra.mxu0 0.0
    %1694 = vmatprep.subr.mxu0 0.0
    %1695 = vmatpush1.msra.mxu0 0.0
    %1696 = vmatprep.subr.mxu0 0.0
    %1697 = vmatpush1.msra.mxu0 0.0
    %1698 = vmatprep.subr.mxu0 0.0
    %1699 = vmatpush1.msra.mxu0 0.0
    %1700 = vmatprep.subr.mxu0 0.0
    %1701 = vmatpush1.msra.mxu0 0.0
    %1702 = vmatprep.subr.mxu0 0.0
    %1703 = vmatpush1.msra.mxu0 0.0
    %1704 = vmatprep.subr.mxu0 0.0
    %1705 = vmatpush1.msra.mxu0 0.0
    %1706 = vmatprep.subr.mxu0 0.0
    %1707 = vmatpush1.msra.mxu0 0.0
    %1708 = vmatprep.subr.mxu0 0.0
    %1709 = vmatpush1.msra.mxu0 0.0
    %1710 = vmatprep.subr.mxu0 0.0
    %1711 = vmatpush1.msra.mxu0 0.0
    %1712 = vmatprep.subr.mxu0 0.0
    %1713 = vmatpush1.msra.mxu0 0.0
    %1714 = vmatprep.subr.mxu0 0.0
    %1715 = vmatpush1.msra.mxu0 0.0
    %1716 = vmatprep.subr.mxu0 0.0
    %1717 = vmatpush1.msra.mxu0 0.0
    %1718 = vmatprep.subr.mxu0 0.0
    %1719 = vmatpush1.msra.mxu0 0.0
    %1720 = vmatprep.subr.mxu0 0.0
    %1721 = vmatpush1.msra.mxu0 0.0
    %1722 = vmatprep.subr.mxu0 0.0
    %1723 = vmatpush1.msra.mxu0 0.0
    %1724 = vmatprep.subr.mxu0 0.0
    %1725 = vmatpush1.msra.mxu0 0.0
    %1726 = vmatprep.mubr.f32.mxu0 0.0
    %1727 = vmatmul.mubr.f32.gmra.mrb[0].mxu0 %v1660
    %v1728 = vpop.f32.mrb[0].mxu0
    %v1729 = vadd.f32 0.0, %v1728
    %v1730 = vpop.f32.mrb[0].mxu0
    %1731 = vdwg.mxu0
    %v1733 = vrot.slane %v1729, 3
    %v1735 = vadd.f32 %v1130, %v1733
    %v1736 = vmul.f32 %v1735, 0.5
    %v1737 = vsel %vm57, %v1735, %v1736
    %v1738 = vtanh.pop %v1737
    %v1739 = vmul.f32 %v1738, 0.5
    %v1740 = vadd.f32 %v1739, 0.5
    %v1741 = vsel %vm57, %v1738, %v1740
    %v1743 = vrot.slane %v1649, 7
    %v1745 = vmul.f32 %v1741, %v1743
    %1747 = vrot.lane.b32.xlu0 %v1741, 108
    %v1748 = vpop.permute.xlu0 %1747
    %v1750 = vmul.f32 %v1741, %v1748
    %1752 = vrot.lane.b32.xlu0 %v1750, 10
    %v1753 = vpop.permute.xlu0 %1752
    %v1755 = vadd.f32 %v1745, %v1753
    %v1756 = vtanh.pop %v1755
    %1758 = vrot.lane.b32.xlu0 %v1756, 20
    %v1759 = vpop.permute.xlu0 %1758
    %v1761 = vmul.f32 %v1741, %v1759
    %v1763 = vrot.slane %v1761, 5
    %1764 = vrot.lane.b32.xlu0 %v1763, 98
    %v1765 = vpop.permute.xlu0 %1764
    %v1766 = vsel %vm146, %v1765, 0
    %1768 = vmatprep.subr.mxu0 0.0
    %1769 = vmatpush1.msra.mxu0 %v1134
    %1770 = vmatprep.subr.mxu0 0.0
    %1771 = vmatpush1.msra.mxu0 %v1137
    %1772 = vmatprep.subr.mxu0 0.0
    %1773 = vmatpush1.msra.mxu0 0.0
    %1774 = vmatprep.subr.mxu0 0.0
    %1775 = vmatpush1.msra.mxu0 0.0
    %1776 = vmatprep.subr.mxu0 0.0
    %1777 = vmatpush1.msra.mxu0 0.0
    %1778 = vmatprep.subr.mxu0 0.0
    %1779 = vmatpush1.msra.mxu0 0.0
    %1780 = vmatprep.subr.mxu0 0.0
    %1781 = vmatpush1.msra.mxu0 0.0
    %1782 = vmatprep.subr.mxu0 0.0
    %1783 = vmatpush1.msra.mxu0 0.0
    %1784 = vmatprep.subr.mxu0 0.0
    %1785 = vmatpush1.msra.mxu0 0.0
    %1786 = vmatprep.subr.mxu0 0.0
    %1787 = vmatpush1.msra.mxu0 0.0
    %1788 = vmatprep.subr.mxu0 0.0
    %1789 = vmatpush1.msra.mxu0 0.0
    %1790 = vmatprep.subr.mxu0 0.0
    %1791 = vmatpush1.msra.mxu0 0.0
    %1792 = vmatprep.subr.mxu0 0.0
    %1793 = vmatpush1.msra.mxu0 0.0
    %1794 = vmatprep.subr.mxu0 0.0
    %1795 = vmatpush1.msra.mxu0 0.0
    %1796 = vmatprep.subr.mxu0 0.0
    %1797 = vmatpush1.msra.mxu0 0.0
    %1798 = vmatprep.subr.mxu0 0.0
    %1799 = vmatpush1.msra.mxu0 0.0
    %1800 = vmatprep.subr.mxu0 0.0
    %1801 = vmatpush1.msra.mxu0 0.0
    %1802 = vmatprep.subr.mxu0 0.0
    %1803 = vmatpush1.msra.mxu0 0.0
    %1804 = vmatprep.subr.mxu0 0.0
    %1805 = vmatpush1.msra.mxu0 0.0
    %1806 = vmatprep.subr.mxu0 0.0
    %1807 = vmatpush1.msra.mxu0 0.0
    %1808 = vmatprep.subr.mxu0 0.0
    %1809 = vmatpush1.msra.mxu0 0.0
    %1810 = vmatprep.subr.mxu0 0.0
    %1811 = vmatpush1.msra.mxu0 0.0
    %1812 = vmatprep.subr.mxu0 0.0
    %1813 = vmatpush1.msra.mxu0 0.0
    %1814 = vmatprep.subr.mxu0 0.0
    %1815 = vmatpush1.msra.mxu0 0.0
    %1816 = vmatprep.subr.mxu0 0.0
    %1817 = vmatpush1.msra.mxu0 0.0
    %1818 = vmatprep.subr.mxu0 0.0
    %1819 = vmatpush1.msra.mxu0 0.0
    %1820 = vmatprep.subr.mxu0 0.0
    %1821 = vmatpush1.msra.mxu0 0.0
    %1822 = vmatprep.subr.mxu0 0.0
    %1823 = vmatpush1.msra.mxu0 0.0
    %1824 = vmatprep.subr.mxu0 0.0
    %1825 = vmatpush1.msra.mxu0 0.0
    %1826 = vmatprep.subr.mxu0 0.0
    %1827 = vmatpush1.msra.mxu0 0.0
    %1828 = vmatprep.subr.mxu0 0.0
    %1829 = vmatpush1.msra.mxu0 0.0
    %1830 = vmatprep.subr.mxu0 0.0
    %1831 = vmatpush1.msra.mxu0 0.0
    %1832 = vmatprep.mubr.f32.mxu0 0.0
    %1833 = vmatmul.mubr.f32.gmra.mrb[0].mxu0 %v1766
    %v1834 = vpop.f32.mrb[0].mxu0
    %v1835 = vadd.f32 0.0, %v1834
    %v1836 = vpop.f32.mrb[0].mxu0
    %1837 = vdwg.mxu0
    %v1839 = vrot.slane %v1835, 2
    %v1841 = vadd.f32 %v1130, %v1839
    %v1842 = vmul.f32 %v1841, 0.5
    %v1843 = vsel %vm57, %v1841, %v1842
    %v1844 = vtanh.pop %v1843
    %v1845 = vmul.f32 %v1844, 0.5
    %v1846 = vadd.f32 %v1845, 0.5
    %v1847 = vsel %vm57, %v1844, %v1846
    %v1849 = vrot.slane %v1755, 7
    %v1851 = vmul.f32 %v1847, %v1849
    %1853 = vrot.lane.b32.xlu0 %v1847, 108
    %v1854 = vpop.permute.xlu0 %1853
    %v1856 = vmul.f32 %v1847, %v1854
    %1858 = vrot.lane.b32.xlu0 %v1856, 10
    %v1859 = vpop.permute.xlu0 %1858
    %v1861 = vadd.f32 %v1851, %v1859
    %v1862 = vtanh.pop %v1861
    %1864 = vrot.lane.b32.xlu0 %v1862, 20
    %v1865 = vpop.permute.xlu0 %1864
    %v1867 = vmul.f32 %v1847, %v1865
    %v1869 = vrot.slane %v1867, 6
    %1870 = vrot.lane.b32.xlu0 %v1869, 98
    %v1871 = vpop.permute.xlu0 %1870
    %v1872 = vsel %vm146, %v1871, 0
    %1874 = vmatprep.subr.mxu0 0.0
    %1875 = vmatpush1.msra.mxu0 %v1134
    %1876 = vmatprep.subr.mxu0 0.0
    %1877 = vmatpush1.msra.mxu0 %v1137
    %1878 = vmatprep.subr.mxu0 0.0
    %1879 = vmatpush1.msra.mxu0 0.0
    %1880 = vmatprep.subr.mxu0 0.0
    %1881 = vmatpush1.msra.mxu0 0.0
    %1882 = vmatprep.subr.mxu0 0.0
    %1883 = vmatpush1.msra.mxu0 0.0
    %1884 = vmatprep.subr.mxu0 0.0
    %1885 = vmatpush1.msra.mxu0 0.0
    %1886 = vmatprep.subr.mxu0 0.0
    %1887 = vmatpush1.msra.mxu0 0.0
    %1888 = vmatprep.subr.mxu0 0.0
    %1889 = vmatpush1.msra.mxu0 0.0
    %1890 = vmatprep.subr.mxu0 0.0
    %1891 = vmatpush1.msra.mxu0 0.0
    %1892 = vmatprep.subr.mxu0 0.0
    %1893 = vmatpush1.msra.mxu0 0.0
    %1894 = vmatprep.subr.mxu0 0.0
    %1895 = vmatpush1.msra.mxu0 0.0
    %1896 = vmatprep.subr.mxu0 0.0
    %1897 = vmatpush1.msra.mxu0 0.0
    %1898 = vmatprep.subr.mxu0 0.0
    %1899 = vmatpush1.msra.mxu0 0.0
    %1900 = vmatprep.subr.mxu0 0.0
    %1901 = vmatpush1.msra.mxu0 0.0
    %1902 = vmatprep.subr.mxu0 0.0
    %1903 = vmatpush1.msra.mxu0 0.0
    %1904 = vmatprep.subr.mxu0 0.0
    %1905 = vmatpush1.msra.mxu0 0.0
    %1906 = vmatprep.subr.mxu0 0.0
    %1907 = vmatpush1.msra.mxu0 0.0
    %1908 = vmatprep.subr.mxu0 0.0
    %1909 = vmatpush1.msra.mxu0 0.0
    %1910 = vmatprep.subr.mxu0 0.0
    %1911 = vmatpush1.msra.mxu0 0.0
    %1912 = vmatprep.subr.mxu0 0.0
    %1913 = vmatpush1.msra.mxu0 0.0
    %1914 = vmatprep.subr.mxu0 0.0
    %1915 = vmatpush1.msra.mxu0 0.0
    %1916 = vmatprep.subr.mxu0 0.0
    %1917 = vmatpush1.msra.mxu0 0.0
    %1918 = vmatprep.subr.mxu0 0.0
    %1919 = vmatpush1.msra.mxu0 0.0
    %1920 = vmatprep.subr.mxu0 0.0
    %1921 = vmatpush1.msra.mxu0 0.0
    %1922 = vmatprep.subr.mxu0 0.0
    %1923 = vmatpush1.msra.mxu0 0.0
    %1924 = vmatprep.subr.mxu0 0.0
    %1925 = vmatpush1.msra.mxu0 0.0
    %1926 = vmatprep.subr.mxu0 0.0
    %1927 = vmatpush1.msra.mxu0 0.0
    %1928 = vmatprep.subr.mxu0 0.0
    %1929 = vmatpush1.msra.mxu0 0.0
    %1930 = vmatprep.subr.mxu0 0.0
    %1931 = vmatpush1.msra.mxu0 0.0
    %1932 = vmatprep.subr.mxu0 0.0
    %1933 = vmatpush1.msra.mxu0 0.0
    %1934 = vmatprep.subr.mxu0 0.0
    %1935 = vmatpush1.msra.mxu0 0.0
    %1936 = vmatprep.subr.mxu0 0.0
    %1937 = vmatpush1.msra.mxu0 0.0
    %1938 = vmatprep.mubr.f32.mxu0 0.0
    %1939 = vmatmul.mubr.f32.gmra.mrb[0].mxu0 %v1872
    %v1940 = vpop.f32.mrb[0].mxu0
    %v1941 = vadd.f32 0.0, %v1940
    %v1942 = vpop.f32.mrb[0].mxu0
    %1943 = vdwg.mxu0
    %v1945 = vrot.slane %v1941, 1
    %v1947 = vadd.f32 %v1130, %v1945
    %v1948 = vmul.f32 %v1947, 0.5
    %v1949 = vsel %vm57, %v1947, %v1948
    %v1950 = vtanh.pop %v1949
    %v1951 = vmul.f32 %v1950, 0.5
    %v1952 = vadd.f32 %v1951, 0.5
    %v1953 = vsel %vm57, %v1950, %v1952
    %v1955 = vrot.slane %v1861, 7
    %v1957 = vmul.f32 %v1953, %v1955
    %1959 = vrot.lane.b32.xlu0 %v1953, 108
    %v1960 = vpop.permute.xlu0 %1959
    %v1962 = vmul.f32 %v1953, %v1960
    %1964 = vrot.lane.b32.xlu0 %v1962, 10
    %v1965 = vpop.permute.xlu0 %1964
    %v1967 = vadd.f32 %v1957, %v1965
    %v1968 = vtanh.pop %v1967
    %1970 = vrot.lane.b32.xlu0 %v1968, 20
    %v1971 = vpop.permute.xlu0 %1970
    %v1973 = vmul.f32 %v1953, %v1971
    %v1974 = vsel %vm989, %v1232, %v1337
    %v1975 = vsel %vm150, %v1974, %v1443
    %v1976 = vsel %vm992, %v1975, %v1549
    %v1977 = vsel %vm994, %v1976, %v1655
    %v1978 = vsel %vm996, %v1977, %v1761
    %v1979 = vsel %vm998, %v1978, %v1867
    %v1980 = vsel %vm1000, %v1979, %v1973
    %v1982 = vrot.slane %v1973, 7
    %v1984 = vrot.slane %v1867, 5
    %v1986 = vrot.slane %v1761, 3
    %v1988 = vrot.slane %v1655, 1
    %v1990 = vrot.slane %v1549, 7
    %v1992 = vrot.slane %v1443, 5
    %v1994 = vrot.slane %v1337, 3
    %v1996 = vrot.slane %v1232, 1
    %v1998 = vsel %vm989, %v1982, %v1984
    %v1999 = vsel %vm150, %v1998, %v1986
    %v2000 = vsel %vm992, %v1999, %v1988
    %v2001 = vsel %vm994, %v2000, %v1990
    %v2002 = vsel %vm996, %v2001, %v1992
    %v2003 = vsel %vm998, %v2002, %v1994
    %v2004 = vsel %vm1000, %v2003, %v1996
    %2006 = vrot.lane.b32.xlu0 %v1980, 98
    %v2007 = vpop.permute.xlu0 %2006
    %2010 = vrot.lane.b32.xlu0 %v2004, 98
    %v2011 = vpop.permute.xlu0 %2010
    %2013 = vrot.lane.b32.xlu0 %v2004, 108
    %v2014 = vpop.permute.xlu0 %2013
    %2016 = vrot.lane.b32.xlu0 %v1980, 108
    %v2017 = vpop.permute.xlu0 %2016
    %v2019 = vsel %vm1040, %v2007, %v2011
    %v2020 = vsel %vm146, %v2019, %v2014
    %v2021 = vsel %vm1043, %v2020, %v2017
    %s2022 = scalar_lea.vmem %s2, 24
    %v2023 = vld [vmem:[%s2022] sm:$0xff]
    %v2024 = vld [vmem:[%s2022 + $0x8] sm:$0xff]
    %v2025 = vld [vmem:[%s2022 + $0x10] sm:$0xf]
    %s2026 = scalar_lea.vmem [#allocation5], 2
    %v2027 = vld [vmem:[%s2026] sm:$0x1]
    %v2029 = vlaneseq
    %v2030 = vshrl.u32 %v2029, 7
    %v2031 = vsub.s32 0, %v2030
    %v2032 = vrot.slane %v2027, %v2031
    %v2035 = vsel %vm1056, %v2021, 0
    %v2038 = vsel %vm994, %v2025, 0
    %2040 = vmatprep.subr.mxu0 0.0
    %2041 = vmatpush1.msra.mxu0 %v2023
    %2042 = vmatprep.subr.mxu0 0.0
    %2043 = vmatpush1.msra.mxu0 %v2024
    %2044 = vmatprep.subr.mxu0 0.0
    %2045 = vmatpush1.msra.mxu0 %v2038
    %2046 = vmatprep.subr.mxu0 0.0
    %2047 = vmatpush1.msra.mxu0 0.0
    %2048 = vmatprep.subr.mxu0 0.0
    %2049 = vmatpush1.msra.mxu0 0.0
    %2050 = vmatprep.subr.mxu0 0.0
    %2051 = vmatpush1.msra.mxu0 0.0
    %2052 = vmatprep.subr.mxu0 0.0
    %2053 = vmatpush1.msra.mxu0 0.0
    %2054 = vmatprep.subr.mxu0 0.0
    %2055 = vmatpush1.msra.mxu0 0.0
    %2056 = vmatprep.subr.mxu0 0.0
    %2057 = vmatpush1.msra.mxu0 0.0
    %2058 = vmatprep.subr.mxu0 0.0
    %2059 = vmatpush1.msra.mxu0 0.0
    %2060 = vmatprep.subr.mxu0 0.0
    %2061 = vmatpush1.msra.mxu0 0.0
    %2062 = vmatprep.subr.mxu0 0.0
    %2063 = vmatpush1.msra.mxu0 0.0
    %2064 = vmatprep.subr.mxu0 0.0
    %2065 = vmatpush1.msra.mxu0 0.0
    %2066 = vmatprep.subr.mxu0 0.0
    %2067 = vmatpush1.msra.mxu0 0.0
    %2068 = vmatprep.subr.mxu0 0.0
    %2069 = vmatpush1.msra.mxu0 0.0
    %2070 = vmatprep.subr.mxu0 0.0
    %2071 = vmatpush1.msra.mxu0 0.0
    %2072 = vmatprep.subr.mxu0 0.0
    %2073 = vmatpush1.msra.mxu0 0.0
    %2074 = vmatprep.subr.mxu0 0.0
    %2075 = vmatpush1.msra.mxu0 0.0
    %2076 = vmatprep.subr.mxu0 0.0
    %2077 = vmatpush1.msra.mxu0 0.0
    %2078 = vmatprep.subr.mxu0 0.0
    %2079 = vmatpush1.msra.mxu0 0.0
    %2080 = vmatprep.subr.mxu0 0.0
    %2081 = vmatpush1.msra.mxu0 0.0
    %2082 = vmatprep.subr.mxu0 0.0
    %2083 = vmatpush1.msra.mxu0 0.0
    %2084 = vmatprep.subr.mxu0 0.0
    %2085 = vmatpush1.msra.mxu0 0.0
    %2086 = vmatprep.subr.mxu0 0.0
    %2087 = vmatpush1.msra.mxu0 0.0
    %2088 = vmatprep.subr.mxu0 0.0
    %2089 = vmatpush1.msra.mxu0 0.0
    %2090 = vmatprep.subr.mxu0 0.0
    %2091 = vmatpush1.msra.mxu0 0.0
    %2092 = vmatprep.subr.mxu0 0.0
    %2093 = vmatpush1.msra.mxu0 0.0
    %2094 = vmatprep.subr.mxu0 0.0
    %2095 = vmatpush1.msra.mxu0 0.0
    %2096 = vmatprep.subr.mxu0 0.0
    %2097 = vmatpush1.msra.mxu0 0.0
    %2098 = vmatprep.subr.mxu0 0.0
    %2099 = vmatpush1.msra.mxu0 0.0
    %2100 = vmatprep.subr.mxu0 0.0
    %2101 = vmatpush1.msra.mxu0 0.0
    %2102 = vmatprep.subr.mxu0 0.0
    %2103 = vmatpush1.msra.mxu0 0.0
    %2104 = vmatprep.mubr.f32.mxu0 0.0
    %2105 = vmatmul.mubr.f32.gmra.mrb[0].mxu0 %v2035
    %v2106 = vpop.f32.mrb[0].mxu0
    %v2107 = vadd.f32 %v2032, %v2106
    %v2108 = vpop.f32.mrb[0].mxu0
    %2109 = vdwg.mxu0
    %s2110 = scalar_lea.vmem %s3, 32
    %v2111 = vld [vmem:[%s2110] sm:$0xff]
    %v2112 = vld [vmem:[%s2110 + $0x8] sm:$0x3]
    %v2114 = vsel %vm150, %v2112, 0
    %2116 = vmatprep.subr.mxu0 0.0
    %2117 = vmatpush1.msra.mxu0 %v2111
    %2118 = vmatprep.subr.mxu0 0.0
    %2119 = vmatpush1.msra.mxu0 %v2114
    %2120 = vmatprep.subr.mxu0 0.0
    %2121 = vmatpush1.msra.mxu0 0.0
    %2122 = vmatprep.subr.mxu0 0.0
    %2123 = vmatpush1.msra.mxu0 0.0
    %2124 = vmatprep.subr.mxu0 0.0
    %2125 = vmatpush1.msra.mxu0 0.0
    %2126 = vmatprep.subr.mxu0 0.0
    %2127 = vmatpush1.msra.mxu0 0.0
    %2128 = vmatprep.subr.mxu0 0.0
    %2129 = vmatpush1.msra.mxu0 0.0
    %2130 = vmatprep.subr.mxu0 0.0
    %2131 = vmatpush1.msra.mxu0 0.0
    %2132 = vmatprep.subr.mxu0 0.0
    %2133 = vmatpush1.msra.mxu0 0.0
    %2134 = vmatprep.subr.mxu0 0.0
    %2135 = vmatpush1.msra.mxu0 0.0
    %2136 = vmatprep.subr.mxu0 0.0
    %2137 = vmatpush1.msra.mxu0 0.0
    %2138 = vmatprep.subr.mxu0 0.0
    %2139 = vmatpush1.msra.mxu0 0.0
    %2140 = vmatprep.subr.mxu0 0.0
    %2141 = vmatpush1.msra.mxu0 0.0
    %2142 = vmatprep.subr.mxu0 0.0
    %2143 = vmatpush1.msra.mxu0 0.0
    %2144 = vmatprep.subr.mxu0 0.0
    %2145 = vmatpush1.msra.mxu0 0.0
    %2146 = vmatprep.subr.mxu0 0.0
    %2147 = vmatpush1.msra.mxu0 0.0
    %2148 = vmatprep.subr.mxu0 0.0
    %2149 = vmatpush1.msra.mxu0 0.0
    %2150 = vmatprep.subr.mxu0 0.0
    %2151 = vmatpush1.msra.mxu0 0.0
    %2152 = vmatprep.subr.mxu0 0.0
    %2153 = vmatpush1.msra.mxu0 0.0
    %2154 = vmatprep.subr.mxu0 0.0
    %2155 = vmatpush1.msra.mxu0 0.0
    %2156 = vmatprep.subr.mxu0 0.0
    %2157 = vmatpush1.msra.mxu0 0.0
    %2158 = vmatprep.subr.mxu0 0.0
    %2159 = vmatpush1.msra.mxu0 0.0
    %2160 = vmatprep.subr.mxu0 0.0
    %2161 = vmatpush1.msra.mxu0 0.0
    %2162 = vmatprep.subr.mxu0 0.0
    %2163 = vmatpush1.msra.mxu0 0.0
    %2164 = vmatprep.subr.mxu0 0.0
    %2165 = vmatpush1.msra.mxu0 0.0
    %2166 = vmatprep.subr.mxu0 0.0
    %2167 = vmatpush1.msra.mxu0 0.0
    %2168 = vmatprep.subr.mxu0 0.0
    %2169 = vmatpush1.msra.mxu0 0.0
    %2170 = vmatprep.subr.mxu0 0.0
    %2171 = vmatpush1.msra.mxu0 0.0
    %2172 = vmatprep.subr.mxu0 0.0
    %2173 = vmatpush1.msra.mxu0 0.0
    %2174 = vmatprep.subr.mxu0 0.0
    %2175 = vmatpush1.msra.mxu0 0.0
    %2176 = vmatprep.subr.mxu0 0.0
    %2177 = vmatpush1.msra.mxu0 0.0
    %2178 = vmatprep.subr.mxu0 0.0
    %2179 = vmatpush1.msra.mxu0 0.0
    %2180 = vmatprep.mubr.f32.mxu0 0.0
    %2181 = vmatmul.mubr.f32.gmra.mrb[0].mxu0 %v148
    %v2182 = vpop.f32.mrb[0].mxu0
    %v2183 = vadd.f32 0.0, %v2182
    %v2184 = vpop.f32.mrb[0].mxu0
    %2185 = vdwg.mxu0
    %v2186 = vadd.f32 %v2107, %v2183
    %v2187 = vmul.f32 %v2186, 0.5
    %v2188 = vsel %vm57, %v2186, %v2187
    %v2189 = vtanh.pop %v2188
    %v2190 = vmul.f32 %v2189, 0.5
    %v2191 = vadd.f32 %v2190, 0.5
    %v2192 = vsel %vm57, %v2189, %v2191
    %v2193 = vmul.f32 %v2192, 0.0
    %2195 = vrot.lane.b32.xlu0 %v2192, 108
    %v2196 = vpop.permute.xlu0 %2195
    %v2198 = vmul.f32 %v2192, %v2196
    %2200 = vrot.lane.b32.xlu0 %v2198, 10
    %v2201 = vpop.permute.xlu0 %2200
    %v2203 = vadd.f32 %v2193, %v2201
    %v2204 = vtanh.pop %v2203
    %2206 = vrot.lane.b32.xlu0 %v2204, 20
    %v2207 = vpop.permute.xlu0 %2206
    %v2209 = vmul.f32 %v2192, %v2207
    %2211 = vrot.lane.b32.xlu0 %v2209, 98
    %v2212 = vpop.permute.xlu0 %2211
    %v2213 = vsel %vm146, %v2212, 0
    %2215 = vmatprep.subr.mxu0 0.0
    %2216 = vmatpush1.msra.mxu0 %v2111
    %2217 = vmatprep.subr.mxu0 0.0
    %2218 = vmatpush1.msra.mxu0 %v2114
    %2219 = vmatprep.subr.mxu0 0.0
    %2220 = vmatpush1.msra.mxu0 0.0
    %2221 = vmatprep.subr.mxu0 0.0
    %2222 = vmatpush1.msra.mxu0 0.0
    %2223 = vmatprep.subr.mxu0 0.0
    %2224 = vmatpush1.msra.mxu0 0.0
    %2225 = vmatprep.subr.mxu0 0.0
    %2226 = vmatpush1.msra.mxu0 0.0
    %2227 = vmatprep.subr.mxu0 0.0
    %2228 = vmatpush1.msra.mxu0 0.0
    %2229 = vmatprep.subr.mxu0 0.0
    %2230 = vmatpush1.msra.mxu0 0.0
    %2231 = vmatprep.subr.mxu0 0.0
    %2232 = vmatpush1.msra.mxu0 0.0
    %2233 = vmatprep.subr.mxu0 0.0
    %2234 = vmatpush1.msra.mxu0 0.0
    %2235 = vmatprep.subr.mxu0 0.0
    %2236 = vmatpush1.msra.mxu0 0.0
    %2237 = vmatprep.subr.mxu0 0.0
    %2238 = vmatpush1.msra.mxu0 0.0
    %2239 = vmatprep.subr.mxu0 0.0
    %2240 = vmatpush1.msra.mxu0 0.0
    %2241 = vmatprep.subr.mxu0 0.0
    %2242 = vmatpush1.msra.mxu0 0.0
    %2243 = vmatprep.subr.mxu0 0.0
    %2244 = vmatpush1.msra.mxu0 0.0
    %2245 = vmatprep.subr.mxu0 0.0
    %2246 = vmatpush1.msra.mxu0 0.0
    %2247 = vmatprep.subr.mxu0 0.0
    %2248 = vmatpush1.msra.mxu0 0.0
    %2249 = vmatprep.subr.mxu0 0.0
    %2250 = vmatpush1.msra.mxu0 0.0
    %2251 = vmatprep.subr.mxu0 0.0
    %2252 = vmatpush1.msra.mxu0 0.0
    %2253 = vmatprep.subr.mxu0 0.0
    %2254 = vmatpush1.msra.mxu0 0.0
    %2255 = vmatprep.subr.mxu0 0.0
    %2256 = vmatpush1.msra.mxu0 0.0
    %2257 = vmatprep.subr.mxu0 0.0
    %2258 = vmatpush1.msra.mxu0 0.0
    %2259 = vmatprep.subr.mxu0 0.0
    %2260 = vmatpush1.msra.mxu0 0.0
    %2261 = vmatprep.subr.mxu0 0.0
    %2262 = vmatpush1.msra.mxu0 0.0
    %2263 = vmatprep.subr.mxu0 0.0
    %2264 = vmatpush1.msra.mxu0 0.0
    %2265 = vmatprep.subr.mxu0 0.0
    %2266 = vmatpush1.msra.mxu0 0.0
    %2267 = vmatprep.subr.mxu0 0.0
    %2268 = vmatpush1.msra.mxu0 0.0
    %2269 = vmatprep.subr.mxu0 0.0
    %2270 = vmatpush1.msra.mxu0 0.0
    %2271 = vmatprep.subr.mxu0 0.0
    %2272 = vmatpush1.msra.mxu0 0.0
    %2273 = vmatprep.subr.mxu0 0.0
    %2274 = vmatpush1.msra.mxu0 0.0
    %2275 = vmatprep.subr.mxu0 0.0
    %2276 = vmatpush1.msra.mxu0 0.0
    %2277 = vmatprep.subr.mxu0 0.0
    %2278 = vmatpush1.msra.mxu0 0.0
    %2279 = vmatprep.mubr.f32.mxu0 0.0
    %2280 = vmatmul.mubr.f32.gmra.mrb[0].mxu0 %v2213
    %v2281 = vpop.f32.mrb[0].mxu0
    %v2282 = vadd.f32 0.0, %v2281
    %v2283 = vpop.f32.mrb[0].mxu0
    %2284 = vdwg.mxu0
    %v2286 = vrot.slane %v2282, 7
    %v2288 = vadd.f32 %v2107, %v2286
    %v2289 = vmul.f32 %v2288, 0.5
    %v2290 = vsel %vm57, %v2288, %v2289
    %v2291 = vtanh.pop %v2290
    %v2292 = vmul.f32 %v2291, 0.5
    %v2293 = vadd.f32 %v2292, 0.5
    %v2294 = vsel %vm57, %v2291, %v2293
    %v2296 = vrot.slane %v2203, 7
    %v2298 = vmul.f32 %v2294, %v2296
    %2300 = vrot.lane.b32.xlu0 %v2294, 108
    %v2301 = vpop.permute.xlu0 %2300
    %v2303 = vmul.f32 %v2294, %v2301
    %2305 = vrot.lane.b32.xlu0 %v2303, 10
    %v2306 = vpop.permute.xlu0 %2305
    %v2308 = vadd.f32 %v2298, %v2306
    %v2309 = vtanh.pop %v2308
    %2311 = vrot.lane.b32.xlu0 %v2309, 20
    %v2312 = vpop.permute.xlu0 %2311
    %v2314 = vmul.f32 %v2294, %v2312
    %v2316 = vrot.slane %v2314, 1
    %2317 = vrot.lane.b32.xlu0 %v2316, 98
    %v2318 = vpop.permute.xlu0 %2317
    %v2319 = vsel %vm146, %v2318, 0
    %2321 = vmatprep.subr.mxu0 0.0
    %2322 = vmatpush1.msra.mxu0 %v2111
    %2323 = vmatprep.subr.mxu0 0.0
    %2324 = vmatpush1.msra.mxu0 %v2114
    %2325 = vmatprep.subr.mxu0 0.0
    %2326 = vmatpush1.msra.mxu0 0.0
    %2327 = vmatprep.subr.mxu0 0.0
    %2328 = vmatpush1.msra.mxu0 0.0
    %2329 = vmatprep.subr.mxu0 0.0
    %2330 = vmatpush1.msra.mxu0 0.0
    %2331 = vmatprep.subr.mxu0 0.0
    %2332 = vmatpush1.msra.mxu0 0.0
    %2333 = vmatprep.subr.mxu0 0.0
    %2334 = vmatpush1.msra.mxu0 0.0
    %2335 = vmatprep.subr.mxu0 0.0
    %2336 = vmatpush1.msra.mxu0 0.0
    %2337 = vmatprep.subr.mxu0 0.0
    %2338 = vmatpush1.msra.mxu0 0.0
    %2339 = vmatprep.subr.mxu0 0.0
    %2340 = vmatpush1.msra.mxu0 0.0
    %2341 = vmatprep.subr.mxu0 0.0
    %2342 = vmatpush1.msra.mxu0 0.0
    %2343 = vmatprep.subr.mxu0 0.0
    %2344 = vmatpush1.msra.mxu0 0.0
    %2345 = vmatprep.subr.mxu0 0.0
    %2346 = vmatpush1.msra.mxu0 0.0
    %2347 = vmatprep.subr.mxu0 0.0
    %2348 = vmatpush1.msra.mxu0 0.0
    %2349 = vmatprep.subr.mxu0 0.0
    %2350 = vmatpush1.msra.mxu0 0.0
    %2351 = vmatprep.subr.mxu0 0.0
    %2352 = vmatpush1.msra.mxu0 0.0
    %2353 = vmatprep.subr.mxu0 0.0
    %2354 = vmatpush1.msra.mxu0 0.0
    %2355 = vmatprep.subr.mxu0 0.0
    %2356 = vmatpush1.msra.mxu0 0.0
    %2357 = vmatprep.subr.mxu0 0.0
    %2358 = vmatpush1.msra.mxu0 0.0
    %2359 = vmatprep.subr.mxu0 0.0
    %2360 = vmatpush1.msra.mxu0 0.0
    %2361 = vmatprep.subr.mxu0 0.0
    %2362 = vmatpush1.msra.mxu0 0.0
    %2363 = vmatprep.subr.mxu0 0.0
    %2364 = vmatpush1.msra.mxu0 0.0
    %2365 = vmatprep.subr.mxu0 0.0
    %2366 = vmatpush1.msra.mxu0 0.0
    %2367 = vmatprep.subr.mxu0 0.0
    %2368 = vmatpush1.msra.mxu0 0.0
    %2369 = vmatprep.subr.mxu0 0.0
    %2370 = vmatpush1.msra.mxu0 0.0
    %2371 = vmatprep.subr.mxu0 0.0
    %2372 = vmatpush1.msra.mxu0 0.0
    %2373 = vmatprep.subr.mxu0 0.0
    %2374 = vmatpush1.msra.mxu0 0.0
    %2375 = vmatprep.subr.mxu0 0.0
    %2376 = vmatpush1.msra.mxu0 0.0
    %2377 = vmatprep.subr.mxu0 0.0
    %2378 = vmatpush1.msra.mxu0 0.0
    %2379 = vmatprep.subr.mxu0 0.0
    %2380 = vmatpush1.msra.mxu0 0.0
    %2381 = vmatprep.subr.mxu0 0.0
    %2382 = vmatpush1.msra.mxu0 0.0
    %2383 = vmatprep.subr.mxu0 0.0
    %2384 = vmatpush1.msra.mxu0 0.0
    %2385 = vmatprep.mubr.f32.mxu0 0.0
    %2386 = vmatmul.mubr.f32.gmra.mrb[0].mxu0 %v2319
    %v2387 = vpop.f32.mrb[0].mxu0
    %v2388 = vadd.f32 0.0, %v2387
    %v2389 = vpop.f32.mrb[0].mxu0
    %2390 = vdwg.mxu0
    %v2392 = vrot.slane %v2388, 6
    %v2394 = vadd.f32 %v2107, %v2392
    %v2395 = vmul.f32 %v2394, 0.5
    %v2396 = vsel %vm57, %v2394, %v2395
    %v2397 = vtanh.pop %v2396
    %v2398 = vmul.f32 %v2397, 0.5
    %v2399 = vadd.f32 %v2398, 0.5
    %v2400 = vsel %vm57, %v2397, %v2399
    %v2402 = vrot.slane %v2308, 7
    %v2404 = vmul.f32 %v2400, %v2402
    %2406 = vrot.lane.b32.xlu0 %v2400, 108
    %v2407 = vpop.permute.xlu0 %2406
    %v2409 = vmul.f32 %v2400, %v2407
    %2411 = vrot.lane.b32.xlu0 %v2409, 10
    %v2412 = vpop.permute.xlu0 %2411
    %v2414 = vadd.f32 %v2404, %v2412
    %v2415 = vtanh.pop %v2414
    %2417 = vrot.lane.b32.xlu0 %v2415, 20
    %v2418 = vpop.permute.xlu0 %2417
    %v2420 = vmul.f32 %v2400, %v2418
    %v2422 = vrot.slane %v2420, 2
    %2423 = vrot.lane.b32.xlu0 %v2422, 98
    %v2424 = vpop.permute.xlu0 %2423
    %v2425 = vsel %vm146, %v2424, 0
    %2427 = vmatprep.subr.mxu0 0.0
    %2428 = vmatpush1.msra.mxu0 %v2111
    %2429 = vmatprep.subr.mxu0 0.0
    %2430 = vmatpush1.msra.mxu0 %v2114
    %2431 = vmatprep.subr.mxu0 0.0
    %2432 = vmatpush1.msra.mxu0 0.0
    %2433 = vmatprep.subr.mxu0 0.0
    %2434 = vmatpush1.msra.mxu0 0.0
    %2435 = vmatprep.subr.mxu0 0.0
    %2436 = vmatpush1.msra.mxu0 0.0
    %2437 = vmatprep.subr.mxu0 0.0
    %2438 = vmatpush1.msra.mxu0 0.0
    %2439 = vmatprep.subr.mxu0 0.0
    %2440 = vmatpush1.msra.mxu0 0.0
    %2441 = vmatprep.subr.mxu0 0.0
    %2442 = vmatpush1.msra.mxu0 0.0
    %2443 = vmatprep.subr.mxu0 0.0
    %2444 = vmatpush1.msra.mxu0 0.0
    %2445 = vmatprep.subr.mxu0 0.0
    %2446 = vmatpush1.msra.mxu0 0.0
    %2447 = vmatprep.subr.mxu0 0.0
    %2448 = vmatpush1.msra.mxu0 0.0
    %2449 = vmatprep.subr.mxu0 0.0
    %2450 = vmatpush1.msra.mxu0 0.0
    %2451 = vmatprep.subr.mxu0 0.0
    %2452 = vmatpush1.msra.mxu0 0.0
    %2453 = vmatprep.subr.mxu0 0.0
    %2454 = vmatpush1.msra.mxu0 0.0
    %2455 = vmatprep.subr.mxu0 0.0
    %2456 = vmatpush1.msra.mxu0 0.0
    %2457 = vmatprep.subr.mxu0 0.0
    %2458 = vmatpush1.msra.mxu0 0.0
    %2459 = vmatprep.subr.mxu0 0.0
    %2460 = vmatpush1.msra.mxu0 0.0
    %2461 = vmatprep.subr.mxu0 0.0
    %2462 = vmatpush1.msra.mxu0 0.0
    %2463 = vmatprep.subr.mxu0 0.0
    %2464 = vmatpush1.msra.mxu0 0.0
    %2465 = vmatprep.subr.mxu0 0.0
    %2466 = vmatpush1.msra.mxu0 0.0
    %2467 = vmatprep.subr.mxu0 0.0
    %2468 = vmatpush1.msra.mxu0 0.0
    %2469 = vmatprep.subr.mxu0 0.0
    %2470 = vmatpush1.msra.mxu0 0.0
    %2471 = vmatprep.subr.mxu0 0.0
    %2472 = vmatpush1.msra.mxu0 0.0
    %2473 = vmatprep.subr.mxu0 0.0
    %2474 = vmatpush1.msra.mxu0 0.0
    %2475 = vmatprep.subr.mxu0 0.0
    %2476 = vmatpush1.msra.mxu0 0.0
    %2477 = vmatprep.subr.mxu0 0.0
    %2478 = vmatpush1.msra.mxu0 0.0
    %2479 = vmatprep.subr.mxu0 0.0
    %2480 = vmatpush1.msra.mxu0 0.0
    %2481 = vmatprep.subr.mxu0 0.0
    %2482 = vmatpush1.msra.mxu0 0.0
    %2483 = vmatprep.subr.mxu0 0.0
    %2484 = vmatpush1.msra.mxu0 0.0
    %2485 = vmatprep.subr.mxu0 0.0
    %2486 = vmatpush1.msra.mxu0 0.0
    %2487 = vmatprep.subr.mxu0 0.0
    %2488 = vmatpush1.msra.mxu0 0.0
    %2489 = vmatprep.subr.mxu0 0.0
    %2490 = vmatpush1.msra.mxu0 0.0
    %2491 = vmatprep.mubr.f32.mxu0 0.0
    %2492 = vmatmul.mubr.f32.gmra.mrb[0].mxu0 %v2425
    %v2493 = vpop.f32.mrb[0].mxu0
    %v2494 = vadd.f32 0.0, %v2493
    %v2495 = vpop.f32.mrb[0].mxu0
    %2496 = vdwg.mxu0
    %v2498 = vrot.slane %v2494, 5
    %v2500 = vadd.f32 %v2107, %v2498
    %v2501 = vmul.f32 %v2500, 0.5
    %v2502 = vsel %vm57, %v2500, %v2501
    %v2503 = vtanh.pop %v2502
    %v2504 = vmul.f32 %v2503, 0.5
    %v2505 = vadd.f32 %v2504, 0.5
    %v2506 = vsel %vm57, %v2503, %v2505
    %v2508 = vrot.slane %v2414, 7
    %v2510 = vmul.f32 %v2506, %v2508
    %2512 = vrot.lane.b32.xlu0 %v2506, 108
    %v2513 = vpop.permute.xlu0 %2512
    %v2515 = vmul.f32 %v2506, %v2513
    %2517 = vrot.lane.b32.xlu0 %v2515, 10
    %v2518 = vpop.permute.xlu0 %2517
    %v2520 = vadd.f32 %v2510, %v2518
    %v2521 = vtanh.pop %v2520
    %2523 = vrot.lane.b32.xlu0 %v2521, 20
    %v2524 = vpop.permute.xlu0 %2523
    %v2526 = vmul.f32 %v2506, %v2524
    %v2528 = vrot.slane %v2526, 3
    %2529 = vrot.lane.b32.xlu0 %v2528, 98
    %v2530 = vpop.permute.xlu0 %2529
    %v2531 = vsel %vm146, %v2530, 0
    %2533 = vmatprep.subr.mxu0 0.0
    %2534 = vmatpush1.msra.mxu0 %v2111
    %2535 = vmatprep.subr.mxu0 0.0
    %2536 = vmatpush1.msra.mxu0 %v2114
    %2537 = vmatprep.subr.mxu0 0.0
    %2538 = vmatpush1.msra.mxu0 0.0
    %2539 = vmatprep.subr.mxu0 0.0
    %2540 = vmatpush1.msra.mxu0 0.0
    %2541 = vmatprep.subr.mxu0 0.0
    %2542 = vmatpush1.msra.mxu0 0.0
    %2543 = vmatprep.subr.mxu0 0.0
    %2544 = vmatpush1.msra.mxu0 0.0
    %2545 = vmatprep.subr.mxu0 0.0
    %2546 = vmatpush1.msra.mxu0 0.0
    %2547 = vmatprep.subr.mxu0 0.0
    %2548 = vmatpush1.msra.mxu0 0.0
    %2549 = vmatprep.subr.mxu0 0.0
    %2550 = vmatpush1.msra.mxu0 0.0
    %2551 = vmatprep.subr.mxu0 0.0
    %2552 = vmatpush1.msra.mxu0 0.0
    %2553 = vmatprep.subr.mxu0 0.0
    %2554 = vmatpush1.msra.mxu0 0.0
    %2555 = vmatprep.subr.mxu0 0.0
    %2556 = vmatpush1.msra.mxu0 0.0
    %2557 = vmatprep.subr.mxu0 0.0
    %2558 = vmatpush1.msra.mxu0 0.0
    %2559 = vmatprep.subr.mxu0 0.0
    %2560 = vmatpush1.msra.mxu0 0.0
    %2561 = vmatprep.subr.mxu0 0.0
    %2562 = vmatpush1.msra.mxu0 0.0
    %2563 = vmatprep.subr.mxu0 0.0
    %2564 = vmatpush1.msra.mxu0 0.0
    %2565 = vmatprep.subr.mxu0 0.0
    %2566 = vmatpush1.msra.mxu0 0.0
    %2567 = vmatprep.subr.mxu0 0.0
    %2568 = vmatpush1.msra.mxu0 0.0
    %2569 = vmatprep.subr.mxu0 0.0
    %2570 = vmatpush1.msra.mxu0 0.0
    %2571 = vmatprep.subr.mxu0 0.0
    %2572 = vmatpush1.msra.mxu0 0.0
    %2573 = vmatprep.subr.mxu0 0.0
    %2574 = vmatpush1.msra.mxu0 0.0
    %2575 = vmatprep.subr.mxu0 0.0
    %2576 = vmatpush1.msra.mxu0 0.0
    %2577 = vmatprep.subr.mxu0 0.0
    %2578 = vmatpush1.msra.mxu0 0.0
    %2579 = vmatprep.subr.mxu0 0.0
    %2580 = vmatpush1.msra.mxu0 0.0
    %2581 = vmatprep.subr.mxu0 0.0
    %2582 = vmatpush1.msra.mxu0 0.0
    %2583 = vmatprep.subr.mxu0 0.0
    %2584 = vmatpush1.msra.mxu0 0.0
    %2585 = vmatprep.subr.mxu0 0.0
    %2586 = vmatpush1.msra.mxu0 0.0
    %2587 = vmatprep.subr.mxu0 0.0
    %2588 = vmatpush1.msra.mxu0 0.0
    %2589 = vmatprep.subr.mxu0 0.0
    %2590 = vmatpush1.msra.mxu0 0.0
    %2591 = vmatprep.subr.mxu0 0.0
    %2592 = vmatpush1.msra.mxu0 0.0
    %2593 = vmatprep.subr.mxu0 0.0
    %2594 = vmatpush1.msra.mxu0 0.0
    %2595 = vmatprep.subr.mxu0 0.0
    %2596 = vmatpush1.msra.mxu0 0.0
    %2597 = vmatprep.mubr.f32.mxu0 0.0
    %2598 = vmatmul.mubr.f32.gmra.mrb[0].mxu0 %v2531
    %v2599 = vpop.f32.mrb[0].mxu0
    %v2600 = vadd.f32 0.0, %v2599
    %v2601 = vpop.f32.mrb[0].mxu0
    %2602 = vdwg.mxu0
    %v2604 = vrot.slane %v2600, 4
    %v2606 = vadd.f32 %v2107, %v2604
    %v2607 = vmul.f32 %v2606, 0.5
    %v2608 = vsel %vm57, %v2606, %v2607
    %v2609 = vtanh.pop %v2608
    %v2610 = vmul.f32 %v2609, 0.5
    %v2611 = vadd.f32 %v2610, 0.5
    %v2612 = vsel %vm57, %v2609, %v2611
    %v2614 = vrot.slane %v2520, 7
    %v2616 = vmul.f32 %v2612, %v2614
    %2618 = vrot.lane.b32.xlu0 %v2612, 108
    %v2619 = vpop.permute.xlu0 %2618
    %v2621 = vmul.f32 %v2612, %v2619
    %2623 = vrot.lane.b32.xlu0 %v2621, 10
    %v2624 = vpop.permute.xlu0 %2623
    %v2626 = vadd.f32 %v2616, %v2624
    %v2627 = vtanh.pop %v2626
    %2629 = vrot.lane.b32.xlu0 %v2627, 20
    %v2630 = vpop.permute.xlu0 %2629
    %v2632 = vmul.f32 %v2612, %v2630
    %v2634 = vrot.slane %v2632, 4
    %2635 = vrot.lane.b32.xlu0 %v2634, 98
    %v2636 = vpop.permute.xlu0 %2635
    %v2637 = vsel %vm146, %v2636, 0
    %2639 = vmatprep.subr.mxu0 0.0
    %2640 = vmatpush1.msra.mxu0 %v2111
    %2641 = vmatprep.subr.mxu0 0.0
    %2642 = vmatpush1.msra.mxu0 %v2114
    %2643 = vmatprep.subr.mxu0 0.0
    %2644 = vmatpush1.msra.mxu0 0.0
    %2645 = vmatprep.subr.mxu0 0.0
    %2646 = vmatpush1.msra.mxu0 0.0
    %2647 = vmatprep.subr.mxu0 0.0
    %2648 = vmatpush1.msra.mxu0 0.0
    %2649 = vmatprep.subr.mxu0 0.0
    %2650 = vmatpush1.msra.mxu0 0.0
    %2651 = vmatprep.subr.mxu0 0.0
    %2652 = vmatpush1.msra.mxu0 0.0
    %2653 = vmatprep.subr.mxu0 0.0
    %2654 = vmatpush1.msra.mxu0 0.0
    %2655 = vmatprep.subr.mxu0 0.0
    %2656 = vmatpush1.msra.mxu0 0.0
    %2657 = vmatprep.subr.mxu0 0.0
    %2658 = vmatpush1.msra.mxu0 0.0
    %2659 = vmatprep.subr.mxu0 0.0
    %2660 = vmatpush1.msra.mxu0 0.0
    %2661 = vmatprep.subr.mxu0 0.0
    %2662 = vmatpush1.msra.mxu0 0.0
    %2663 = vmatprep.subr.mxu0 0.0
    %2664 = vmatpush1.msra.mxu0 0.0
    %2665 = vmatprep.subr.mxu0 0.0
    %2666 = vmatpush1.msra.mxu0 0.0
    %2667 = vmatprep.subr.mxu0 0.0
    %2668 = vmatpush1.msra.mxu0 0.0
    %2669 = vmatprep.subr.mxu0 0.0
    %2670 = vmatpush1.msra.mxu0 0.0
    %2671 = vmatprep.subr.mxu0 0.0
    %2672 = vmatpush1.msra.mxu0 0.0
    %2673 = vmatprep.subr.mxu0 0.0
    %2674 = vmatpush1.msra.mxu0 0.0
    %2675 = vmatprep.subr.mxu0 0.0
    %2676 = vmatpush1.msra.mxu0 0.0
    %2677 = vmatprep.subr.mxu0 0.0
    %2678 = vmatpush1.msra.mxu0 0.0
    %2679 = vmatprep.subr.mxu0 0.0
    %2680 = vmatpush1.msra.mxu0 0.0
    %2681 = vmatprep.subr.mxu0 0.0
    %2682 = vmatpush1.msra.mxu0 0.0
    %2683 = vmatprep.subr.mxu0 0.0
    %2684 = vmatpush1.msra.mxu0 0.0
    %2685 = vmatprep.subr.mxu0 0.0
    %2686 = vmatpush1.msra.mxu0 0.0
    %2687 = vmatprep.subr.mxu0 0.0
    %2688 = vmatpush1.msra.mxu0 0.0
    %2689 = vmatprep.subr.mxu0 0.0
    %2690 = vmatpush1.msra.mxu0 0.0
    %2691 = vmatprep.subr.mxu0 0.0
    %2692 = vmatpush1.msra.mxu0 0.0
    %2693 = vmatprep.subr.mxu0 0.0
    %2694 = vmatpush1.msra.mxu0 0.0
    %2695 = vmatprep.subr.mxu0 0.0
    %2696 = vmatpush1.msra.mxu0 0.0
    %2697 = vmatprep.subr.mxu0 0.0
    %2698 = vmatpush1.msra.mxu0 0.0
    %2699 = vmatprep.subr.mxu0 0.0
    %2700 = vmatpush1.msra.mxu0 0.0
    %2701 = vmatprep.subr.mxu0 0.0
    %2702 = vmatpush1.msra.mxu0 0.0
    %2703 = vmatprep.mubr.f32.mxu0 0.0
    %2704 = vmatmul.mubr.f32.gmra.mrb[0].mxu0 %v2637
    %v2705 = vpop.f32.mrb[0].mxu0
    %v2706 = vadd.f32 0.0, %v2705
    %v2707 = vpop.f32.mrb[0].mxu0
    %2708 = vdwg.mxu0
    %v2710 = vrot.slane %v2706, 3
    %v2712 = vadd.f32 %v2107, %v2710
    %v2713 = vmul.f32 %v2712, 0.5
    %v2714 = vsel %vm57, %v2712, %v2713
    %v2715 = vtanh.pop %v2714
    %v2716 = vmul.f32 %v2715, 0.5
    %v2717 = vadd.f32 %v2716, 0.5
    %v2718 = vsel %vm57, %v2715, %v2717
    %v2720 = vrot.slane %v2626, 7
    %v2722 = vmul.f32 %v2718, %v2720
    %2724 = vrot.lane.b32.xlu0 %v2718, 108
    %v2725 = vpop.permute.xlu0 %2724
    %v2727 = vmul.f32 %v2718, %v2725
    %2729 = vrot.lane.b32.xlu0 %v2727, 10
    %v2730 = vpop.permute.xlu0 %2729
    %v2732 = vadd.f32 %v2722, %v2730
    %v2733 = vtanh.pop %v2732
    %2735 = vrot.lane.b32.xlu0 %v2733, 20
    %v2736 = vpop.permute.xlu0 %2735
    %v2738 = vmul.f32 %v2718, %v2736
    %v2740 = vrot.slane %v2738, 5
    %2741 = vrot.lane.b32.xlu0 %v2740, 98
    %v2742 = vpop.permute.xlu0 %2741
    %v2743 = vsel %vm146, %v2742, 0
    %2745 = vmatprep.subr.mxu0 0.0
    %2746 = vmatpush1.msra.mxu0 %v2111
    %2747 = vmatprep.subr.mxu0 0.0
    %2748 = vmatpush1.msra.mxu0 %v2114
    %2749 = vmatprep.subr.mxu0 0.0
    %2750 = vmatpush1.msra.mxu0 0.0
    %2751 = vmatprep.subr.mxu0 0.0
    %2752 = vmatpush1.msra.mxu0 0.0
    %2753 = vmatprep.subr.mxu0 0.0
    %2754 = vmatpush1.msra.mxu0 0.0
    %2755 = vmatprep.subr.mxu0 0.0
    %2756 = vmatpush1.msra.mxu0 0.0
    %2757 = vmatprep.subr.mxu0 0.0
    %2758 = vmatpush1.msra.mxu0 0.0
    %2759 = vmatprep.subr.mxu0 0.0
    %2760 = vmatpush1.msra.mxu0 0.0
    %2761 = vmatprep.subr.mxu0 0.0
    %2762 = vmatpush1.msra.mxu0 0.0
    %2763 = vmatprep.subr.mxu0 0.0
    %2764 = vmatpush1.msra.mxu0 0.0
    %2765 = vmatprep.subr.mxu0 0.0
    %2766 = vmatpush1.msra.mxu0 0.0
    %2767 = vmatprep.subr.mxu0 0.0
    %2768 = vmatpush1.msra.mxu0 0.0
    %2769 = vmatprep.subr.mxu0 0.0
    %2770 = vmatpush1.msra.mxu0 0.0
    %2771 = vmatprep.subr.mxu0 0.0
    %2772 = vmatpush1.msra.mxu0 0.0
    %2773 = vmatprep.subr.mxu0 0.0
    %2774 = vmatpush1.msra.mxu0 0.0
    %2775 = vmatprep.subr.mxu0 0.0
    %2776 = vmatpush1.msra.mxu0 0.0
    %2777 = vmatprep.subr.mxu0 0.0
    %2778 = vmatpush1.msra.mxu0 0.0
    %2779 = vmatprep.subr.mxu0 0.0
    %2780 = vmatpush1.msra.mxu0 0.0
    %2781 = vmatprep.subr.mxu0 0.0
    %2782 = vmatpush1.msra.mxu0 0.0
    %2783 = vmatprep.subr.mxu0 0.0
    %2784 = vmatpush1.msra.mxu0 0.0
    %2785 = vmatprep.subr.mxu0 0.0
    %2786 = vmatpush1.msra.mxu0 0.0
    %2787 = vmatprep.subr.mxu0 0.0
    %2788 = vmatpush1.msra.mxu0 0.0
    %2789 = vmatprep.subr.mxu0 0.0
    %2790 = vmatpush1.msra.mxu0 0.0
    %2791 = vmatprep.subr.mxu0 0.0
    %2792 = vmatpush1.msra.mxu0 0.0
    %2793 = vmatprep.subr.mxu0 0.0
    %2794 = vmatpush1.msra.mxu0 0.0
    %2795 = vmatprep.subr.mxu0 0.0
    %2796 = vmatpush1.msra.mxu0 0.0
    %2797 = vmatprep.subr.mxu0 0.0
    %2798 = vmatpush1.msra.mxu0 0.0
    %2799 = vmatprep.subr.mxu0 0.0
    %2800 = vmatpush1.msra.mxu0 0.0
    %2801 = vmatprep.subr.mxu0 0.0
    %2802 = vmatpush1.msra.mxu0 0.0
    %2803 = vmatprep.subr.mxu0 0.0
    %2804 = vmatpush1.msra.mxu0 0.0
    %2805 = vmatprep.subr.mxu0 0.0
    %2806 = vmatpush1.msra.mxu0 0.0
    %2807 = vmatprep.subr.mxu0 0.0
    %2808 = vmatpush1.msra.mxu0 0.0
    %2809 = vmatprep.mubr.f32.mxu0 0.0
    %2810 = vmatmul.mubr.f32.gmra.mrb[0].mxu0 %v2743
    %v2811 = vpop.f32.mrb[0].mxu0
    %v2812 = vadd.f32 0.0, %v2811
    %v2813 = vpop.f32.mrb[0].mxu0
    %2814 = vdwg.mxu0
    %v2816 = vrot.slane %v2812, 2
    %v2818 = vadd.f32 %v2107, %v2816
    %v2819 = vmul.f32 %v2818, 0.5
    %v2820 = vsel %vm57, %v2818, %v2819
    %v2821 = vtanh.pop %v2820
    %v2822 = vmul.f32 %v2821, 0.5
    %v2823 = vadd.f32 %v2822, 0.5
    %v2824 = vsel %vm57, %v2821, %v2823
    %v2826 = vrot.slane %v2732, 7
    %v2828 = vmul.f32 %v2824, %v2826
    %2830 = vrot.lane.b32.xlu0 %v2824, 108
    %v2831 = vpop.permute.xlu0 %2830
    %v2833 = vmul.f32 %v2824, %v2831
    %2835 = vrot.lane.b32.xlu0 %v2833, 10
    %v2836 = vpop.permute.xlu0 %2835
    %v2838 = vadd.f32 %v2828, %v2836
    %v2839 = vtanh.pop %v2838
    %2841 = vrot.lane.b32.xlu0 %v2839, 20
    %v2842 = vpop.permute.xlu0 %2841
    %v2844 = vmul.f32 %v2824, %v2842
    %v2846 = vrot.slane %v2844, 6
    %2847 = vrot.lane.b32.xlu0 %v2846, 98
    %v2848 = vpop.permute.xlu0 %2847
    %v2849 = vsel %vm146, %v2848, 0
    %2851 = vmatprep.subr.mxu0 0.0
    %2852 = vmatpush1.msra.mxu0 %v2111
    %2853 = vmatprep.subr.mxu0 0.0
    %2854 = vmatpush1.msra.mxu0 %v2114
    %2855 = vmatprep.subr.mxu0 0.0
    %2856 = vmatpush1.msra.mxu0 0.0
    %2857 = vmatprep.subr.mxu0 0.0
    %2858 = vmatpush1.msra.mxu0 0.0
    %2859 = vmatprep.subr.mxu0 0.0
    %2860 = vmatpush1.msra.mxu0 0.0
    %2861 = vmatprep.subr.mxu0 0.0
    %2862 = vmatpush1.msra.mxu0 0.0
    %2863 = vmatprep.subr.mxu0 0.0
    %2864 = vmatpush1.msra.mxu0 0.0
    %2865 = vmatprep.subr.mxu0 0.0
    %2866 = vmatpush1.msra.mxu0 0.0
    %2867 = vmatprep.subr.mxu0 0.0
    %2868 = vmatpush1.msra.mxu0 0.0
    %2869 = vmatprep.subr.mxu0 0.0
    %2870 = vmatpush1.msra.mxu0 0.0
    %2871 = vmatprep.subr.mxu0 0.0
    %2872 = vmatpush1.msra.mxu0 0.0
    %2873 = vmatprep.subr.mxu0 0.0
    %2874 = vmatpush1.msra.mxu0 0.0
    %2875 = vmatprep.subr.mxu0 0.0
    %2876 = vmatpush1.msra.mxu0 0.0
    %2877 = vmatprep.subr.mxu0 0.0
    %2878 = vmatpush1.msra.mxu0 0.0
    %2879 = vmatprep.subr.mxu0 0.0
    %2880 = vmatpush1.msra.mxu0 0.0
    %2881 = vmatprep.subr.mxu0 0.0
    %2882 = vmatpush1.msra.mxu0 0.0
    %2883 = vmatprep.subr.mxu0 0.0
    %2884 = vmatpush1.msra.mxu0 0.0
    %2885 = vmatprep.subr.mxu0 0.0
    %2886 = vmatpush1.msra.mxu0 0.0
    %2887 = vmatprep.subr.mxu0 0.0
    %2888 = vmatpush1.msra.mxu0 0.0
    %2889 = vmatprep.subr.mxu0 0.0
    %2890 = vmatpush1.msra.mxu0 0.0
    %2891 = vmatprep.subr.mxu0 0.0
    %2892 = vmatpush1.msra.mxu0 0.0
    %2893 = vmatprep.subr.mxu0 0.0
    %2894 = vmatpush1.msra.mxu0 0.0
    %2895 = vmatprep.subr.mxu0 0.0
    %2896 = vmatpush1.msra.mxu0 0.0
    %2897 = vmatprep.subr.mxu0 0.0
    %2898 = vmatpush1.msra.mxu0 0.0
    %2899 = vmatprep.subr.mxu0 0.0
    %2900 = vmatpush1.msra.mxu0 0.0
    %2901 = vmatprep.subr.mxu0 0.0
    %2902 = vmatpush1.msra.mxu0 0.0
    %2903 = vmatprep.subr.mxu0 0.0
    %2904 = vmatpush1.msra.mxu0 0.0
    %2905 = vmatprep.subr.mxu0 0.0
    %2906 = vmatpush1.msra.mxu0 0.0
    %2907 = vmatprep.subr.mxu0 0.0
    %2908 = vmatpush1.msra.mxu0 0.0
    %2909 = vmatprep.subr.mxu0 0.0
    %2910 = vmatpush1.msra.mxu0 0.0
    %2911 = vmatprep.subr.mxu0 0.0
    %2912 = vmatpush1.msra.mxu0 0.0
    %2913 = vmatprep.subr.mxu0 0.0
    %2914 = vmatpush1.msra.mxu0 0.0
    %2915 = vmatprep.mubr.f32.mxu0 0.0
    %2916 = vmatmul.mubr.f32.gmra.mrb[0].mxu0 %v2849
    %v2917 = vpop.f32.mrb[0].mxu0
    %v2918 = vadd.f32 0.0, %v2917
    %v2919 = vpop.f32.mrb[0].mxu0
    %2920 = vdwg.mxu0
    %v2922 = vrot.slane %v2918, 1
    %v2924 = vadd.f32 %v2107, %v2922
    %v2925 = vmul.f32 %v2924, 0.5
    %v2926 = vsel %vm57, %v2924, %v2925
    %v2927 = vtanh.pop %v2926
    %v2928 = vmul.f32 %v2927, 0.5
    %v2929 = vadd.f32 %v2928, 0.5
    %v2930 = vsel %vm57, %v2927, %v2929
    %v2932 = vrot.slane %v2838, 7
    %v2934 = vmul.f32 %v2930, %v2932
    %2936 = vrot.lane.b32.xlu0 %v2930, 108
    %v2937 = vpop.permute.xlu0 %2936
    %v2939 = vmul.f32 %v2930, %v2937
    %2941 = vrot.lane.b32.xlu0 %v2939, 10
    %v2942 = vpop.permute.xlu0 %2941
    %v2944 = vadd.f32 %v2934, %v2942
    %v2945 = vtanh.pop %v2944
    %2947 = vrot.lane.b32.xlu0 %v2945, 20
    %v2948 = vpop.permute.xlu0 %2947
    %v2950 = vmul.f32 %v2930, %v2948
    %v2951 = vsel %vm989, %v2209, %v2314
    %v2952 = vsel %vm150, %v2951, %v2420
    %v2953 = vsel %vm992, %v2952, %v2526
    %v2954 = vsel %vm994, %v2953, %v2632
    %v2955 = vsel %vm996, %v2954, %v2738
    %v2956 = vsel %vm998, %v2955, %v2844
    %v2957 = vsel %vm1000, %v2956, %v2950
    %v2959 = vrot.slane %v2950, 7
    %v2961 = vrot.slane %v2844, 5
    %v2963 = vrot.slane %v2738, 3
    %v2965 = vrot.slane %v2632, 1
    %v2967 = vrot.slane %v2526, 7
    %v2969 = vrot.slane %v2420, 5
    %v2971 = vrot.slane %v2314, 3
    %v2973 = vrot.slane %v2209, 1
    %v2975 = vsel %vm989, %v2959, %v2961
    %v2976 = vsel %vm150, %v2975, %v2963
    %v2977 = vsel %vm992, %v2976, %v2965
    %v2978 = vsel %vm994, %v2977, %v2967
    %v2979 = vsel %vm996, %v2978, %v2969
    %v2980 = vsel %vm998, %v2979, %v2971
    %v2981 = vsel %vm1000, %v2980, %v2973
    %2983 = vrot.lane.b32.xlu0 %v2957, 98
    %v2984 = vpop.permute.xlu0 %2983
    %2987 = vrot.lane.b32.xlu0 %v2981, 98
    %v2988 = vpop.permute.xlu0 %2987
    %2990 = vrot.lane.b32.xlu0 %v2981, 108
    %v2991 = vpop.permute.xlu0 %2990
    %2993 = vrot.lane.b32.xlu0 %v2957, 108
    %v2994 = vpop.permute.xlu0 %2993
    %v2996 = vsel %vm1040, %v2984, %v2988
    %v2997 = vsel %vm146, %v2996, %v2991
    %v2998 = vsel %vm1043, %v2997, %v2994
    %s2999 = scalar_lea.vmem %s2, 48
    %v3000 = vld [vmem:[%s2999] sm:$0xff]
    %v3001 = vld [vmem:[%s2999 + $0x8] sm:$0xff]
    %v3002 = vld [vmem:[%s2999 + $0x10] sm:$0xf]
    %s3003 = scalar_lea.vmem [#allocation5], 3
    %v3004 = vld [vmem:[%s3003] sm:$0x1]
    %v3006 = vlaneseq
    %v3007 = vshrl.u32 %v3006, 7
    %v3008 = vsub.s32 0, %v3007
    %v3009 = vrot.slane %v3004, %v3008
    %v3012 = vsel %vm1056, %v2998, 0
    %v3015 = vsel %vm994, %v3002, 0
    %3017 = vmatprep.subr.mxu0 0.0
    %3018 = vmatpush1.msra.mxu0 %v3000
    %3019 = vmatprep.subr.mxu0 0.0
    %3020 = vmatpush1.msra.mxu0 %v3001
    %3021 = vmatprep.subr.mxu0 0.0
    %3022 = vmatpush1.msra.mxu0 %v3015
    %3023 = vmatprep.subr.mxu0 0.0
    %3024 = vmatpush1.msra.mxu0 0.0
    %3025 = vmatprep.subr.mxu0 0.0
    %3026 = vmatpush1.msra.mxu0 0.0
    %3027 = vmatprep.subr.mxu0 0.0
    %3028 = vmatpush1.msra.mxu0 0.0
    %3029 = vmatprep.subr.mxu0 0.0
    %3030 = vmatpush1.msra.mxu0 0.0
    %3031 = vmatprep.subr.mxu0 0.0
    %3032 = vmatpush1.msra.mxu0 0.0
    %3033 = vmatprep.subr.mxu0 0.0
    %3034 = vmatpush1.msra.mxu0 0.0
    %3035 = vmatprep.subr.mxu0 0.0
    %3036 = vmatpush1.msra.mxu0 0.0
    %3037 = vmatprep.subr.mxu0 0.0
    %3038 = vmatpush1.msra.mxu0 0.0
    %3039 = vmatprep.subr.mxu0 0.0
    %3040 = vmatpush1.msra.mxu0 0.0
    %3041 = vmatprep.subr.mxu0 0.0
    %3042 = vmatpush1.msra.mxu0 0.0
    %3043 = vmatprep.subr.mxu0 0.0
    %3044 = vmatpush1.msra.mxu0 0.0
    %3045 = vmatprep.subr.mxu0 0.0
    %3046 = vmatpush1.msra.mxu0 0.0
    %3047 = vmatprep.subr.mxu0 0.0
    %3048 = vmatpush1.msra.mxu0 0.0
    %3049 = vmatprep.subr.mxu0 0.0
    %3050 = vmatpush1.msra.mxu0 0.0
    %3051 = vmatprep.subr.mxu0 0.0
    %3052 = vmatpush1.msra.mxu0 0.0
    %3053 = vmatprep.subr.mxu0 0.0
    %3054 = vmatpush1.msra.mxu0 0.0
    %3055 = vmatprep.subr.mxu0 0.0
    %3056 = vmatpush1.msra.mxu0 0.0
    %3057 = vmatprep.subr.mxu0 0.0
    %3058 = vmatpush1.msra.mxu0 0.0
    %3059 = vmatprep.subr.mxu0 0.0
    %3060 = vmatpush1.msra.mxu0 0.0
    %3061 = vmatprep.subr.mxu0 0.0
    %3062 = vmatpush1.msra.mxu0 0.0
    %3063 = vmatprep.subr.mxu0 0.0
    %3064 = vmatpush1.msra.mxu0 0.0
    %3065 = vmatprep.subr.mxu0 0.0
    %3066 = vmatpush1.msra.mxu0 0.0
    %3067 = vmatprep.subr.mxu0 0.0
    %3068 = vmatpush1.msra.mxu0 0.0
    %3069 = vmatprep.subr.mxu0 0.0
    %3070 = vmatpush1.msra.mxu0 0.0
    %3071 = vmatprep.subr.mxu0 0.0
    %3072 = vmatpush1.msra.mxu0 0.0
    %3073 = vmatprep.subr.mxu0 0.0
    %3074 = vmatpush1.msra.mxu0 0.0
    %3075 = vmatprep.subr.mxu0 0.0
    %3076 = vmatpush1.msra.mxu0 0.0
    %3077 = vmatprep.subr.mxu0 0.0
    %3078 = vmatpush1.msra.mxu0 0.0
    %3079 = vmatprep.subr.mxu0 0.0
    %3080 = vmatpush1.msra.mxu0 0.0
    %3081 = vmatprep.mubr.f32.mxu0 0.0
    %3082 = vmatmul.mubr.f32.gmra.mrb[0].mxu0 %v3012
    %v3083 = vpop.f32.mrb[0].mxu0
    %v3084 = vadd.f32 %v3009, %v3083
    %v3085 = vpop.f32.mrb[0].mxu0
    %3086 = vdwg.mxu0
    %s3087 = scalar_lea.vmem %s3, 48
    %v3088 = vld [vmem:[%s3087] sm:$0xff]
    %v3089 = vld [vmem:[%s3087 + $0x8] sm:$0x3]
    %v3091 = vsel %vm150, %v3089, 0
    %3093 = vmatprep.subr.mxu0 0.0
    %3094 = vmatpush1.msra.mxu0 %v3088
    %3095 = vmatprep.subr.mxu0 0.0
    %3096 = vmatpush1.msra.mxu0 %v3091
    %3097 = vmatprep.subr.mxu0 0.0
    %3098 = vmatpush1.msra.mxu0 0.0
    %3099 = vmatprep.subr.mxu0 0.0
    %3100 = vmatpush1.msra.mxu0 0.0
    %3101 = vmatprep.subr.mxu0 0.0
    %3102 = vmatpush1.msra.mxu0 0.0
    %3103 = vmatprep.subr.mxu0 0.0
    %3104 = vmatpush1.msra.mxu0 0.0
    %3105 = vmatprep.subr.mxu0 0.0
    %3106 = vmatpush1.msra.mxu0 0.0
    %3107 = vmatprep.subr.mxu0 0.0
    %3108 = vmatpush1.msra.mxu0 0.0
    %3109 = vmatprep.subr.mxu0 0.0
    %3110 = vmatpush1.msra.mxu0 0.0
    %3111 = vmatprep.subr.mxu0 0.0
    %3112 = vmatpush1.msra.mxu0 0.0
    %3113 = vmatprep.subr.mxu0 0.0
    %3114 = vmatpush1.msra.mxu0 0.0
    %3115 = vmatprep.subr.mxu0 0.0
    %3116 = vmatpush1.msra.mxu0 0.0
    %3117 = vmatprep.subr.mxu0 0.0
    %3118 = vmatpush1.msra.mxu0 0.0
    %3119 = vmatprep.subr.mxu0 0.0
    %3120 = vmatpush1.msra.mxu0 0.0
    %3121 = vmatprep.subr.mxu0 0.0
    %3122 = vmatpush1.msra.mxu0 0.0
    %3123 = vmatprep.subr.mxu0 0.0
    %3124 = vmatpush1.msra.mxu0 0.0
    %3125 = vmatprep.subr.mxu0 0.0
    %3126 = vmatpush1.msra.mxu0 0.0
    %3127 = vmatprep.subr.mxu0 0.0
    %3128 = vmatpush1.msra.mxu0 0.0
    %3129 = vmatprep.subr.mxu0 0.0
    %3130 = vmatpush1.msra.mxu0 0.0
    %3131 = vmatprep.subr.mxu0 0.0
    %3132 = vmatpush1.msra.mxu0 0.0
    %3133 = vmatprep.subr.mxu0 0.0
    %3134 = vmatpush1.msra.mxu0 0.0
    %3135 = vmatprep.subr.mxu0 0.0
    %3136 = vmatpush1.msra.mxu0 0.0
    %3137 = vmatprep.subr.mxu0 0.0
    %3138 = vmatpush1.msra.mxu0 0.0
    %3139 = vmatprep.subr.mxu0 0.0
    %3140 = vmatpush1.msra.mxu0 0.0
    %3141 = vmatprep.subr.mxu0 0.0
    %3142 = vmatpush1.msra.mxu0 0.0
    %3143 = vmatprep.subr.mxu0 0.0
    %3144 = vmatpush1.msra.mxu0 0.0
    %3145 = vmatprep.subr.mxu0 0.0
    %3146 = vmatpush1.msra.mxu0 0.0
    %3147 = vmatprep.subr.mxu0 0.0
    %3148 = vmatpush1.msra.mxu0 0.0
    %3149 = vmatprep.subr.mxu0 0.0
    %3150 = vmatpush1.msra.mxu0 0.0
    %3151 = vmatprep.subr.mxu0 0.0
    %3152 = vmatpush1.msra.mxu0 0.0
    %3153 = vmatprep.subr.mxu0 0.0
    %3154 = vmatpush1.msra.mxu0 0.0
    %3155 = vmatprep.subr.mxu0 0.0
    %3156 = vmatpush1.msra.mxu0 0.0
    %3157 = vmatprep.mubr.f32.mxu0 0.0
    %3158 = vmatmul.mubr.f32.gmra.mrb[0].mxu0 %v148
    %v3159 = vpop.f32.mrb[0].mxu0
    %v3160 = vadd.f32 0.0, %v3159
    %v3161 = vpop.f32.mrb[0].mxu0
    %3162 = vdwg.mxu0
    %v3163 = vadd.f32 %v3084, %v3160
    %v3164 = vmul.f32 %v3163, 0.5
    %v3165 = vsel %vm57, %v3163, %v3164
    %v3166 = vtanh.pop %v3165
    %v3167 = vmul.f32 %v3166, 0.5
    %v3168 = vadd.f32 %v3167, 0.5
    %v3169 = vsel %vm57, %v3166, %v3168
    %v3170 = vmul.f32 %v3169, 0.0
    %3172 = vrot.lane.b32.xlu0 %v3169, 108
    %v3173 = vpop.permute.xlu0 %3172
    %v3175 = vmul.f32 %v3169, %v3173
    %3177 = vrot.lane.b32.xlu0 %v3175, 10
    %v3178 = vpop.permute.xlu0 %3177
    %v3180 = vadd.f32 %v3170, %v3178
    %v3181 = vtanh.pop %v3180
    %3183 = vrot.lane.b32.xlu0 %v3181, 20
    %v3184 = vpop.permute.xlu0 %3183
    %v3186 = vmul.f32 %v3169, %v3184
    %3188 = vrot.lane.b32.xlu0 %v3186, 98
    %v3189 = vpop.permute.xlu0 %3188
    %v3190 = vsel %vm146, %v3189, 0
    %3192 = vmatprep.subr.mxu0 0.0
    %3193 = vmatpush1.msra.mxu0 %v3088
    %3194 = vmatprep.subr.mxu0 0.0
    %3195 = vmatpush1.msra.mxu0 %v3091
    %3196 = vmatprep.subr.mxu0 0.0
    %3197 = vmatpush1.msra.mxu0 0.0
    %3198 = vmatprep.subr.mxu0 0.0
    %3199 = vmatpush1.msra.mxu0 0.0
    %3200 = vmatprep.subr.mxu0 0.0
    %3201 = vmatpush1.msra.mxu0 0.0
    %3202 = vmatprep.subr.mxu0 0.0
    %3203 = vmatpush1.msra.mxu0 0.0
    %3204 = vmatprep.subr.mxu0 0.0
    %3205 = vmatpush1.msra.mxu0 0.0
    %3206 = vmatprep.subr.mxu0 0.0
    %3207 = vmatpush1.msra.mxu0 0.0
    %3208 = vmatprep.subr.mxu0 0.0
    %3209 = vmatpush1.msra.mxu0 0.0
    %3210 = vmatprep.subr.mxu0 0.0
    %3211 = vmatpush1.msra.mxu0 0.0
    %3212 = vmatprep.subr.mxu0 0.0
    %3213 = vmatpush1.msra.mxu0 0.0
    %3214 = vmatprep.subr.mxu0 0.0
    %3215 = vmatpush1.msra.mxu0 0.0
    %3216 = vmatprep.subr.mxu0 0.0
    %3217 = vmatpush1.msra.mxu0 0.0
    %3218 = vmatprep.subr.mxu0 0.0
    %3219 = vmatpush1.msra.mxu0 0.0
    %3220 = vmatprep.subr.mxu0 0.0
    %3221 = vmatpush1.msra.mxu0 0.0
    %3222 = vmatprep.subr.mxu0 0.0
    %3223 = vmatpush1.msra.mxu0 0.0
    %3224 = vmatprep.subr.mxu0 0.0
    %3225 = vmatpush1.msra.mxu0 0.0
    %3226 = vmatprep.subr.mxu0 0.0
    %3227 = vmatpush1.msra.mxu0 0.0
    %3228 = vmatprep.subr.mxu0 0.0
    %3229 = vmatpush1.msra.mxu0 0.0
    %3230 = vmatprep.subr.mxu0 0.0
    %3231 = vmatpush1.msra.mxu0 0.0
    %3232 = vmatprep.subr.mxu0 0.0
    %3233 = vmatpush1.msra.mxu0 0.0
    %3234 = vmatprep.subr.mxu0 0.0
    %3235 = vmatpush1.msra.mxu0 0.0
    %3236 = vmatprep.subr.mxu0 0.0
    %3237 = vmatpush1.msra.mxu0 0.0
    %3238 = vmatprep.subr.mxu0 0.0
    %3239 = vmatpush1.msra.mxu0 0.0
    %3240 = vmatprep.subr.mxu0 0.0
    %3241 = vmatpush1.msra.mxu0 0.0
    %3242 = vmatprep.subr.mxu0 0.0
    %3243 = vmatpush1.msra.mxu0 0.0
    %3244 = vmatprep.subr.mxu0 0.0
    %3245 = vmatpush1.msra.mxu0 0.0
    %3246 = vmatprep.subr.mxu0 0.0
    %3247 = vmatpush1.msra.mxu0 0.0
    %3248 = vmatprep.subr.mxu0 0.0
    %3249 = vmatpush1.msra.mxu0 0.0
    %3250 = vmatprep.subr.mxu0 0.0
    %3251 = vmatpush1.msra.mxu0 0.0
    %3252 = vmatprep.subr.mxu0 0.0
    %3253 = vmatpush1.msra.mxu0 0.0
    %3254 = vmatprep.subr.mxu0 0.0
    %3255 = vmatpush1.msra.mxu0 0.0
    %3256 = vmatprep.mubr.f32.mxu0 0.0
    %3257 = vmatmul.mubr.f32.gmra.mrb[0].mxu0 %v3190
    %v3258 = vpop.f32.mrb[0].mxu0
    %v3259 = vadd.f32 0.0, %v3258
    %v3260 = vpop.f32.mrb[0].mxu0
    %3261 = vdwg.mxu0
    %v3263 = vrot.slane %v3259, 7
    %v3265 = vadd.f32 %v3084, %v3263
    %v3266 = vmul.f32 %v3265, 0.5
    %v3267 = vsel %vm57, %v3265, %v3266
    %v3268 = vtanh.pop %v3267
    %v3269 = vmul.f32 %v3268, 0.5
    %v3270 = vadd.f32 %v3269, 0.5
    %v3271 = vsel %vm57, %v3268, %v3270
    %v3273 = vrot.slane %v3180, 7
    %v3275 = vmul.f32 %v3271, %v3273
    %3277 = vrot.lane.b32.xlu0 %v3271, 108
    %v3278 = vpop.permute.xlu0 %3277
    %v3280 = vmul.f32 %v3271, %v3278
    %3282 = vrot.lane.b32.xlu0 %v3280, 10
    %v3283 = vpop.permute.xlu0 %3282
    %v3285 = vadd.f32 %v3275, %v3283
    %v3286 = vtanh.pop %v3285
    %3288 = vrot.lane.b32.xlu0 %v3286, 20
    %v3289 = vpop.permute.xlu0 %3288
    %v3291 = vmul.f32 %v3271, %v3289
    %v3293 = vrot.slane %v3291, 1
    %3294 = vrot.lane.b32.xlu0 %v3293, 98
    %v3295 = vpop.permute.xlu0 %3294
    %v3296 = vsel %vm146, %v3295, 0
    %3298 = vmatprep.subr.mxu0 0.0
    %3299 = vmatpush1.msra.mxu0 %v3088
    %3300 = vmatprep.subr.mxu0 0.0
    %3301 = vmatpush1.msra.mxu0 %v3091
    %3302 = vmatprep.subr.mxu0 0.0
    %3303 = vmatpush1.msra.mxu0 0.0
    %3304 = vmatprep.subr.mxu0 0.0
    %3305 = vmatpush1.msra.mxu0 0.0
    %3306 = vmatprep.subr.mxu0 0.0
    %3307 = vmatpush1.msra.mxu0 0.0
    %3308 = vmatprep.subr.mxu0 0.0
    %3309 = vmatpush1.msra.mxu0 0.0
    %3310 = vmatprep.subr.mxu0 0.0
    %3311 = vmatpush1.msra.mxu0 0.0
    %3312 = vmatprep.subr.mxu0 0.0
    %3313 = vmatpush1.msra.mxu0 0.0
    %3314 = vmatprep.subr.mxu0 0.0
    %3315 = vmatpush1.msra.mxu0 0.0
    %3316 = vmatprep.subr.mxu0 0.0
    %3317 = vmatpush1.msra.mxu0 0.0
    %3318 = vmatprep.subr.mxu0 0.0
    %3319 = vmatpush1.msra.mxu0 0.0
    %3320 = vmatprep.subr.mxu0 0.0
    %3321 = vmatpush1.msra.mxu0 0.0
    %3322 = vmatprep.subr.mxu0 0.0
    %3323 = vmatpush1.msra.mxu0 0.0
    %3324 = vmatprep.subr.mxu0 0.0
    %3325 = vmatpush1.msra.mxu0 0.0
    %3326 = vmatprep.subr.mxu0 0.0
    %3327 = vmatpush1.msra.mxu0 0.0
    %3328 = vmatprep.subr.mxu0 0.0
    %3329 = vmatpush1.msra.mxu0 0.0
    %3330 = vmatprep.subr.mxu0 0.0
    %3331 = vmatpush1.msra.mxu0 0.0
    %3332 = vmatprep.subr.mxu0 0.0
    %3333 = vmatpush1.msra.mxu0 0.0
    %3334 = vmatprep.subr.mxu0 0.0
    %3335 = vmatpush1.msra.mxu0 0.0
    %3336 = vmatprep.subr.mxu0 0.0
    %3337 = vmatpush1.msra.mxu0 0.0
    %3338 = vmatprep.subr.mxu0 0.0
    %3339 = vmatpush1.msra.mxu0 0.0
    %3340 = vmatprep.subr.mxu0 0.0
    %3341 = vmatpush1.msra.mxu0 0.0
    %3342 = vmatprep.subr.mxu0 0.0
    %3343 = vmatpush1.msra.mxu0 0.0
    %3344 = vmatprep.subr.mxu0 0.0
    %3345 = vmatpush1.msra.mxu0 0.0
    %3346 = vmatprep.subr.mxu0 0.0
    %3347 = vmatpush1.msra.mxu0 0.0
    %3348 = vmatprep.subr.mxu0 0.0
    %3349 = vmatpush1.msra.mxu0 0.0
    %3350 = vmatprep.subr.mxu0 0.0
    %3351 = vmatpush1.msra.mxu0 0.0
    %3352 = vmatprep.subr.mxu0 0.0
    %3353 = vmatpush1.msra.mxu0 0.0
    %3354 = vmatprep.subr.mxu0 0.0
    %3355 = vmatpush1.msra.mxu0 0.0
    %3356 = vmatprep.subr.mxu0 0.0
    %3357 = vmatpush1.msra.mxu0 0.0
    %3358 = vmatprep.subr.mxu0 0.0
    %3359 = vmatpush1.msra.mxu0 0.0
    %3360 = vmatprep.subr.mxu0 0.0
    %3361 = vmatpush1.msra.mxu0 0.0
    %3362 = vmatprep.mubr.f32.mxu0 0.0
    %3363 = vmatmul.mubr.f32.gmra.mrb[0].mxu0 %v3296
    %v3364 = vpop.f32.mrb[0].mxu0
    %v3365 = vadd.f32 0.0, %v3364
    %v3366 = vpop.f32.mrb[0].mxu0
    %3367 = vdwg.mxu0
    %v3369 = vrot.slane %v3365, 6
    %v3371 = vadd.f32 %v3084, %v3369
    %v3372 = vmul.f32 %v3371, 0.5
    %v3373 = vsel %vm57, %v3371, %v3372
    %v3374 = vtanh.pop %v3373
    %v3375 = vmul.f32 %v3374, 0.5
    %v3376 = vadd.f32 %v3375, 0.5
    %v3377 = vsel %vm57, %v3374, %v3376
    %v3379 = vrot.slane %v3285, 7
    %v3381 = vmul.f32 %v3377, %v3379
    %3383 = vrot.lane.b32.xlu0 %v3377, 108
    %v3384 = vpop.permute.xlu0 %3383
    %v3386 = vmul.f32 %v3377, %v3384
    %3388 = vrot.lane.b32.xlu0 %v3386, 10
    %v3389 = vpop.permute.xlu0 %3388
    %v3391 = vadd.f32 %v3381, %v3389
    %v3392 = vtanh.pop %v3391
    %3394 = vrot.lane.b32.xlu0 %v3392, 20
    %v3395 = vpop.permute.xlu0 %3394
    %v3397 = vmul.f32 %v3377, %v3395
    %v3399 = vrot.slane %v3397, 2
    %3400 = vrot.lane.b32.xlu0 %v3399, 98
    %v3401 = vpop.permute.xlu0 %3400
    %v3402 = vsel %vm146, %v3401, 0
    %3404 = vmatprep.subr.mxu0 0.0
    %3405 = vmatpush1.msra.mxu0 %v3088
    %3406 = vmatprep.subr.mxu0 0.0
    %3407 = vmatpush1.msra.mxu0 %v3091
    %3408 = vmatprep.subr.mxu0 0.0
    %3409 = vmatpush1.msra.mxu0 0.0
    %3410 = vmatprep.subr.mxu0 0.0
    %3411 = vmatpush1.msra.mxu0 0.0
    %3412 = vmatprep.subr.mxu0 0.0
    %3413 = vmatpush1.msra.mxu0 0.0
    %3414 = vmatprep.subr.mxu0 0.0
    %3415 = vmatpush1.msra.mxu0 0.0
    %3416 = vmatprep.subr.mxu0 0.0
    %3417 = vmatpush1.msra.mxu0 0.0
    %3418 = vmatprep.subr.mxu0 0.0
    %3419 = vmatpush1.msra.mxu0 0.0
    %3420 = vmatprep.subr.mxu0 0.0
    %3421 = vmatpush1.msra.mxu0 0.0
    %3422 = vmatprep.subr.mxu0 0.0
    %3423 = vmatpush1.msra.mxu0 0.0
    %3424 = vmatprep.subr.mxu0 0.0
    %3425 = vmatpush1.msra.mxu0 0.0
    %3426 = vmatprep.subr.mxu0 0.0
    %3427 = vmatpush1.msra.mxu0 0.0
    %3428 = vmatprep.subr.mxu0 0.0
    %3429 = vmatpush1.msra.mxu0 0.0
    %3430 = vmatprep.subr.mxu0 0.0
    %3431 = vmatpush1.msra.mxu0 0.0
    %3432 = vmatprep.subr.mxu0 0.0
    %3433 = vmatpush1.msra.mxu0 0.0
    %3434 = vmatprep.subr.mxu0 0.0
    %3435 = vmatpush1.msra.mxu0 0.0
    %3436 = vmatprep.subr.mxu0 0.0
    %3437 = vmatpush1.msra.mxu0 0.0
    %3438 = vmatprep.subr.mxu0 0.0
    %3439 = vmatpush1.msra.mxu0 0.0
    %3440 = vmatprep.subr.mxu0 0.0
    %3441 = vmatpush1.msra.mxu0 0.0
    %3442 = vmatprep.subr.mxu0 0.0
    %3443 = vmatpush1.msra.mxu0 0.0
    %3444 = vmatprep.subr.mxu0 0.0
    %3445 = vmatpush1.msra.mxu0 0.0
    %3446 = vmatprep.subr.mxu0 0.0
    %3447 = vmatpush1.msra.mxu0 0.0
    %3448 = vmatprep.subr.mxu0 0.0
    %3449 = vmatpush1.msra.mxu0 0.0
    %3450 = vmatprep.subr.mxu0 0.0
    %3451 = vmatpush1.msra.mxu0 0.0
    %3452 = vmatprep.subr.mxu0 0.0
    %3453 = vmatpush1.msra.mxu0 0.0
    %3454 = vmatprep.subr.mxu0 0.0
    %3455 = vmatpush1.msra.mxu0 0.0
    %3456 = vmatprep.subr.mxu0 0.0
    %3457 = vmatpush1.msra.mxu0 0.0
    %3458 = vmatprep.subr.mxu0 0.0
    %3459 = vmatpush1.msra.mxu0 0.0
    %3460 = vmatprep.subr.mxu0 0.0
    %3461 = vmatpush1.msra.mxu0 0.0
    %3462 = vmatprep.subr.mxu0 0.0
    %3463 = vmatpush1.msra.mxu0 0.0
    %3464 = vmatprep.subr.mxu0 0.0
    %3465 = vmatpush1.msra.mxu0 0.0
    %3466 = vmatprep.subr.mxu0 0.0
    %3467 = vmatpush1.msra.mxu0 0.0
    %3468 = vmatprep.mubr.f32.mxu0 0.0
    %3469 = vmatmul.mubr.f32.gmra.mrb[0].mxu0 %v3402
    %v3470 = vpop.f32.mrb[0].mxu0
    %v3471 = vadd.f32 0.0, %v3470
    %v3472 = vpop.f32.mrb[0].mxu0
    %3473 = vdwg.mxu0
    %v3475 = vrot.slane %v3471, 5
    %v3477 = vadd.f32 %v3084, %v3475
    %v3478 = vmul.f32 %v3477, 0.5
    %v3479 = vsel %vm57, %v3477, %v3478
    %v3480 = vtanh.pop %v3479
    %v3481 = vmul.f32 %v3480, 0.5
    %v3482 = vadd.f32 %v3481, 0.5
    %v3483 = vsel %vm57, %v3480, %v3482
    %v3485 = vrot.slane %v3391, 7
    %v3487 = vmul.f32 %v3483, %v3485
    %3489 = vrot.lane.b32.xlu0 %v3483, 108
    %v3490 = vpop.permute.xlu0 %3489
    %v3492 = vmul.f32 %v3483, %v3490
    %3494 = vrot.lane.b32.xlu0 %v3492, 10
    %v3495 = vpop.permute.xlu0 %3494
    %v3497 = vadd.f32 %v3487, %v3495
    %v3498 = vtanh.pop %v3497
    %3500 = vrot.lane.b32.xlu0 %v3498, 20
    %v3501 = vpop.permute.xlu0 %3500
    %v3503 = vmul.f32 %v3483, %v3501
    %v3505 = vrot.slane %v3503, 3
    %3506 = vrot.lane.b32.xlu0 %v3505, 98
    %v3507 = vpop.permute.xlu0 %3506
    %v3508 = vsel %vm146, %v3507, 0
    %3510 = vmatprep.subr.mxu0 0.0
    %3511 = vmatpush1.msra.mxu0 %v3088
    %3512 = vmatprep.subr.mxu0 0.0
    %3513 = vmatpush1.msra.mxu0 %v3091
    %3514 = vmatprep.subr.mxu0 0.0
    %3515 = vmatpush1.msra.mxu0 0.0
    %3516 = vmatprep.subr.mxu0 0.0
    %3517 = vmatpush1.msra.mxu0 0.0
    %3518 = vmatprep.subr.mxu0 0.0
    %3519 = vmatpush1.msra.mxu0 0.0
    %3520 = vmatprep.subr.mxu0 0.0
    %3521 = vmatpush1.msra.mxu0 0.0
    %3522 = vmatprep.subr.mxu0 0.0
    %3523 = vmatpush1.msra.mxu0 0.0
    %3524 = vmatprep.subr.mxu0 0.0
    %3525 = vmatpush1.msra.mxu0 0.0
    %3526 = vmatprep.subr.mxu0 0.0
    %3527 = vmatpush1.msra.mxu0 0.0
    %3528 = vmatprep.subr.mxu0 0.0
    %3529 = vmatpush1.msra.mxu0 0.0
    %3530 = vmatprep.subr.mxu0 0.0
    %3531 = vmatpush1.msra.mxu0 0.0
    %3532 = vmatprep.subr.mxu0 0.0
    %3533 = vmatpush1.msra.mxu0 0.0
    %3534 = vmatprep.subr.mxu0 0.0
    %3535 = vmatpush1.msra.mxu0 0.0
    %3536 = vmatprep.subr.mxu0 0.0
    %3537 = vmatpush1.msra.mxu0 0.0
    %3538 = vmatprep.subr.mxu0 0.0
    %3539 = vmatpush1.msra.mxu0 0.0
    %3540 = vmatprep.subr.mxu0 0.0
    %3541 = vmatpush1.msra.mxu0 0.0
    %3542 = vmatprep.subr.mxu0 0.0
    %3543 = vmatpush1.msra.mxu0 0.0
    %3544 = vmatprep.subr.mxu0 0.0
    %3545 = vmatpush1.msra.mxu0 0.0
    %3546 = vmatprep.subr.mxu0 0.0
    %3547 = vmatpush1.msra.mxu0 0.0
    %3548 = vmatprep.subr.mxu0 0.0
    %3549 = vmatpush1.msra.mxu0 0.0
    %3550 = vmatprep.subr.mxu0 0.0
    %3551 = vmatpush1.msra.mxu0 0.0
    %3552 = vmatprep.subr.mxu0 0.0
    %3553 = vmatpush1.msra.mxu0 0.0
    %3554 = vmatprep.subr.mxu0 0.0
    %3555 = vmatpush1.msra.mxu0 0.0
    %3556 = vmatprep.subr.mxu0 0.0
    %3557 = vmatpush1.msra.mxu0 0.0
    %3558 = vmatprep.subr.mxu0 0.0
    %3559 = vmatpush1.msra.mxu0 0.0
    %3560 = vmatprep.subr.mxu0 0.0
    %3561 = vmatpush1.msra.mxu0 0.0
    %3562 = vmatprep.subr.mxu0 0.0
    %3563 = vmatpush1.msra.mxu0 0.0
    %3564 = vmatprep.subr.mxu0 0.0
    %3565 = vmatpush1.msra.mxu0 0.0
    %3566 = vmatprep.subr.mxu0 0.0
    %3567 = vmatpush1.msra.mxu0 0.0
    %3568 = vmatprep.subr.mxu0 0.0
    %3569 = vmatpush1.msra.mxu0 0.0
    %3570 = vmatprep.subr.mxu0 0.0
    %3571 = vmatpush1.msra.mxu0 0.0
    %3572 = vmatprep.subr.mxu0 0.0
    %3573 = vmatpush1.msra.mxu0 0.0
    %3574 = vmatprep.mubr.f32.mxu0 0.0
    %3575 = vmatmul.mubr.f32.gmra.mrb[0].mxu0 %v3508
    %v3576 = vpop.f32.mrb[0].mxu0
    %v3577 = vadd.f32 0.0, %v3576
    %v3578 = vpop.f32.mrb[0].mxu0
    %3579 = vdwg.mxu0
    %v3581 = vrot.slane %v3577, 4
    %v3583 = vadd.f32 %v3084, %v3581
    %v3584 = vmul.f32 %v3583, 0.5
    %v3585 = vsel %vm57, %v3583, %v3584
    %v3586 = vtanh.pop %v3585
    %v3587 = vmul.f32 %v3586, 0.5
    %v3588 = vadd.f32 %v3587, 0.5
    %v3589 = vsel %vm57, %v3586, %v3588
    %v3591 = vrot.slane %v3497, 7
    %v3593 = vmul.f32 %v3589, %v3591
    %3595 = vrot.lane.b32.xlu0 %v3589, 108
    %v3596 = vpop.permute.xlu0 %3595
    %v3598 = vmul.f32 %v3589, %v3596
    %3600 = vrot.lane.b32.xlu0 %v3598, 10
    %v3601 = vpop.permute.xlu0 %3600
    %v3603 = vadd.f32 %v3593, %v3601
    %v3604 = vtanh.pop %v3603
    %3606 = vrot.lane.b32.xlu0 %v3604, 20
    %v3607 = vpop.permute.xlu0 %3606
    %v3609 = vmul.f32 %v3589, %v3607
    %v3611 = vrot.slane %v3609, 4
    %3612 = vrot.lane.b32.xlu0 %v3611, 98
    %v3613 = vpop.permute.xlu0 %3612
    %v3614 = vsel %vm146, %v3613, 0
    %3616 = vmatprep.subr.mxu0 0.0
    %3617 = vmatpush1.msra.mxu0 %v3088
    %3618 = vmatprep.subr.mxu0 0.0
    %3619 = vmatpush1.msra.mxu0 %v3091
    %3620 = vmatprep.subr.mxu0 0.0
    %3621 = vmatpush1.msra.mxu0 0.0
    %3622 = vmatprep.subr.mxu0 0.0
    %3623 = vmatpush1.msra.mxu0 0.0
    %3624 = vmatprep.subr.mxu0 0.0
    %3625 = vmatpush1.msra.mxu0 0.0
    %3626 = vmatprep.subr.mxu0 0.0
    %3627 = vmatpush1.msra.mxu0 0.0
    %3628 = vmatprep.subr.mxu0 0.0
    %3629 = vmatpush1.msra.mxu0 0.0
    %3630 = vmatprep.subr.mxu0 0.0
    %3631 = vmatpush1.msra.mxu0 0.0
    %3632 = vmatprep.subr.mxu0 0.0
    %3633 = vmatpush1.msra.mxu0 0.0
    %3634 = vmatprep.subr.mxu0 0.0
    %3635 = vmatpush1.msra.mxu0 0.0
    %3636 = vmatprep.subr.mxu0 0.0
    %3637 = vmatpush1.msra.mxu0 0.0
    %3638 = vmatprep.subr.mxu0 0.0
    %3639 = vmatpush1.msra.mxu0 0.0
    %3640 = vmatprep.subr.mxu0 0.0
    %3641 = vmatpush1.msra.mxu0 0.0
    %3642 = vmatprep.subr.mxu0 0.0
    %3643 = vmatpush1.msra.mxu0 0.0
    %3644 = vmatprep.subr.mxu0 0.0
    %3645 = vmatpush1.msra.mxu0 0.0
    %3646 = vmatprep.subr.mxu0 0.0
    %3647 = vmatpush1.msra.mxu0 0.0
    %3648 = vmatprep.subr.mxu0 0.0
    %3649 = vmatpush1.msra.mxu0 0.0
    %3650 = vmatprep.subr.mxu0 0.0
    %3651 = vmatpush1.msra.mxu0 0.0
    %3652 = vmatprep.subr.mxu0 0.0
    %3653 = vmatpush1.msra.mxu0 0.0
    %3654 = vmatprep.subr.mxu0 0.0
    %3655 = vmatpush1.msra.mxu0 0.0
    %3656 = vmatprep.subr.mxu0 0.0
    %3657 = vmatpush1.msra.mxu0 0.0
    %3658 = vmatprep.subr.mxu0 0.0
    %3659 = vmatpush1.msra.mxu0 0.0
    %3660 = vmatprep.subr.mxu0 0.0
    %3661 = vmatpush1.msra.mxu0 0.0
    %3662 = vmatprep.subr.mxu0 0.0
    %3663 = vmatpush1.msra.mxu0 0.0
    %3664 = vmatprep.subr.mxu0 0.0
    %3665 = vmatpush1.msra.mxu0 0.0
    %3666 = vmatprep.subr.mxu0 0.0
    %3667 = vmatpush1.msra.mxu0 0.0
    %3668 = vmatprep.subr.mxu0 0.0
    %3669 = vmatpush1.msra.mxu0 0.0
    %3670 = vmatprep.subr.mxu0 0.0
    %3671 = vmatpush1.msra.mxu0 0.0
    %3672 = vmatprep.subr.mxu0 0.0
    %3673 = vmatpush1.msra.mxu0 0.0
    %3674 = vmatprep.subr.mxu0 0.0
    %3675 = vmatpush1.msra.mxu0 0.0
    %3676 = vmatprep.subr.mxu0 0.0
    %3677 = vmatpush1.msra.mxu0 0.0
    %3678 = vmatprep.subr.mxu0 0.0
    %3679 = vmatpush1.msra.mxu0 0.0
    %3680 = vmatprep.mubr.f32.mxu0 0.0
    %3681 = vmatmul.mubr.f32.gmra.mrb[0].mxu0 %v3614
    %v3682 = vpop.f32.mrb[0].mxu0
    %v3683 = vadd.f32 0.0, %v3682
    %v3684 = vpop.f32.mrb[0].mxu0
    %3685 = vdwg.mxu0
    %v3687 = vrot.slane %v3683, 3
    %v3689 = vadd.f32 %v3084, %v3687
    %v3690 = vmul.f32 %v3689, 0.5
    %v3691 = vsel %vm57, %v3689, %v3690
    %v3692 = vtanh.pop %v3691
    %v3693 = vmul.f32 %v3692, 0.5
    %v3694 = vadd.f32 %v3693, 0.5
    %v3695 = vsel %vm57, %v3692, %v3694
    %v3697 = vrot.slane %v3603, 7
    %v3699 = vmul.f32 %v3695, %v3697
    %3701 = vrot.lane.b32.xlu0 %v3695, 108
    %v3702 = vpop.permute.xlu0 %3701
    %v3704 = vmul.f32 %v3695, %v3702
    %3706 = vrot.lane.b32.xlu0 %v3704, 10
    %v3707 = vpop.permute.xlu0 %3706
    %v3709 = vadd.f32 %v3699, %v3707
    %v3710 = vtanh.pop %v3709
    %3712 = vrot.lane.b32.xlu0 %v3710, 20
    %v3713 = vpop.permute.xlu0 %3712
    %v3715 = vmul.f32 %v3695, %v3713
    %v3717 = vrot.slane %v3715, 5
    %3718 = vrot.lane.b32.xlu0 %v3717, 98
    %v3719 = vpop.permute.xlu0 %3718
    %v3720 = vsel %vm146, %v3719, 0
    %3722 = vmatprep.subr.mxu0 0.0
    %3723 = vmatpush1.msra.mxu0 %v3088
    %3724 = vmatprep.subr.mxu0 0.0
    %3725 = vmatpush1.msra.mxu0 %v3091
    %3726 = vmatprep.subr.mxu0 0.0
    %3727 = vmatpush1.msra.mxu0 0.0
    %3728 = vmatprep.subr.mxu0 0.0
    %3729 = vmatpush1.msra.mxu0 0.0
    %3730 = vmatprep.subr.mxu0 0.0
    %3731 = vmatpush1.msra.mxu0 0.0
    %3732 = vmatprep.subr.mxu0 0.0
    %3733 = vmatpush1.msra.mxu0 0.0
    %3734 = vmatprep.subr.mxu0 0.0
    %3735 = vmatpush1.msra.mxu0 0.0
    %3736 = vmatprep.subr.mxu0 0.0
    %3737 = vmatpush1.msra.mxu0 0.0
    %3738 = vmatprep.subr.mxu0 0.0
    %3739 = vmatpush1.msra.mxu0 0.0
    %3740 = vmatprep.subr.mxu0 0.0
    %3741 = vmatpush1.msra.mxu0 0.0
    %3742 = vmatprep.subr.mxu0 0.0
    %3743 = vmatpush1.msra.mxu0 0.0
    %3744 = vmatprep.subr.mxu0 0.0
    %3745 = vmatpush1.msra.mxu0 0.0
    %3746 = vmatprep.subr.mxu0 0.0
    %3747 = vmatpush1.msra.mxu0 0.0
    %3748 = vmatprep.subr.mxu0 0.0
    %3749 = vmatpush1.msra.mxu0 0.0
    %3750 = vmatprep.subr.mxu0 0.0
    %3751 = vmatpush1.msra.mxu0 0.0
    %3752 = vmatprep.subr.mxu0 0.0
    %3753 = vmatpush1.msra.mxu0 0.0
    %3754 = vmatprep.subr.mxu0 0.0
    %3755 = vmatpush1.msra.mxu0 0.0
    %3756 = vmatprep.subr.mxu0 0.0
    %3757 = vmatpush1.msra.mxu0 0.0
    %3758 = vmatprep.subr.mxu0 0.0
    %3759 = vmatpush1.msra.mxu0 0.0
    %3760 = vmatprep.subr.mxu0 0.0
    %3761 = vmatpush1.msra.mxu0 0.0
    %3762 = vmatprep.subr.mxu0 0.0
    %3763 = vmatpush1.msra.mxu0 0.0
    %3764 = vmatprep.subr.mxu0 0.0
    %3765 = vmatpush1.msra.mxu0 0.0
    %3766 = vmatprep.subr.mxu0 0.0
    %3767 = vmatpush1.msra.mxu0 0.0
    %3768 = vmatprep.subr.mxu0 0.0
    %3769 = vmatpush1.msra.mxu0 0.0
    %3770 = vmatprep.subr.mxu0 0.0
    %3771 = vmatpush1.msra.mxu0 0.0
    %3772 = vmatprep.subr.mxu0 0.0
    %3773 = vmatpush1.msra.mxu0 0.0
    %3774 = vmatprep.subr.mxu0 0.0
    %3775 = vmatpush1.msra.mxu0 0.0
    %3776 = vmatprep.subr.mxu0 0.0
    %3777 = vmatpush1.msra.mxu0 0.0
    %3778 = vmatprep.subr.mxu0 0.0
    %3779 = vmatpush1.msra.mxu0 0.0
    %3780 = vmatprep.subr.mxu0 0.0
    %3781 = vmatpush1.msra.mxu0 0.0
    %3782 = vmatprep.subr.mxu0 0.0
    %3783 = vmatpush1.msra.mxu0 0.0
    %3784 = vmatprep.subr.mxu0 0.0
    %3785 = vmatpush1.msra.mxu0 0.0
    %3786 = vmatprep.mubr.f32.mxu0 0.0
    %3787 = vmatmul.mubr.f32.gmra.mrb[0].mxu0 %v3720
    %v3788 = vpop.f32.mrb[0].mxu0
    %v3789 = vadd.f32 0.0, %v3788
    %v3790 = vpop.f32.mrb[0].mxu0
    %3791 = vdwg.mxu0
    %v3793 = vrot.slane %v3789, 2
    %v3795 = vadd.f32 %v3084, %v3793
    %v3796 = vmul.f32 %v3795, 0.5
    %v3797 = vsel %vm57, %v3795, %v3796
    %v3798 = vtanh.pop %v3797
    %v3799 = vmul.f32 %v3798, 0.5
    %v3800 = vadd.f32 %v3799, 0.5
    %v3801 = vsel %vm57, %v3798, %v3800
    %v3803 = vrot.slane %v3709, 7
    %v3805 = vmul.f32 %v3801, %v3803
    %3807 = vrot.lane.b32.xlu0 %v3801, 108
    %v3808 = vpop.permute.xlu0 %3807
    %v3810 = vmul.f32 %v3801, %v3808
    %3812 = vrot.lane.b32.xlu0 %v3810, 10
    %v3813 = vpop.permute.xlu0 %3812
    %v3815 = vadd.f32 %v3805, %v3813
    %v3816 = vtanh.pop %v3815
    %3818 = vrot.lane.b32.xlu0 %v3816, 20
    %v3819 = vpop.permute.xlu0 %3818
    %v3821 = vmul.f32 %v3801, %v3819
    %v3823 = vrot.slane %v3821, 6
    %3824 = vrot.lane.b32.xlu0 %v3823, 98
    %v3825 = vpop.permute.xlu0 %3824
    %v3826 = vsel %vm146, %v3825, 0
    %3828 = vmatprep.subr.mxu0 0.0
    %3829 = vmatpush1.msra.mxu0 %v3088
    %3830 = vmatprep.subr.mxu0 0.0
    %3831 = vmatpush1.msra.mxu0 %v3091
    %3832 = vmatprep.subr.mxu0 0.0
    %3833 = vmatpush1.msra.mxu0 0.0
    %3834 = vmatprep.subr.mxu0 0.0
    %3835 = vmatpush1.msra.mxu0 0.0
    %3836 = vmatprep.subr.mxu0 0.0
    %3837 = vmatpush1.msra.mxu0 0.0
    %3838 = vmatprep.subr.mxu0 0.0
    %3839 = vmatpush1.msra.mxu0 0.0
    %3840 = vmatprep.subr.mxu0 0.0
    %3841 = vmatpush1.msra.mxu0 0.0
    %3842 = vmatprep.subr.mxu0 0.0
    %3843 = vmatpush1.msra.mxu0 0.0
    %3844 = vmatprep.subr.mxu0 0.0
    %3845 = vmatpush1.msra.mxu0 0.0
    %3846 = vmatprep.subr.mxu0 0.0
    %3847 = vmatpush1.msra.mxu0 0.0
    %3848 = vmatprep.subr.mxu0 0.0
    %3849 = vmatpush1.msra.mxu0 0.0
    %3850 = vmatprep.subr.mxu0 0.0
    %3851 = vmatpush1.msra.mxu0 0.0
    %3852 = vmatprep.subr.mxu0 0.0
    %3853 = vmatpush1.msra.mxu0 0.0
    %3854 = vmatprep.subr.mxu0 0.0
    %3855 = vmatpush1.msra.mxu0 0.0
    %3856 = vmatprep.subr.mxu0 0.0
    %3857 = vmatpush1.msra.mxu0 0.0
    %3858 = vmatprep.subr.mxu0 0.0
    %3859 = vmatpush1.msra.mxu0 0.0
    %3860 = vmatprep.subr.mxu0 0.0
    %3861 = vmatpush1.msra.mxu0 0.0
    %3862 = vmatprep.subr.mxu0 0.0
    %3863 = vmatpush1.msra.mxu0 0.0
    %3864 = vmatprep.subr.mxu0 0.0
    %3865 = vmatpush1.msra.mxu0 0.0
    %3866 = vmatprep.subr.mxu0 0.0
    %3867 = vmatpush1.msra.mxu0 0.0
    %3868 = vmatprep.subr.mxu0 0.0
    %3869 = vmatpush1.msra.mxu0 0.0
    %3870 = vmatprep.subr.mxu0 0.0
    %3871 = vmatpush1.msra.mxu0 0.0
    %3872 = vmatprep.subr.mxu0 0.0
    %3873 = vmatpush1.msra.mxu0 0.0
    %3874 = vmatprep.subr.mxu0 0.0
    %3875 = vmatpush1.msra.mxu0 0.0
    %3876 = vmatprep.subr.mxu0 0.0
    %3877 = vmatpush1.msra.mxu0 0.0
    %3878 = vmatprep.subr.mxu0 0.0
    %3879 = vmatpush1.msra.mxu0 0.0
    %3880 = vmatprep.subr.mxu0 0.0
    %3881 = vmatpush1.msra.mxu0 0.0
    %3882 = vmatprep.subr.mxu0 0.0
    %3883 = vmatpush1.msra.mxu0 0.0
    %3884 = vmatprep.subr.mxu0 0.0
    %3885 = vmatpush1.msra.mxu0 0.0
    %3886 = vmatprep.subr.mxu0 0.0
    %3887 = vmatpush1.msra.mxu0 0.0
    %3888 = vmatprep.subr.mxu0 0.0
    %3889 = vmatpush1.msra.mxu0 0.0
    %3890 = vmatprep.subr.mxu0 0.0
    %3891 = vmatpush1.msra.mxu0 0.0
    %3892 = vmatprep.mubr.f32.mxu0 0.0
    %3893 = vmatmul.mubr.f32.gmra.mrb[0].mxu0 %v3826
    %v3894 = vpop.f32.mrb[0].mxu0
    %v3895 = vadd.f32 0.0, %v3894
    %v3896 = vpop.f32.mrb[0].mxu0
    %3897 = vdwg.mxu0
    %v3899 = vrot.slane %v3895, 1
    %v3901 = vadd.f32 %v3084, %v3899
    %v3902 = vmul.f32 %v3901, 0.5
    %v3903 = vsel %vm57, %v3901, %v3902
    %v3904 = vtanh.pop %v3903
    %v3905 = vmul.f32 %v3904, 0.5
    %v3906 = vadd.f32 %v3905, 0.5
    %v3907 = vsel %vm57, %v3904, %v3906
    %v3909 = vrot.slane %v3815, 7
    %v3911 = vmul.f32 %v3907, %v3909
    %3913 = vrot.lane.b32.xlu0 %v3907, 108
    %v3914 = vpop.permute.xlu0 %3913
    %v3916 = vmul.f32 %v3907, %v3914
    %3918 = vrot.lane.b32.xlu0 %v3916, 10
    %v3919 = vpop.permute.xlu0 %3918
    %v3921 = vadd.f32 %v3911, %v3919
    %v3922 = vtanh.pop %v3921
    %3924 = vrot.lane.b32.xlu0 %v3922, 20
    %v3925 = vpop.permute.xlu0 %3924
    %v3927 = vmul.f32 %v3907, %v3925
    %v3928 = vsel %vm989, %v3186, %v3291
    %v3929 = vsel %vm150, %v3928, %v3397
    %v3930 = vsel %vm992, %v3929, %v3503
    %v3931 = vsel %vm994, %v3930, %v3609
    %v3932 = vsel %vm996, %v3931, %v3715
    %v3933 = vsel %vm998, %v3932, %v3821
    %v3934 = vsel %vm1000, %v3933, %v3927
    %v3936 = vrot.slane %v3927, 7
    %v3938 = vrot.slane %v3821, 5
    %v3940 = vrot.slane %v3715, 3
    %v3942 = vrot.slane %v3609, 1
    %v3944 = vrot.slane %v3503, 7
    %v3946 = vrot.slane %v3397, 5
    %v3948 = vrot.slane %v3291, 3
    %v3950 = vrot.slane %v3186, 1
    %v3952 = vsel %vm989, %v3936, %v3938
    %v3953 = vsel %vm150, %v3952, %v3940
    %v3954 = vsel %vm992, %v3953, %v3942
    %v3955 = vsel %vm994, %v3954, %v3944
    %v3956 = vsel %vm996, %v3955, %v3946
    %v3957 = vsel %vm998, %v3956, %v3948
    %v3958 = vsel %vm1000, %v3957, %v3950
    %3960 = vrot.lane.b32.xlu0 %v3934, 98
    %v3961 = vpop.permute.xlu0 %3960
    %3964 = vrot.lane.b32.xlu0 %v3958, 98
    %v3965 = vpop.permute.xlu0 %3964
    %v3967 = vsel %vm1040, %v3961, %v3965
    %v3968 = vld [vmem:[%s5] sm:$0xff]
    %v3969 = vld [vmem:[%s5 + $0x8] sm:$0x3]
    %v3970 = vld [vmem:[%s6] sm:$0x1]
    %v3972 = vlaneseq
    %v3973 = vshrl.u32 %v3972, 7
    %v3974 = vsub.s32 0, %v3973
    %v3975 = vrot.slane %v3970, %v3974
    %v3978 = vsel %vm146, %v3967, 0
    %v3981 = vsel %vm150, %v3969, 0
    %3983 = vmatprep.subr.mxu0 0.0
    %3984 = vmatpush1.msra.mxu0 %v3968
    %3985 = vmatprep.subr.mxu0 0.0
    %3986 = vmatpush1.msra.mxu0 %v3981
    %3987 = vmatprep.subr.mxu0 0.0
    %3988 = vmatpush1.msra.mxu0 0.0
    %3989 = vmatprep.subr.mxu0 0.0
    %3990 = vmatpush1.msra.mxu0 0.0
    %3991 = vmatprep.subr.mxu0 0.0
    %3992 = vmatpush1.msra.mxu0 0.0
    %3993 = vmatprep.subr.mxu0 0.0
    %3994 = vmatpush1.msra.mxu0 0.0
    %3995 = vmatprep.subr.mxu0 0.0
    %3996 = vmatpush1.msra.mxu0 0.0
    %3997 = vmatprep.subr.mxu0 0.0
    %3998 = vmatpush1.msra.mxu0 0.0
    %3999 = vmatprep.subr.mxu0 0.0
    %4000 = vmatpush1.msra.mxu0 0.0
    %4001 = vmatprep.subr.mxu0 0.0
    %4002 = vmatpush1.msra.mxu0 0.0
    %4003 = vmatprep.subr.mxu0 0.0
    %4004 = vmatpush1.msra.mxu0 0.0
    %4005 = vmatprep.subr.mxu0 0.0
    %4006 = vmatpush1.msra.mxu0 0.0
    %4007 = vmatprep.subr.mxu0 0.0
    %4008 = vmatpush1.msra.mxu0 0.0
    %4009 = vmatprep.subr.mxu0 0.0
    %4010 = vmatpush1.msra.mxu0 0.0
    %4011 = vmatprep.subr.mxu0 0.0
    %4012 = vmatpush1.msra.mxu0 0.0
    %4013 = vmatprep.subr.mxu0 0.0
    %4014 = vmatpush1.msra.mxu0 0.0
    %4015 = vmatprep.subr.mxu0 0.0
    %4016 = vmatpush1.msra.mxu0 0.0
    %4017 = vmatprep.subr.mxu0 0.0
    %4018 = vmatpush1.msra.mxu0 0.0
    %4019 = vmatprep.subr.mxu0 0.0
    %4020 = vmatpush1.msra.mxu0 0.0
    %4021 = vmatprep.subr.mxu0 0.0
    %4022 = vmatpush1.msra.mxu0 0.0
    %4023 = vmatprep.subr.mxu0 0.0
    %4024 = vmatpush1.msra.mxu0 0.0
    %4025 = vmatprep.subr.mxu0 0.0
    %4026 = vmatpush1.msra.mxu0 0.0
    %4027 = vmatprep.subr.mxu0 0.0
    %4028 = vmatpush1.msra.mxu0 0.0
    %4029 = vmatprep.subr.mxu0 0.0
    %4030 = vmatpush1.msra.mxu0 0.0
    %4031 = vmatprep.subr.mxu0 0.0
    %4032 = vmatpush1.msra.mxu0 0.0
    %4033 = vmatprep.subr.mxu0 0.0
    %4034 = vmatpush1.msra.mxu0 0.0
    %4035 = vmatprep.subr.mxu0 0.0
    %4036 = vmatpush1.msra.mxu0 0.0
    %4037 = vmatprep.subr.mxu0 0.0
    %4038 = vmatpush1.msra.mxu0 0.0
    %4039 = vmatprep.subr.mxu0 0.0
    %4040 = vmatpush1.msra.mxu0 0.0
    %4041 = vmatprep.subr.mxu0 0.0
    %4042 = vmatpush1.msra.mxu0 0.0
    %4043 = vmatprep.subr.mxu0 0.0
    %4044 = vmatpush1.msra.mxu0 0.0
    %4045 = vmatprep.subr.mxu0 0.0
    %4046 = vmatpush1.msra.mxu0 0.0
    %4047 = vmatprep.mubr.f32.mxu0 0.0
    %4048 = vmatmul.mubr.f32.gmra.mrb[0].mxu0 %v3978
    %v4049 = vpop.f32.mrb[0].mxu0
    %v4050 = vadd.f32 %v3975, %v4049
    %v4051 = vpop.f32.mrb[0].mxu0
    %4052 = vdwg.mxu0
    %4053 = vst [vmem:[#allocation7] sm:$0xff] %v4050
    // Predicated region
    $region38: #{tpu_custom_call.1} parent=1 // pred_check
      _
    $region39: #{tpu_custom_call.1} parent=1 // pred_check_branch
      %4055 = sbr.rel (0) target = $region41
    $region40: #{tpu_custom_call.1} parent=1 // pred_region
      %s4057 = ssub.s32 128, 128
      %4058 = vsyncadd [#allocation4], %s4057
      %s4060 = sshll.u32 [#allocation7], 4
      %s4061 = int_to_ptr.vmem [resolvable:$true] %s4060
      %4063 = dma.vmem_to_hbm [thread:$0]  %s4061, 128, %s7, [#allocation4]
    $region41: #{tpu_custom_call.1} parent=1 // pred_fallthru
      _
    // Predicated region
    $region42: #{tpu_custom_call.1} parent=1 // pred_check
      _
    $region43: #{tpu_custom_call.1} parent=1 // pred_check_branch
      %4065 = sbr.rel (0) target = $region45
    $region44: #{tpu_custom_call.1} parent=1 // pred_region
      %4066 = dma.done [#allocation4], 128
    $region45: #{tpu_custom_call.1} parent=1 // pred_fallthru
      _
    %4067 = vsyncpa [#allocation3], 1
    %4068 = vsyncpa [#allocation6], 1
    %4069 = vsyncpa [#allocation4], 1

</llo_original>
